<compile_context>
chip_gen: v5e
topology: v5e:2x2
jax: 0.10.0
libtpu: 0.0.40
codegen_flags: <defaults>
</compile_context>

<pallas_src>
import numpy as np

import jax
import jax.numpy as jnp
from jax import lax
from jax.experimental import pallas as pl
from jax.experimental.pallas import tpu as pltpu


# ----------------------------------------------------------------------------
# Fused kernel: conv1+relu+pool -> conv2+relu+pool -> fc, one batch tile / step
# ----------------------------------------------------------------------------
def _net_kernel(x_ref, w1_ref, b1_ref, w2_ref, b2_ref, wf_ref, bf_ref, o_ref):
    # x_ref : (TB, 28, 28)   input images
    # w1_ref: (168, 480)     banded conv1 weight  (rows: 6 in-rows x 28 cols,
    #                         lanes: (dy, dx, ow2(12), c(10)))
    # b1_ref: (1, 120)       conv1 bias tiled over ow2
    # w2_ref: (720, 320)     banded conv2 weight  (rows: 6 in-rows x (12 w x 10 c),
    #                         lanes: (dy, dx, ow2(4), c'(20)))
    # b2_ref: (1, 80)        conv2 bias tiled over ow2'
    # wf_ref: (320, 10)      fc weight, rows reordered to (h', w', c')
    # bf_ref: (1, 10)
    # o_ref : (TB, 10)
    w1 = w1_ref[...]
    b1 = b1_ref[...]
    w2 = w2_ref[...]
    b2 = b2_ref[...]
    wf = wf_ref[...]
    bf = bf_ref[...]

    # ---- conv1(5x5,1->10) + bias + relu + 2x2 maxpool, one pooled row at a time
    p1_rows = []                                       # 12 x (TB, 120), lanes (w, c)
    for oh2 in range(12):
        xrow = jnp.concatenate(
            [x_ref[:, 2 * oh2 + ri, :] for ri in range(6)], axis=-1)   # (TB, 168)
        y = jnp.dot(xrow, w1, preferred_element_type=jnp.float32)      # (TB, 480)
        m = jnp.maximum(jnp.maximum(y[:, 0:120], y[:, 120:240]),
                        jnp.maximum(y[:, 240:360], y[:, 360:480]))     # pool (dy,dx)
        p1_rows.append(jnp.maximum(m + b1, 0.0))                       # (TB, 120)

    # ---- conv2(5x5,10->20) + bias + relu + 2x2 maxpool
    p2_rows = []                                       # 4 x (TB, 80), lanes (w', c')
    for h in range(4):
        x2 = jnp.concatenate([p1_rows[2 * h + ri] for ri in range(6)],
                             axis=-1)                                  # (TB, 720)
        y = jnp.dot(x2, w2, preferred_element_type=jnp.float32)        # (TB, 320)
        m = jnp.maximum(jnp.maximum(y[:, 0:80], y[:, 80:160]),
                        jnp.maximum(y[:, 160:240], y[:, 240:320]))
        p2_rows.append(jnp.maximum(m + b2, 0.0))                       # (TB, 80)

    # ---- fc(320->10); flatten order handled by the host-side weight reorder
    feats = jnp.concatenate(p2_rows, axis=-1)                          # (TB, 320)
    logits = jnp.dot(feats, wf, preferred_element_type=jnp.float32) + bf
    o_ref[...] = logits.astype(o_ref.dtype)


def _pick_tb(n):
    if n >= 64:
        return 64
    return ((n + 7) // 8) * 8


def net_forward(x_nchw, kparams):
    """x: (N, 1, 28, 28) float32 -> logits (N, 10).  kparams from prepare_params."""
    w1m, b1v, w2m, b2v, wfm, bfv = kparams
    n, c, h, w = x_nchw.shape
    assert (c, h, w) == (1, 28, 28), "Net expects (N, 1, 28, 28) input"
    x = x_nchw.reshape(n, 28, 28).astype(jnp.float32)

    tb = _pick_tb(n)
    npad = ((n + tb - 1) // tb) * tb
    if npad != n:
        x = jnp.pad(x, ((0, npad - n), (0, 0), (0, 0)))

    out = pl.pallas_call(
        _net_kernel,
        out_shape=jax.ShapeDtypeStruct((npad, 10), jnp.float32),
        grid=(npad // tb,),
        in_specs=[
            pl.BlockSpec((tb, 28, 28), lambda i: (i, 0, 0)),   # input tile
            pl.BlockSpec((168, 480), lambda i: (0, 0)),        # resident weights
            pl.BlockSpec((1, 120), lambda i: (0, 0)),
            pl.BlockSpec((720, 320), lambda i: (0, 0)),
            pl.BlockSpec((1, 80), lambda i: (0, 0)),
            pl.BlockSpec((320, 10), lambda i: (0, 0)),
            pl.BlockSpec((1, 10), lambda i: (0, 0)),
        ],
        out_specs=pl.BlockSpec((tb, 10), lambda i: (i, 0)),
        compiler_params=pltpu.CompilerParams(
            dimension_semantics=("parallel",),
            vmem_limit_bytes=32 * 1024 * 1024,
        ),
    )(x, w1m, b1v, w2m, b2v, wfm, bfv)
    return out[:n]


# ----------------------------------------------------------------------------
# Host-side (one-time) re-packing of the torch-layout parameters
# ----------------------------------------------------------------------------
def prepare_params(params):
    """Convert torch-layout params into the banded/lane-ordered kernel layout."""
    w1, b1, w2, b2, wf, bf = (np.asarray(p, np.float32) for p in params)

    # conv1: W1[ri*28+w, ((dy*2+dx)*12+ow2)*10+c] = w1[c,0,ri-dy, w-(2*ow2+dx)]
    W1 = np.zeros((6, 28, 2, 2, 12, 10), np.float32)
    for dy in range(2):
        for dx in range(2):
            for ki in range(5):
                for kj in range(5):
                    for ow2 in range(12):
                        W1[dy + ki, 2 * ow2 + dx + kj, dy, dx, ow2, :] = w1[:, 0, ki, kj]
    W1 = W1.reshape(168, 480)
    b1v = np.tile(b1, 12).reshape(1, 120)               # lane = ow2*10 + c

    # conv2: W2[ri*120+w*10+c, ((dy*2+dx)*4+ow2)*20+c'] = w2[c',c,ri-dy, w-(2*ow2+dx)]
    W2 = np.zeros((6, 12, 10, 2, 2, 4, 20), np.float32)
    for dy in range(2):
        for dx in range(2):
            for ki in range(5):
                for kj in range(5):
                    for ow2 in range(4):
                        W2[dy + ki, 2 * ow2 + dx + kj, :, dy, dx, ow2, :] = w2[:, :, ki, kj].T
    W2 = W2.reshape(720, 320)
    b2v = np.tile(b2, 4).reshape(1, 80)                 # lane = ow2'*20 + c'

    # fc: kernel features are ordered (h', w', c'); torch flatten is (c', h', w').
    Wf = wf.reshape(10, 20, 4, 4).transpose(2, 3, 1, 0).reshape(320, 10)
    bfv = bf.reshape(1, 10)

    return tuple(jnp.asarray(a) for a in (W1, b1v, W2, b2v, Wf, bfv))


# ----------------------------------------------------------------------------
# Pure-JAX reference (for correctness check) + parameter init
# ----------------------------------------------------------------------------
def reference_forward(x, params):
    w1, b1, w2, b2, wf, bf = params

    def block(x, w, b):
        y = lax.conv_general_dilated(
            x, w, (1, 1), "VALID", dimension_numbers=("NCHW", "OIHW", "NCHW"))
        y = jnp.maximum(y + b[None, :, None, None], 0.0)
        return lax.reduce_window(
            y, -jnp.inf, lax.max, (1, 1, 2, 2), (1, 1, 2, 2), "VALID")

    x = block(x, w1, b1)
    x = block(x, w2, b2)
    x = x.reshape(x.shape[0], 320)
    return x @ wf.T + bf


def init_params(key):
    k1, k2, k3, k4, k5, k6 = jax.random.split(key, 6)
    w1 = jax.random.normal(k1, (10, 1, 5, 5), jnp.float32) * 0.1
    b1 = jax.random.normal(k2, (10,), jnp.float32) * 0.1
    w2 = jax.random.normal(k3, (20, 10, 5, 5), jnp.float32) * 0.05
    b2 = jax.random.normal(k4, (20,), jnp.float32) * 0.05
    wf = jax.random.normal(k5, (10, 320), jnp.float32) * 0.05
    bf = jax.random.normal(k6, (10,), jnp.float32) * 0.05
    return (w1, b1, w2, b2, wf, bf)


if __name__ == "__main__":
    # Input spatial size must be 28x28 so the flatten yields 320 features.
    x = jax.random.normal(jax.random.PRNGKey(0), (2, 1, 28, 28), jnp.float32)
    params = init_params(jax.random.PRNGKey(42))        # torch-layout parameters
    kparams = prepare_params(params)                    # one-time host repack

    fwd = jax.jit(net_forward)
    out = jax.block_until_ready(fwd(x, kparams))

    ref = reference_forward(x, params)
    assert out.shape == (2, 10)
    err = jnp.max(jnp.abs(out - ref))
    assert jnp.allclose(out, ref, atol=1e-3, rtol=1e-3), f"mismatch vs reference: {err}"

    print("KERNEL_OK")
</pallas_src>

<mosaic_0001>
module attributes {stable_mosaic.version = 11 : i64} {
  func.func @_net_kernel(%arg0: i32, %arg1: memref<8x28x28xf32, #tpu.memory_space<vmem>>, %arg2: memref<168x480xf32, #tpu.memory_space<vmem>>, %arg3: memref<1x120xf32, #tpu.memory_space<vmem>>, %arg4: memref<720x320xf32, #tpu.memory_space<vmem>>, %arg5: memref<1x80xf32, #tpu.memory_space<vmem>>, %arg6: memref<320x10xf32, #tpu.memory_space<vmem>>, %arg7: memref<1x10xf32, #tpu.memory_space<vmem>>, %arg8: memref<8x10xf32, #tpu.memory_space<vmem>>) attributes {dimension_semantics = [#tpu.dimension_semantics<parallel>], iteration_bounds = array<i64: 1>, scalar_prefetch = 0 : i64, scratch_operands = 0 : i64, tpu.core_type = #tpu.core_type<tc>, window_params = [{transform_indices = @transform_0, window_bounds = array<i64: 8, 28, 28>}, {pipeline_mode = #tpu.pipeline_mode<synchronous>, transform_indices = @transform_1, window_bounds = array<i64: 168, 480>}, {pipeline_mode = #tpu.pipeline_mode<synchronous>, transform_indices = @transform_2, window_bounds = array<i64: 1, 120>}, {pipeline_mode = #tpu.pipeline_mode<synchronous>, transform_indices = @transform_3, window_bounds = array<i64: 720, 320>}, {pipeline_mode = #tpu.pipeline_mode<synchronous>, transform_indices = @transform_4, window_bounds = array<i64: 1, 80>}, {pipeline_mode = #tpu.pipeline_mode<synchronous>, transform_indices = @transform_5, window_bounds = array<i64: 320, 10>}, {pipeline_mode = #tpu.pipeline_mode<synchronous>, transform_indices = @transform_6, window_bounds = array<i64: 1, 10>}, {transform_indices = @transform_7, window_bounds = array<i64: 8, 10>}]} {
    %c0 = arith.constant 0 : index
    %c0_0 = arith.constant 0 : index
    %0 = vector.load %arg2[%c0, %c0_0] : memref<168x480xf32, #tpu.memory_space<vmem>>, vector<168x480xf32>
    %c0_1 = arith.constant 0 : index
    %c0_2 = arith.constant 0 : index
    %1 = vector.load %arg3[%c0_1, %c0_2] : memref<1x120xf32, #tpu.memory_space<vmem>>, vector<1x120xf32>
    %c0_3 = arith.constant 0 : index
    %c0_4 = arith.constant 0 : index
    %2 = vector.load %arg4[%c0_3, %c0_4] : memref<720x320xf32, #tpu.memory_space<vmem>>, vector<720x320xf32>
    %c0_5 = arith.constant 0 : index
    %c0_6 = arith.constant 0 : index
    %3 = vector.load %arg5[%c0_5, %c0_6] : memref<1x80xf32, #tpu.memory_space<vmem>>, vector<1x80xf32>
    %c0_7 = arith.constant 0 : index
    %c0_8 = arith.constant 0 : index
    %4 = vector.load %arg6[%c0_7, %c0_8] : memref<320x10xf32, #tpu.memory_space<vmem>>, vector<320x10xf32>
    %c0_9 = arith.constant 0 : index
    %c0_10 = arith.constant 0 : index
    %5 = vector.load %arg7[%c0_9, %c0_10] : memref<1x10xf32, #tpu.memory_space<vmem>>, vector<1x10xf32>
    %c0_11 = arith.constant 0 : index
    %c0_12 = arith.constant 0 : index
    %c0_13 = arith.constant 0 : index
    %6 = vector.load %arg1[%c0_11, %c0_12, %c0_13] : memref<8x28x28xf32, #tpu.memory_space<vmem>>, vector<8x1x28xf32>
    %7 = vector.shape_cast %6 : vector<8x1x28xf32> to vector<8x28xf32>
    %c0_14 = arith.constant 0 : index
    %c1 = arith.constant 1 : index
    %c0_15 = arith.constant 0 : index
    %8 = vector.load %arg1[%c0_14, %c1, %c0_15] : memref<8x28x28xf32, #tpu.memory_space<vmem>>, vector<8x1x28xf32>
    %9 = vector.shape_cast %8 : vector<8x1x28xf32> to vector<8x28xf32>
    %c0_16 = arith.constant 0 : index
    %c2 = arith.constant 2 : index
    %c0_17 = arith.constant 0 : index
    %10 = vector.load %arg1[%c0_16, %c2, %c0_17] : memref<8x28x28xf32, #tpu.memory_space<vmem>>, vector<8x1x28xf32>
    %11 = vector.shape_cast %10 : vector<8x1x28xf32> to vector<8x28xf32>
    %c0_18 = arith.constant 0 : index
    %c3 = arith.constant 3 : index
    %c0_19 = arith.constant 0 : index
    %12 = vector.load %arg1[%c0_18, %c3, %c0_19] : memref<8x28x28xf32, #tpu.memory_space<vmem>>, vector<8x1x28xf32>
    %13 = vector.shape_cast %12 : vector<8x1x28xf32> to vector<8x28xf32>
    %c0_20 = arith.constant 0 : index
    %c4 = arith.constant 4 : index
    %c0_21 = arith.constant 0 : index
    %14 = vector.load %arg1[%c0_20, %c4, %c0_21] : memref<8x28x28xf32, #tpu.memory_space<vmem>>, vector<8x1x28xf32>
    %15 = vector.shape_cast %14 : vector<8x1x28xf32> to vector<8x28xf32>
    %c0_22 = arith.constant 0 : index
    %c5 = arith.constant 5 : index
    %c0_23 = arith.constant 0 : index
    %16 = vector.load %arg1[%c0_22, %c5, %c0_23] : memref<8x28x28xf32, #tpu.memory_space<vmem>>, vector<8x1x28xf32>
    %17 = vector.shape_cast %16 : vector<8x1x28xf32> to vector<8x28xf32>
    %18 = tpu.concatenate %7, %9, %11, %13, %15, %17 in 1 : vector<8x28xf32>, vector<8x28xf32>, vector<8x28xf32>, vector<8x28xf32>, vector<8x28xf32>, vector<8x28xf32> -> vector<8x168xf32>
    %cst = arith.constant dense<0.000000e+00> : vector<8x480xf32>
    %19 = tpu.matmul %18, %0, %cst {dimension_numbers = #tpu.dot_dimension_numbers<[1], [0], [0], [1], [0, 0, 1, 1], [], []>} : vector<8x168xf32>, vector<168x480xf32>, vector<8x480xf32> -> vector<8x480xf32>
    %20 = vector.extract_strided_slice %19 {offsets = [0, 0], sizes = [8, 120], strides = [1, 1]} : vector<8x480xf32> to vector<8x120xf32>
    %21 = vector.extract_strided_slice %19 {offsets = [0, 120], sizes = [8, 120], strides = [1, 1]} : vector<8x480xf32> to vector<8x120xf32>
    %22 = arith.maximumf %20, %21 : vector<8x120xf32>
    %23 = vector.extract_strided_slice %19 {offsets = [0, 240], sizes = [8, 120], strides = [1, 1]} : vector<8x480xf32> to vector<8x120xf32>
    %24 = vector.extract_strided_slice %19 {offsets = [0, 360], sizes = [8, 120], strides = [1, 1]} : vector<8x480xf32> to vector<8x120xf32>
    %25 = arith.maximumf %23, %24 : vector<8x120xf32>
    %26 = arith.maximumf %22, %25 : vector<8x120xf32>
    %27 = vector.broadcast %1 : vector<1x120xf32> to vector<8x120xf32>
    %28 = arith.addf %26, %27 : vector<8x120xf32>
    %cst_24 = arith.constant 0.000000e+00 : f32
    %29 = vector.broadcast %cst_24 : f32 to vector<8x120xf32>
    %30 = arith.maximumf %28, %29 : vector<8x120xf32>
    %c0_25 = arith.constant 0 : index
    %c2_26 = arith.constant 2 : index
    %c0_27 = arith.constant 0 : index
    %31 = vector.load %arg1[%c0_25, %c2_26, %c0_27] : memref<8x28x28xf32, #tpu.memory_space<vmem>>, vector<8x1x28xf32>
    %32 = vector.shape_cast %31 : vector<8x1x28xf32> to vector<8x28xf32>
    %c0_28 = arith.constant 0 : index
    %c3_29 = arith.constant 3 : index
    %c0_30 = arith.constant 0 : index
    %33 = vector.load %arg1[%c0_28, %c3_29, %c0_30] : memref<8x28x28xf32, #tpu.memory_space<vmem>>, vector<8x1x28xf32>
    %34 = vector.shape_cast %33 : vector<8x1x28xf32> to vector<8x28xf32>
    %c0_31 = arith.constant 0 : index
    %c4_32 = arith.constant 4 : index
    %c0_33 = arith.constant 0 : index
    %35 = vector.load %arg1[%c0_31, %c4_32, %c0_33] : memref<8x28x28xf32, #tpu.memory_space<vmem>>, vector<8x1x28xf32>
    %36 = vector.shape_cast %35 : vector<8x1x28xf32> to vector<8x28xf32>
    %c0_34 = arith.constant 0 : index
    %c5_35 = arith.constant 5 : index
    %c0_36 = arith.constant 0 : index
    %37 = vector.load %arg1[%c0_34, %c5_35, %c0_36] : memref<8x28x28xf32, #tpu.memory_space<vmem>>, vector<8x1x28xf32>
    %38 = vector.shape_cast %37 : vector<8x1x28xf32> to vector<8x28xf32>
    %c0_37 = arith.constant 0 : index
    %c6 = arith.constant 6 : index
    %c0_38 = arith.constant 0 : index
    %39 = vector.load %arg1[%c0_37, %c6, %c0_38] : memref<8x28x28xf32, #tpu.memory_space<vmem>>, vector<8x1x28xf32>
    %40 = vector.shape_cast %39 : vector<8x1x28xf32> to vector<8x28xf32>
    %c0_39 = arith.constant 0 : index
    %c7 = arith.constant 7 : index
    %c0_40 = arith.constant 0 : index
    %41 = vector.load %arg1[%c0_39, %c7, %c0_40] : memref<8x28x28xf32, #tpu.memory_space<vmem>>, vector<8x1x28xf32>
    %42 = vector.shape_cast %41 : vector<8x1x28xf32> to vector<8x28xf32>
    %43 = tpu.concatenate %32, %34, %36, %38, %40, %42 in 1 : vector<8x28xf32>, vector<8x28xf32>, vector<8x28xf32>, vector<8x28xf32>, vector<8x28xf32>, vector<8x28xf32> -> vector<8x168xf32>
    %cst_41 = arith.constant dense<0.000000e+00> : vector<8x480xf32>
    %44 = tpu.matmul %43, %0, %cst_41 {dimension_numbers = #tpu.dot_dimension_numbers<[1], [0], [0], [1], [0, 0, 1, 1], [], []>} : vector<8x168xf32>, vector<168x480xf32>, vector<8x480xf32> -> vector<8x480xf32>
    %45 = vector.extract_strided_slice %44 {offsets = [0, 0], sizes = [8, 120], strides = [1, 1]} : vector<8x480xf32> to vector<8x120xf32>
    %46 = vector.extract_strided_slice %44 {offsets = [0, 120], sizes = [8, 120], strides = [1, 1]} : vector<8x480xf32> to vector<8x120xf32>
    %47 = arith.maximumf %45, %46 : vector<8x120xf32>
    %48 = vector.extract_strided_slice %44 {offsets = [0, 240], sizes = [8, 120], strides = [1, 1]} : vector<8x480xf32> to vector<8x120xf32>
    %49 = vector.extract_strided_slice %44 {offsets = [0, 360], sizes = [8, 120], strides = [1, 1]} : vector<8x480xf32> to vector<8x120xf32>
    %50 = arith.maximumf %48, %49 : vector<8x120xf32>
    %51 = arith.maximumf %47, %50 : vector<8x120xf32>
    %52 = vector.broadcast %1 : vector<1x120xf32> to vector<8x120xf32>
    %53 = arith.addf %51, %52 : vector<8x120xf32>
    %cst_42 = arith.constant 0.000000e+00 : f32
    %54 = vector.broadcast %cst_42 : f32 to vector<8x120xf32>
    %55 = arith.maximumf %53, %54 : vector<8x120xf32>
    %c0_43 = arith.constant 0 : index
    %c4_44 = arith.constant 4 : index
    %c0_45 = arith.constant 0 : index
    %56 = vector.load %arg1[%c0_43, %c4_44, %c0_45] : memref<8x28x28xf32, #tpu.memory_space<vmem>>, vector<8x1x28xf32>
    %57 = vector.shape_cast %56 : vector<8x1x28xf32> to vector<8x28xf32>
    %c0_46 = arith.constant 0 : index
    %c5_47 = arith.constant 5 : index
    %c0_48 = arith.constant 0 : index
    %58 = vector.load %arg1[%c0_46, %c5_47, %c0_48] : memref<8x28x28xf32, #tpu.memory_space<vmem>>, vector<8x1x28xf32>
    %59 = vector.shape_cast %58 : vector<8x1x28xf32> to vector<8x28xf32>
    %c0_49 = arith.constant 0 : index
    %c6_50 = arith.constant 6 : index
    %c0_51 = arith.constant 0 : index
    %60 = vector.load %arg1[%c0_49, %c6_50, %c0_51] : memref<8x28x28xf32, #tpu.memory_space<vmem>>, vector<8x1x28xf32>
    %61 = vector.shape_cast %60 : vector<8x1x28xf32> to vector<8x28xf32>
    %c0_52 = arith.constant 0 : index
    %c7_53 = arith.constant 7 : index
    %c0_54 = arith.constant 0 : index
    %62 = vector.load %arg1[%c0_52, %c7_53, %c0_54] : memref<8x28x28xf32, #tpu.memory_space<vmem>>, vector<8x1x28xf32>
    %63 = vector.shape_cast %62 : vector<8x1x28xf32> to vector<8x28xf32>
    %c0_55 = arith.constant 0 : index
    %c8 = arith.constant 8 : index
    %c0_56 = arith.constant 0 : index
    %64 = vector.load %arg1[%c0_55, %c8, %c0_56] : memref<8x28x28xf32, #tpu.memory_space<vmem>>, vector<8x1x28xf32>
    %65 = vector.shape_cast %64 : vector<8x1x28xf32> to vector<8x28xf32>
    %c0_57 = arith.constant 0 : index
    %c9 = arith.constant 9 : index
    %c0_58 = arith.constant 0 : index
    %66 = vector.load %arg1[%c0_57, %c9, %c0_58] : memref<8x28x28xf32, #tpu.memory_space<vmem>>, vector<8x1x28xf32>
    %67 = vector.shape_cast %66 : vector<8x1x28xf32> to vector<8x28xf32>
    %68 = tpu.concatenate %57, %59, %61, %63, %65, %67 in 1 : vector<8x28xf32>, vector<8x28xf32>, vector<8x28xf32>, vector<8x28xf32>, vector<8x28xf32>, vector<8x28xf32> -> vector<8x168xf32>
    %cst_59 = arith.constant dense<0.000000e+00> : vector<8x480xf32>
    %69 = tpu.matmul %68, %0, %cst_59 {dimension_numbers = #tpu.dot_dimension_numbers<[1], [0], [0], [1], [0, 0, 1, 1], [], []>} : vector<8x168xf32>, vector<168x480xf32>, vector<8x480xf32> -> vector<8x480xf32>
    %70 = vector.extract_strided_slice %69 {offsets = [0, 0], sizes = [8, 120], strides = [1, 1]} : vector<8x480xf32> to vector<8x120xf32>
    %71 = vector.extract_strided_slice %69 {offsets = [0, 120], sizes = [8, 120], strides = [1, 1]} : vector<8x480xf32> to vector<8x120xf32>
    %72 = arith.maximumf %70, %71 : vector<8x120xf32>
    %73 = vector.extract_strided_slice %69 {offsets = [0, 240], sizes = [8, 120], strides = [1, 1]} : vector<8x480xf32> to vector<8x120xf32>
    %74 = vector.extract_strided_slice %69 {offsets = [0, 360], sizes = [8, 120], strides = [1, 1]} : vector<8x480xf32> to vector<8x120xf32>
    %75 = arith.maximumf %73, %74 : vector<8x120xf32>
    %76 = arith.maximumf %72, %75 : vector<8x120xf32>
    %77 = vector.broadcast %1 : vector<1x120xf32> to vector<8x120xf32>
    %78 = arith.addf %76, %77 : vector<8x120xf32>
    %cst_60 = arith.constant 0.000000e+00 : f32
    %79 = vector.broadcast %cst_60 : f32 to vector<8x120xf32>
    %80 = arith.maximumf %78, %79 : vector<8x120xf32>
    %c0_61 = arith.constant 0 : index
    %c6_62 = arith.constant 6 : index
    %c0_63 = arith.constant 0 : index
    %81 = vector.load %arg1[%c0_61, %c6_62, %c0_63] : memref<8x28x28xf32, #tpu.memory_space<vmem>>, vector<8x1x28xf32>
    %82 = vector.shape_cast %81 : vector<8x1x28xf32> to vector<8x28xf32>
    %c0_64 = arith.constant 0 : index
    %c7_65 = arith.constant 7 : index
    %c0_66 = arith.constant 0 : index
    %83 = vector.load %arg1[%c0_64, %c7_65, %c0_66] : memref<8x28x28xf32, #tpu.memory_space<vmem>>, vector<8x1x28xf32>
    %84 = vector.shape_cast %83 : vector<8x1x28xf32> to vector<8x28xf32>
    %c0_67 = arith.constant 0 : index
    %c8_68 = arith.constant 8 : index
    %c0_69 = arith.constant 0 : index
    %85 = vector.load %arg1[%c0_67, %c8_68, %c0_69] : memref<8x28x28xf32, #tpu.memory_space<vmem>>, vector<8x1x28xf32>
    %86 = vector.shape_cast %85 : vector<8x1x28xf32> to vector<8x28xf32>
    %c0_70 = arith.constant 0 : index
    %c9_71 = arith.constant 9 : index
    %c0_72 = arith.constant 0 : index
    %87 = vector.load %arg1[%c0_70, %c9_71, %c0_72] : memref<8x28x28xf32, #tpu.memory_space<vmem>>, vector<8x1x28xf32>
    %88 = vector.shape_cast %87 : vector<8x1x28xf32> to vector<8x28xf32>
    %c0_73 = arith.constant 0 : index
    %c10 = arith.constant 10 : index
    %c0_74 = arith.constant 0 : index
    %89 = vector.load %arg1[%c0_73, %c10, %c0_74] : memref<8x28x28xf32, #tpu.memory_space<vmem>>, vector<8x1x28xf32>
    %90 = vector.shape_cast %89 : vector<8x1x28xf32> to vector<8x28xf32>
    %c0_75 = arith.constant 0 : index
    %c11 = arith.constant 11 : index
    %c0_76 = arith.constant 0 : index
    %91 = vector.load %arg1[%c0_75, %c11, %c0_76] : memref<8x28x28xf32, #tpu.memory_space<vmem>>, vector<8x1x28xf32>
    %92 = vector.shape_cast %91 : vector<8x1x28xf32> to vector<8x28xf32>
    %93 = tpu.concatenate %82, %84, %86, %88, %90, %92 in 1 : vector<8x28xf32>, vector<8x28xf32>, vector<8x28xf32>, vector<8x28xf32>, vector<8x28xf32>, vector<8x28xf32> -> vector<8x168xf32>
    %cst_77 = arith.constant dense<0.000000e+00> : vector<8x480xf32>
    %94 = tpu.matmul %93, %0, %cst_77 {dimension_numbers = #tpu.dot_dimension_numbers<[1], [0], [0], [1], [0, 0, 1, 1], [], []>} : vector<8x168xf32>, vector<168x480xf32>, vector<8x480xf32> -> vector<8x480xf32>
    %95 = vector.extract_strided_slice %94 {offsets = [0, 0], sizes = [8, 120], strides = [1, 1]} : vector<8x480xf32> to vector<8x120xf32>
    %96 = vector.extract_strided_slice %94 {offsets = [0, 120], sizes = [8, 120], strides = [1, 1]} : vector<8x480xf32> to vector<8x120xf32>
    %97 = arith.maximumf %95, %96 : vector<8x120xf32>
    %98 = vector.extract_strided_slice %94 {offsets = [0, 240], sizes = [8, 120], strides = [1, 1]} : vector<8x480xf32> to vector<8x120xf32>
    %99 = vector.extract_strided_slice %94 {offsets = [0, 360], sizes = [8, 120], strides = [1, 1]} : vector<8x480xf32> to vector<8x120xf32>
    %100 = arith.maximumf %98, %99 : vector<8x120xf32>
    %101 = arith.maximumf %97, %100 : vector<8x120xf32>
    %102 = vector.broadcast %1 : vector<1x120xf32> to vector<8x120xf32>
    %103 = arith.addf %101, %102 : vector<8x120xf32>
    %cst_78 = arith.constant 0.000000e+00 : f32
    %104 = vector.broadcast %cst_78 : f32 to vector<8x120xf32>
    %105 = arith.maximumf %103, %104 : vector<8x120xf32>
    %c0_79 = arith.constant 0 : index
    %c8_80 = arith.constant 8 : index
    %c0_81 = arith.constant 0 : index
    %106 = vector.load %arg1[%c0_79, %c8_80, %c0_81] : memref<8x28x28xf32, #tpu.memory_space<vmem>>, vector<8x1x28xf32>
    %107 = vector.shape_cast %106 : vector<8x1x28xf32> to vector<8x28xf32>
    %c0_82 = arith.constant 0 : index
    %c9_83 = arith.constant 9 : index
    %c0_84 = arith.constant 0 : index
    %108 = vector.load %arg1[%c0_82, %c9_83, %c0_84] : memref<8x28x28xf32, #tpu.memory_space<vmem>>, vector<8x1x28xf32>
    %109 = vector.shape_cast %108 : vector<8x1x28xf32> to vector<8x28xf32>
    %c0_85 = arith.constant 0 : index
    %c10_86 = arith.constant 10 : index
    %c0_87 = arith.constant 0 : index
    %110 = vector.load %arg1[%c0_85, %c10_86, %c0_87] : memref<8x28x28xf32, #tpu.memory_space<vmem>>, vector<8x1x28xf32>
    %111 = vector.shape_cast %110 : vector<8x1x28xf32> to vector<8x28xf32>
    %c0_88 = arith.constant 0 : index
    %c11_89 = arith.constant 11 : index
    %c0_90 = arith.constant 0 : index
    %112 = vector.load %arg1[%c0_88, %c11_89, %c0_90] : memref<8x28x28xf32, #tpu.memory_space<vmem>>, vector<8x1x28xf32>
    %113 = vector.shape_cast %112 : vector<8x1x28xf32> to vector<8x28xf32>
    %c0_91 = arith.constant 0 : index
    %c12 = arith.constant 12 : index
    %c0_92 = arith.constant 0 : index
    %114 = vector.load %arg1[%c0_91, %c12, %c0_92] : memref<8x28x28xf32, #tpu.memory_space<vmem>>, vector<8x1x28xf32>
    %115 = vector.shape_cast %114 : vector<8x1x28xf32> to vector<8x28xf32>
    %c0_93 = arith.constant 0 : index
    %c13 = arith.constant 13 : index
    %c0_94 = arith.constant 0 : index
    %116 = vector.load %arg1[%c0_93, %c13, %c0_94] : memref<8x28x28xf32, #tpu.memory_space<vmem>>, vector<8x1x28xf32>
    %117 = vector.shape_cast %116 : vector<8x1x28xf32> to vector<8x28xf32>
    %118 = tpu.concatenate %107, %109, %111, %113, %115, %117 in 1 : vector<8x28xf32>, vector<8x28xf32>, vector<8x28xf32>, vector<8x28xf32>, vector<8x28xf32>, vector<8x28xf32> -> vector<8x168xf32>
    %cst_95 = arith.constant dense<0.000000e+00> : vector<8x480xf32>
    %119 = tpu.matmul %118, %0, %cst_95 {dimension_numbers = #tpu.dot_dimension_numbers<[1], [0], [0], [1], [0, 0, 1, 1], [], []>} : vector<8x168xf32>, vector<168x480xf32>, vector<8x480xf32> -> vector<8x480xf32>
    %120 = vector.extract_strided_slice %119 {offsets = [0, 0], sizes = [8, 120], strides = [1, 1]} : vector<8x480xf32> to vector<8x120xf32>
    %121 = vector.extract_strided_slice %119 {offsets = [0, 120], sizes = [8, 120], strides = [1, 1]} : vector<8x480xf32> to vector<8x120xf32>
    %122 = arith.maximumf %120, %121 : vector<8x120xf32>
    %123 = vector.extract_strided_slice %119 {offsets = [0, 240], sizes = [8, 120], strides = [1, 1]} : vector<8x480xf32> to vector<8x120xf32>
    %124 = vector.extract_strided_slice %119 {offsets = [0, 360], sizes = [8, 120], strides = [1, 1]} : vector<8x480xf32> to vector<8x120xf32>
    %125 = arith.maximumf %123, %124 : vector<8x120xf32>
    %126 = arith.maximumf %122, %125 : vector<8x120xf32>
    %127 = vector.broadcast %1 : vector<1x120xf32> to vector<8x120xf32>
    %128 = arith.addf %126, %127 : vector<8x120xf32>
    %cst_96 = arith.constant 0.000000e+00 : f32
    %129 = vector.broadcast %cst_96 : f32 to vector<8x120xf32>
    %130 = arith.maximumf %128, %129 : vector<8x120xf32>
    %c0_97 = arith.constant 0 : index
    %c10_98 = arith.constant 10 : index
    %c0_99 = arith.constant 0 : index
    %131 = vector.load %arg1[%c0_97, %c10_98, %c0_99] : memref<8x28x28xf32, #tpu.memory_space<vmem>>, vector<8x1x28xf32>
    %132 = vector.shape_cast %131 : vector<8x1x28xf32> to vector<8x28xf32>
    %c0_100 = arith.constant 0 : index
    %c11_101 = arith.constant 11 : index
    %c0_102 = arith.constant 0 : index
    %133 = vector.load %arg1[%c0_100, %c11_101, %c0_102] : memref<8x28x28xf32, #tpu.memory_space<vmem>>, vector<8x1x28xf32>
    %134 = vector.shape_cast %133 : vector<8x1x28xf32> to vector<8x28xf32>
    %c0_103 = arith.constant 0 : index
    %c12_104 = arith.constant 12 : index
    %c0_105 = arith.constant 0 : index
    %135 = vector.load %arg1[%c0_103, %c12_104, %c0_105] : memref<8x28x28xf32, #tpu.memory_space<vmem>>, vector<8x1x28xf32>
    %136 = vector.shape_cast %135 : vector<8x1x28xf32> to vector<8x28xf32>
    %c0_106 = arith.constant 0 : index
    %c13_107 = arith.constant 13 : index
    %c0_108 = arith.constant 0 : index
    %137 = vector.load %arg1[%c0_106, %c13_107, %c0_108] : memref<8x28x28xf32, #tpu.memory_space<vmem>>, vector<8x1x28xf32>
    %138 = vector.shape_cast %137 : vector<8x1x28xf32> to vector<8x28xf32>
    %c0_109 = arith.constant 0 : index
    %c14 = arith.constant 14 : index
    %c0_110 = arith.constant 0 : index
    %139 = vector.load %arg1[%c0_109, %c14, %c0_110] : memref<8x28x28xf32, #tpu.memory_space<vmem>>, vector<8x1x28xf32>
    %140 = vector.shape_cast %139 : vector<8x1x28xf32> to vector<8x28xf32>
    %c0_111 = arith.constant 0 : index
    %c15 = arith.constant 15 : index
    %c0_112 = arith.constant 0 : index
    %141 = vector.load %arg1[%c0_111, %c15, %c0_112] : memref<8x28x28xf32, #tpu.memory_space<vmem>>, vector<8x1x28xf32>
    %142 = vector.shape_cast %141 : vector<8x1x28xf32> to vector<8x28xf32>
    %143 = tpu.concatenate %132, %134, %136, %138, %140, %142 in 1 : vector<8x28xf32>, vector<8x28xf32>, vector<8x28xf32>, vector<8x28xf32>, vector<8x28xf32>, vector<8x28xf32> -> vector<8x168xf32>
    %cst_113 = arith.constant dense<0.000000e+00> : vector<8x480xf32>
    %144 = tpu.matmul %143, %0, %cst_113 {dimension_numbers = #tpu.dot_dimension_numbers<[1], [0], [0], [1], [0, 0, 1, 1], [], []>} : vector<8x168xf32>, vector<168x480xf32>, vector<8x480xf32> -> vector<8x480xf32>
    %145 = vector.extract_strided_slice %144 {offsets = [0, 0], sizes = [8, 120], strides = [1, 1]} : vector<8x480xf32> to vector<8x120xf32>
    %146 = vector.extract_strided_slice %144 {offsets = [0, 120], sizes = [8, 120], strides = [1, 1]} : vector<8x480xf32> to vector<8x120xf32>
    %147 = arith.maximumf %145, %146 : vector<8x120xf32>
    %148 = vector.extract_strided_slice %144 {offsets = [0, 240], sizes = [8, 120], strides = [1, 1]} : vector<8x480xf32> to vector<8x120xf32>
    %149 = vector.extract_strided_slice %144 {offsets = [0, 360], sizes = [8, 120], strides = [1, 1]} : vector<8x480xf32> to vector<8x120xf32>
    %150 = arith.maximumf %148, %149 : vector<8x120xf32>
    %151 = arith.maximumf %147, %150 : vector<8x120xf32>
    %152 = vector.broadcast %1 : vector<1x120xf32> to vector<8x120xf32>
    %153 = arith.addf %151, %152 : vector<8x120xf32>
    %cst_114 = arith.constant 0.000000e+00 : f32
    %154 = vector.broadcast %cst_114 : f32 to vector<8x120xf32>
    %155 = arith.maximumf %153, %154 : vector<8x120xf32>
    %c0_115 = arith.constant 0 : index
    %c12_116 = arith.constant 12 : index
    %c0_117 = arith.constant 0 : index
    %156 = vector.load %arg1[%c0_115, %c12_116, %c0_117] : memref<8x28x28xf32, #tpu.memory_space<vmem>>, vector<8x1x28xf32>
    %157 = vector.shape_cast %156 : vector<8x1x28xf32> to vector<8x28xf32>
    %c0_118 = arith.constant 0 : index
    %c13_119 = arith.constant 13 : index
    %c0_120 = arith.constant 0 : index
    %158 = vector.load %arg1[%c0_118, %c13_119, %c0_120] : memref<8x28x28xf32, #tpu.memory_space<vmem>>, vector<8x1x28xf32>
    %159 = vector.shape_cast %158 : vector<8x1x28xf32> to vector<8x28xf32>
    %c0_121 = arith.constant 0 : index
    %c14_122 = arith.constant 14 : index
    %c0_123 = arith.constant 0 : index
    %160 = vector.load %arg1[%c0_121, %c14_122, %c0_123] : memref<8x28x28xf32, #tpu.memory_space<vmem>>, vector<8x1x28xf32>
    %161 = vector.shape_cast %160 : vector<8x1x28xf32> to vector<8x28xf32>
    %c0_124 = arith.constant 0 : index
    %c15_125 = arith.constant 15 : index
    %c0_126 = arith.constant 0 : index
    %162 = vector.load %arg1[%c0_124, %c15_125, %c0_126] : memref<8x28x28xf32, #tpu.memory_space<vmem>>, vector<8x1x28xf32>
    %163 = vector.shape_cast %162 : vector<8x1x28xf32> to vector<8x28xf32>
    %c0_127 = arith.constant 0 : index
    %c16 = arith.constant 16 : index
    %c0_128 = arith.constant 0 : index
    %164 = vector.load %arg1[%c0_127, %c16, %c0_128] : memref<8x28x28xf32, #tpu.memory_space<vmem>>, vector<8x1x28xf32>
    %165 = vector.shape_cast %164 : vector<8x1x28xf32> to vector<8x28xf32>
    %c0_129 = arith.constant 0 : index
    %c17 = arith.constant 17 : index
    %c0_130 = arith.constant 0 : index
    %166 = vector.load %arg1[%c0_129, %c17, %c0_130] : memref<8x28x28xf32, #tpu.memory_space<vmem>>, vector<8x1x28xf32>
    %167 = vector.shape_cast %166 : vector<8x1x28xf32> to vector<8x28xf32>
    %168 = tpu.concatenate %157, %159, %161, %163, %165, %167 in 1 : vector<8x28xf32>, vector<8x28xf32>, vector<8x28xf32>, vector<8x28xf32>, vector<8x28xf32>, vector<8x28xf32> -> vector<8x168xf32>
    %cst_131 = arith.constant dense<0.000000e+00> : vector<8x480xf32>
    %169 = tpu.matmul %168, %0, %cst_131 {dimension_numbers = #tpu.dot_dimension_numbers<[1], [0], [0], [1], [0, 0, 1, 1], [], []>} : vector<8x168xf32>, vector<168x480xf32>, vector<8x480xf32> -> vector<8x480xf32>
    %170 = vector.extract_strided_slice %169 {offsets = [0, 0], sizes = [8, 120], strides = [1, 1]} : vector<8x480xf32> to vector<8x120xf32>
    %171 = vector.extract_strided_slice %169 {offsets = [0, 120], sizes = [8, 120], strides = [1, 1]} : vector<8x480xf32> to vector<8x120xf32>
    %172 = arith.maximumf %170, %171 : vector<8x120xf32>
    %173 = vector.extract_strided_slice %169 {offsets = [0, 240], sizes = [8, 120], strides = [1, 1]} : vector<8x480xf32> to vector<8x120xf32>
    %174 = vector.extract_strided_slice %169 {offsets = [0, 360], sizes = [8, 120], strides = [1, 1]} : vector<8x480xf32> to vector<8x120xf32>
    %175 = arith.maximumf %173, %174 : vector<8x120xf32>
    %176 = arith.maximumf %172, %175 : vector<8x120xf32>
    %177 = vector.broadcast %1 : vector<1x120xf32> to vector<8x120xf32>
    %178 = arith.addf %176, %177 : vector<8x120xf32>
    %cst_132 = arith.constant 0.000000e+00 : f32
    %179 = vector.broadcast %cst_132 : f32 to vector<8x120xf32>
    %180 = arith.maximumf %178, %179 : vector<8x120xf32>
    %c0_133 = arith.constant 0 : index
    %c14_134 = arith.constant 14 : index
    %c0_135 = arith.constant 0 : index
    %181 = vector.load %arg1[%c0_133, %c14_134, %c0_135] : memref<8x28x28xf32, #tpu.memory_space<vmem>>, vector<8x1x28xf32>
    %182 = vector.shape_cast %181 : vector<8x1x28xf32> to vector<8x28xf32>
    %c0_136 = arith.constant 0 : index
    %c15_137 = arith.constant 15 : index
    %c0_138 = arith.constant 0 : index
    %183 = vector.load %arg1[%c0_136, %c15_137, %c0_138] : memref<8x28x28xf32, #tpu.memory_space<vmem>>, vector<8x1x28xf32>
    %184 = vector.shape_cast %183 : vector<8x1x28xf32> to vector<8x28xf32>
    %c0_139 = arith.constant 0 : index
    %c16_140 = arith.constant 16 : index
    %c0_141 = arith.constant 0 : index
    %185 = vector.load %arg1[%c0_139, %c16_140, %c0_141] : memref<8x28x28xf32, #tpu.memory_space<vmem>>, vector<8x1x28xf32>
    %186 = vector.shape_cast %185 : vector<8x1x28xf32> to vector<8x28xf32>
    %c0_142 = arith.constant 0 : index
    %c17_143 = arith.constant 17 : index
    %c0_144 = arith.constant 0 : index
    %187 = vector.load %arg1[%c0_142, %c17_143, %c0_144] : memref<8x28x28xf32, #tpu.memory_space<vmem>>, vector<8x1x28xf32>
    %188 = vector.shape_cast %187 : vector<8x1x28xf32> to vector<8x28xf32>
    %c0_145 = arith.constant 0 : index
    %c18 = arith.constant 18 : index
    %c0_146 = arith.constant 0 : index
    %189 = vector.load %arg1[%c0_145, %c18, %c0_146] : memref<8x28x28xf32, #tpu.memory_space<vmem>>, vector<8x1x28xf32>
    %190 = vector.shape_cast %189 : vector<8x1x28xf32> to vector<8x28xf32>
    %c0_147 = arith.constant 0 : index
    %c19 = arith.constant 19 : index
    %c0_148 = arith.constant 0 : index
    %191 = vector.load %arg1[%c0_147, %c19, %c0_148] : memref<8x28x28xf32, #tpu.memory_space<vmem>>, vector<8x1x28xf32>
    %192 = vector.shape_cast %191 : vector<8x1x28xf32> to vector<8x28xf32>
    %193 = tpu.concatenate %182, %184, %186, %188, %190, %192 in 1 : vector<8x28xf32>, vector<8x28xf32>, vector<8x28xf32>, vector<8x28xf32>, vector<8x28xf32>, vector<8x28xf32> -> vector<8x168xf32>
    %cst_149 = arith.constant dense<0.000000e+00> : vector<8x480xf32>
    %194 = tpu.matmul %193, %0, %cst_149 {dimension_numbers = #tpu.dot_dimension_numbers<[1], [0], [0], [1], [0, 0, 1, 1], [], []>} : vector<8x168xf32>, vector<168x480xf32>, vector<8x480xf32> -> vector<8x480xf32>
    %195 = vector.extract_strided_slice %194 {offsets = [0, 0], sizes = [8, 120], strides = [1, 1]} : vector<8x480xf32> to vector<8x120xf32>
    %196 = vector.extract_strided_slice %194 {offsets = [0, 120], sizes = [8, 120], strides = [1, 1]} : vector<8x480xf32> to vector<8x120xf32>
    %197 = arith.maximumf %195, %196 : vector<8x120xf32>
    %198 = vector.extract_strided_slice %194 {offsets = [0, 240], sizes = [8, 120], strides = [1, 1]} : vector<8x480xf32> to vector<8x120xf32>
    %199 = vector.extract_strided_slice %194 {offsets = [0, 360], sizes = [8, 120], strides = [1, 1]} : vector<8x480xf32> to vector<8x120xf32>
    %200 = arith.maximumf %198, %199 : vector<8x120xf32>
    %201 = arith.maximumf %197, %200 : vector<8x120xf32>
    %202 = vector.broadcast %1 : vector<1x120xf32> to vector<8x120xf32>
    %203 = arith.addf %201, %202 : vector<8x120xf32>
    %cst_150 = arith.constant 0.000000e+00 : f32
    %204 = vector.broadcast %cst_150 : f32 to vector<8x120xf32>
    %205 = arith.maximumf %203, %204 : vector<8x120xf32>
    %c0_151 = arith.constant 0 : index
    %c16_152 = arith.constant 16 : index
    %c0_153 = arith.constant 0 : index
    %206 = vector.load %arg1[%c0_151, %c16_152, %c0_153] : memref<8x28x28xf32, #tpu.memory_space<vmem>>, vector<8x1x28xf32>
    %207 = vector.shape_cast %206 : vector<8x1x28xf32> to vector<8x28xf32>
    %c0_154 = arith.constant 0 : index
    %c17_155 = arith.constant 17 : index
    %c0_156 = arith.constant 0 : index
    %208 = vector.load %arg1[%c0_154, %c17_155, %c0_156] : memref<8x28x28xf32, #tpu.memory_space<vmem>>, vector<8x1x28xf32>
    %209 = vector.shape_cast %208 : vector<8x1x28xf32> to vector<8x28xf32>
    %c0_157 = arith.constant 0 : index
    %c18_158 = arith.constant 18 : index
    %c0_159 = arith.constant 0 : index
    %210 = vector.load %arg1[%c0_157, %c18_158, %c0_159] : memref<8x28x28xf32, #tpu.memory_space<vmem>>, vector<8x1x28xf32>
    %211 = vector.shape_cast %210 : vector<8x1x28xf32> to vector<8x28xf32>
    %c0_160 = arith.constant 0 : index
    %c19_161 = arith.constant 19 : index
    %c0_162 = arith.constant 0 : index
    %212 = vector.load %arg1[%c0_160, %c19_161, %c0_162] : memref<8x28x28xf32, #tpu.memory_space<vmem>>, vector<8x1x28xf32>
    %213 = vector.shape_cast %212 : vector<8x1x28xf32> to vector<8x28xf32>
    %c0_163 = arith.constant 0 : index
    %c20 = arith.constant 20 : index
    %c0_164 = arith.constant 0 : index
    %214 = vector.load %arg1[%c0_163, %c20, %c0_164] : memref<8x28x28xf32, #tpu.memory_space<vmem>>, vector<8x1x28xf32>
    %215 = vector.shape_cast %214 : vector<8x1x28xf32> to vector<8x28xf32>
    %c0_165 = arith.constant 0 : index
    %c21 = arith.constant 21 : index
    %c0_166 = arith.constant 0 : index
    %216 = vector.load %arg1[%c0_165, %c21, %c0_166] : memref<8x28x28xf32, #tpu.memory_space<vmem>>, vector<8x1x28xf32>
    %217 = vector.shape_cast %216 : vector<8x1x28xf32> to vector<8x28xf32>
    %218 = tpu.concatenate %207, %209, %211, %213, %215, %217 in 1 : vector<8x28xf32>, vector<8x28xf32>, vector<8x28xf32>, vector<8x28xf32>, vector<8x28xf32>, vector<8x28xf32> -> vector<8x168xf32>
    %cst_167 = arith.constant dense<0.000000e+00> : vector<8x480xf32>
    %219 = tpu.matmul %218, %0, %cst_167 {dimension_numbers = #tpu.dot_dimension_numbers<[1], [0], [0], [1], [0, 0, 1, 1], [], []>} : vector<8x168xf32>, vector<168x480xf32>, vector<8x480xf32> -> vector<8x480xf32>
    %220 = vector.extract_strided_slice %219 {offsets = [0, 0], sizes = [8, 120], strides = [1, 1]} : vector<8x480xf32> to vector<8x120xf32>
    %221 = vector.extract_strided_slice %219 {offsets = [0, 120], sizes = [8, 120], strides = [1, 1]} : vector<8x480xf32> to vector<8x120xf32>
    %222 = arith.maximumf %220, %221 : vector<8x120xf32>
    %223 = vector.extract_strided_slice %219 {offsets = [0, 240], sizes = [8, 120], strides = [1, 1]} : vector<8x480xf32> to vector<8x120xf32>
    %224 = vector.extract_strided_slice %219 {offsets = [0, 360], sizes = [8, 120], strides = [1, 1]} : vector<8x480xf32> to vector<8x120xf32>
    %225 = arith.maximumf %223, %224 : vector<8x120xf32>
    %226 = arith.maximumf %222, %225 : vector<8x120xf32>
    %227 = vector.broadcast %1 : vector<1x120xf32> to vector<8x120xf32>
    %228 = arith.addf %226, %227 : vector<8x120xf32>
    %cst_168 = arith.constant 0.000000e+00 : f32
    %229 = vector.broadcast %cst_168 : f32 to vector<8x120xf32>
    %230 = arith.maximumf %228, %229 : vector<8x120xf32>
    %c0_169 = arith.constant 0 : index
    %c18_170 = arith.constant 18 : index
    %c0_171 = arith.constant 0 : index
    %231 = vector.load %arg1[%c0_169, %c18_170, %c0_171] : memref<8x28x28xf32, #tpu.memory_space<vmem>>, vector<8x1x28xf32>
    %232 = vector.shape_cast %231 : vector<8x1x28xf32> to vector<8x28xf32>
    %c0_172 = arith.constant 0 : index
    %c19_173 = arith.constant 19 : index
    %c0_174 = arith.constant 0 : index
    %233 = vector.load %arg1[%c0_172, %c19_173, %c0_174] : memref<8x28x28xf32, #tpu.memory_space<vmem>>, vector<8x1x28xf32>
    %234 = vector.shape_cast %233 : vector<8x1x28xf32> to vector<8x28xf32>
    %c0_175 = arith.constant 0 : index
    %c20_176 = arith.constant 20 : index
    %c0_177 = arith.constant 0 : index
    %235 = vector.load %arg1[%c0_175, %c20_176, %c0_177] : memref<8x28x28xf32, #tpu.memory_space<vmem>>, vector<8x1x28xf32>
    %236 = vector.shape_cast %235 : vector<8x1x28xf32> to vector<8x28xf32>
    %c0_178 = arith.constant 0 : index
    %c21_179 = arith.constant 21 : index
    %c0_180 = arith.constant 0 : index
    %237 = vector.load %arg1[%c0_178, %c21_179, %c0_180] : memref<8x28x28xf32, #tpu.memory_space<vmem>>, vector<8x1x28xf32>
    %238 = vector.shape_cast %237 : vector<8x1x28xf32> to vector<8x28xf32>
    %c0_181 = arith.constant 0 : index
    %c22 = arith.constant 22 : index
    %c0_182 = arith.constant 0 : index
    %239 = vector.load %arg1[%c0_181, %c22, %c0_182] : memref<8x28x28xf32, #tpu.memory_space<vmem>>, vector<8x1x28xf32>
    %240 = vector.shape_cast %239 : vector<8x1x28xf32> to vector<8x28xf32>
    %c0_183 = arith.constant 0 : index
    %c23 = arith.constant 23 : index
    %c0_184 = arith.constant 0 : index
    %241 = vector.load %arg1[%c0_183, %c23, %c0_184] : memref<8x28x28xf32, #tpu.memory_space<vmem>>, vector<8x1x28xf32>
    %242 = vector.shape_cast %241 : vector<8x1x28xf32> to vector<8x28xf32>
    %243 = tpu.concatenate %232, %234, %236, %238, %240, %242 in 1 : vector<8x28xf32>, vector<8x28xf32>, vector<8x28xf32>, vector<8x28xf32>, vector<8x28xf32>, vector<8x28xf32> -> vector<8x168xf32>
    %cst_185 = arith.constant dense<0.000000e+00> : vector<8x480xf32>
    %244 = tpu.matmul %243, %0, %cst_185 {dimension_numbers = #tpu.dot_dimension_numbers<[1], [0], [0], [1], [0, 0, 1, 1], [], []>} : vector<8x168xf32>, vector<168x480xf32>, vector<8x480xf32> -> vector<8x480xf32>
    %245 = vector.extract_strided_slice %244 {offsets = [0, 0], sizes = [8, 120], strides = [1, 1]} : vector<8x480xf32> to vector<8x120xf32>
    %246 = vector.extract_strided_slice %244 {offsets = [0, 120], sizes = [8, 120], strides = [1, 1]} : vector<8x480xf32> to vector<8x120xf32>
    %247 = arith.maximumf %245, %246 : vector<8x120xf32>
    %248 = vector.extract_strided_slice %244 {offsets = [0, 240], sizes = [8, 120], strides = [1, 1]} : vector<8x480xf32> to vector<8x120xf32>
    %249 = vector.extract_strided_slice %244 {offsets = [0, 360], sizes = [8, 120], strides = [1, 1]} : vector<8x480xf32> to vector<8x120xf32>
    %250 = arith.maximumf %248, %249 : vector<8x120xf32>
    %251 = arith.maximumf %247, %250 : vector<8x120xf32>
    %252 = vector.broadcast %1 : vector<1x120xf32> to vector<8x120xf32>
    %253 = arith.addf %251, %252 : vector<8x120xf32>
    %cst_186 = arith.constant 0.000000e+00 : f32
    %254 = vector.broadcast %cst_186 : f32 to vector<8x120xf32>
    %255 = arith.maximumf %253, %254 : vector<8x120xf32>
    %c0_187 = arith.constant 0 : index
    %c20_188 = arith.constant 20 : index
    %c0_189 = arith.constant 0 : index
    %256 = vector.load %arg1[%c0_187, %c20_188, %c0_189] : memref<8x28x28xf32, #tpu.memory_space<vmem>>, vector<8x1x28xf32>
    %257 = vector.shape_cast %256 : vector<8x1x28xf32> to vector<8x28xf32>
    %c0_190 = arith.constant 0 : index
    %c21_191 = arith.constant 21 : index
    %c0_192 = arith.constant 0 : index
    %258 = vector.load %arg1[%c0_190, %c21_191, %c0_192] : memref<8x28x28xf32, #tpu.memory_space<vmem>>, vector<8x1x28xf32>
    %259 = vector.shape_cast %258 : vector<8x1x28xf32> to vector<8x28xf32>
    %c0_193 = arith.constant 0 : index
    %c22_194 = arith.constant 22 : index
    %c0_195 = arith.constant 0 : index
    %260 = vector.load %arg1[%c0_193, %c22_194, %c0_195] : memref<8x28x28xf32, #tpu.memory_space<vmem>>, vector<8x1x28xf32>
    %261 = vector.shape_cast %260 : vector<8x1x28xf32> to vector<8x28xf32>
    %c0_196 = arith.constant 0 : index
    %c23_197 = arith.constant 23 : index
    %c0_198 = arith.constant 0 : index
    %262 = vector.load %arg1[%c0_196, %c23_197, %c0_198] : memref<8x28x28xf32, #tpu.memory_space<vmem>>, vector<8x1x28xf32>
    %263 = vector.shape_cast %262 : vector<8x1x28xf32> to vector<8x28xf32>
    %c0_199 = arith.constant 0 : index
    %c24 = arith.constant 24 : index
    %c0_200 = arith.constant 0 : index
    %264 = vector.load %arg1[%c0_199, %c24, %c0_200] : memref<8x28x28xf32, #tpu.memory_space<vmem>>, vector<8x1x28xf32>
    %265 = vector.shape_cast %264 : vector<8x1x28xf32> to vector<8x28xf32>
    %c0_201 = arith.constant 0 : index
    %c25 = arith.constant 25 : index
    %c0_202 = arith.constant 0 : index
    %266 = vector.load %arg1[%c0_201, %c25, %c0_202] : memref<8x28x28xf32, #tpu.memory_space<vmem>>, vector<8x1x28xf32>
    %267 = vector.shape_cast %266 : vector<8x1x28xf32> to vector<8x28xf32>
    %268 = tpu.concatenate %257, %259, %261, %263, %265, %267 in 1 : vector<8x28xf32>, vector<8x28xf32>, vector<8x28xf32>, vector<8x28xf32>, vector<8x28xf32>, vector<8x28xf32> -> vector<8x168xf32>
    %cst_203 = arith.constant dense<0.000000e+00> : vector<8x480xf32>
    %269 = tpu.matmul %268, %0, %cst_203 {dimension_numbers = #tpu.dot_dimension_numbers<[1], [0], [0], [1], [0, 0, 1, 1], [], []>} : vector<8x168xf32>, vector<168x480xf32>, vector<8x480xf32> -> vector<8x480xf32>
    %270 = vector.extract_strided_slice %269 {offsets = [0, 0], sizes = [8, 120], strides = [1, 1]} : vector<8x480xf32> to vector<8x120xf32>
    %271 = vector.extract_strided_slice %269 {offsets = [0, 120], sizes = [8, 120], strides = [1, 1]} : vector<8x480xf32> to vector<8x120xf32>
    %272 = arith.maximumf %270, %271 : vector<8x120xf32>
    %273 = vector.extract_strided_slice %269 {offsets = [0, 240], sizes = [8, 120], strides = [1, 1]} : vector<8x480xf32> to vector<8x120xf32>
    %274 = vector.extract_strided_slice %269 {offsets = [0, 360], sizes = [8, 120], strides = [1, 1]} : vector<8x480xf32> to vector<8x120xf32>
    %275 = arith.maximumf %273, %274 : vector<8x120xf32>
    %276 = arith.maximumf %272, %275 : vector<8x120xf32>
    %277 = vector.broadcast %1 : vector<1x120xf32> to vector<8x120xf32>
    %278 = arith.addf %276, %277 : vector<8x120xf32>
    %cst_204 = arith.constant 0.000000e+00 : f32
    %279 = vector.broadcast %cst_204 : f32 to vector<8x120xf32>
    %280 = arith.maximumf %278, %279 : vector<8x120xf32>
    %c0_205 = arith.constant 0 : index
    %c22_206 = arith.constant 22 : index
    %c0_207 = arith.constant 0 : index
    %281 = vector.load %arg1[%c0_205, %c22_206, %c0_207] : memref<8x28x28xf32, #tpu.memory_space<vmem>>, vector<8x1x28xf32>
    %282 = vector.shape_cast %281 : vector<8x1x28xf32> to vector<8x28xf32>
    %c0_208 = arith.constant 0 : index
    %c23_209 = arith.constant 23 : index
    %c0_210 = arith.constant 0 : index
    %283 = vector.load %arg1[%c0_208, %c23_209, %c0_210] : memref<8x28x28xf32, #tpu.memory_space<vmem>>, vector<8x1x28xf32>
    %284 = vector.shape_cast %283 : vector<8x1x28xf32> to vector<8x28xf32>
    %c0_211 = arith.constant 0 : index
    %c24_212 = arith.constant 24 : index
    %c0_213 = arith.constant 0 : index
    %285 = vector.load %arg1[%c0_211, %c24_212, %c0_213] : memref<8x28x28xf32, #tpu.memory_space<vmem>>, vector<8x1x28xf32>
    %286 = vector.shape_cast %285 : vector<8x1x28xf32> to vector<8x28xf32>
    %c0_214 = arith.constant 0 : index
    %c25_215 = arith.constant 25 : index
    %c0_216 = arith.constant 0 : index
    %287 = vector.load %arg1[%c0_214, %c25_215, %c0_216] : memref<8x28x28xf32, #tpu.memory_space<vmem>>, vector<8x1x28xf32>
    %288 = vector.shape_cast %287 : vector<8x1x28xf32> to vector<8x28xf32>
    %c0_217 = arith.constant 0 : index
    %c26 = arith.constant 26 : index
    %c0_218 = arith.constant 0 : index
    %289 = vector.load %arg1[%c0_217, %c26, %c0_218] : memref<8x28x28xf32, #tpu.memory_space<vmem>>, vector<8x1x28xf32>
    %290 = vector.shape_cast %289 : vector<8x1x28xf32> to vector<8x28xf32>
    %c0_219 = arith.constant 0 : index
    %c27 = arith.constant 27 : index
    %c0_220 = arith.constant 0 : index
    %291 = vector.load %arg1[%c0_219, %c27, %c0_220] : memref<8x28x28xf32, #tpu.memory_space<vmem>>, vector<8x1x28xf32>
    %292 = vector.shape_cast %291 : vector<8x1x28xf32> to vector<8x28xf32>
    %293 = tpu.concatenate %282, %284, %286, %288, %290, %292 in 1 : vector<8x28xf32>, vector<8x28xf32>, vector<8x28xf32>, vector<8x28xf32>, vector<8x28xf32>, vector<8x28xf32> -> vector<8x168xf32>
    %cst_221 = arith.constant dense<0.000000e+00> : vector<8x480xf32>
    %294 = tpu.matmul %293, %0, %cst_221 {dimension_numbers = #tpu.dot_dimension_numbers<[1], [0], [0], [1], [0, 0, 1, 1], [], []>} : vector<8x168xf32>, vector<168x480xf32>, vector<8x480xf32> -> vector<8x480xf32>
    %295 = vector.extract_strided_slice %294 {offsets = [0, 0], sizes = [8, 120], strides = [1, 1]} : vector<8x480xf32> to vector<8x120xf32>
    %296 = vector.extract_strided_slice %294 {offsets = [0, 120], sizes = [8, 120], strides = [1, 1]} : vector<8x480xf32> to vector<8x120xf32>
    %297 = arith.maximumf %295, %296 : vector<8x120xf32>
    %298 = vector.extract_strided_slice %294 {offsets = [0, 240], sizes = [8, 120], strides = [1, 1]} : vector<8x480xf32> to vector<8x120xf32>
    %299 = vector.extract_strided_slice %294 {offsets = [0, 360], sizes = [8, 120], strides = [1, 1]} : vector<8x480xf32> to vector<8x120xf32>
    %300 = arith.maximumf %298, %299 : vector<8x120xf32>
    %301 = arith.maximumf %297, %300 : vector<8x120xf32>
    %302 = vector.broadcast %1 : vector<1x120xf32> to vector<8x120xf32>
    %303 = arith.addf %301, %302 : vector<8x120xf32>
    %cst_222 = arith.constant 0.000000e+00 : f32
    %304 = vector.broadcast %cst_222 : f32 to vector<8x120xf32>
    %305 = arith.maximumf %303, %304 : vector<8x120xf32>
    %306 = tpu.concatenate %30, %55, %80, %105, %130, %155 in 1 : vector<8x120xf32>, vector<8x120xf32>, vector<8x120xf32>, vector<8x120xf32>, vector<8x120xf32>, vector<8x120xf32> -> vector<8x720xf32>
    %cst_223 = arith.constant dense<0.000000e+00> : vector<8x320xf32>
    %307 = tpu.matmul %306, %2, %cst_223 {dimension_numbers = #tpu.dot_dimension_numbers<[1], [0], [0], [1], [0, 0, 1, 1], [], []>} : vector<8x720xf32>, vector<720x320xf32>, vector<8x320xf32> -> vector<8x320xf32>
    %308 = vector.extract_strided_slice %307 {offsets = [0, 0], sizes = [8, 80], strides = [1, 1]} : vector<8x320xf32> to vector<8x80xf32>
    %309 = vector.extract_strided_slice %307 {offsets = [0, 80], sizes = [8, 80], strides = [1, 1]} : vector<8x320xf32> to vector<8x80xf32>
    %310 = arith.maximumf %308, %309 : vector<8x80xf32>
    %311 = vector.extract_strided_slice %307 {offsets = [0, 160], sizes = [8, 80], strides = [1, 1]} : vector<8x320xf32> to vector<8x80xf32>
    %312 = vector.extract_strided_slice %307 {offsets = [0, 240], sizes = [8, 80], strides = [1, 1]} : vector<8x320xf32> to vector<8x80xf32>
    %313 = arith.maximumf %311, %312 : vector<8x80xf32>
    %314 = arith.maximumf %310, %313 : vector<8x80xf32>
    %315 = vector.broadcast %3 : vector<1x80xf32> to vector<8x80xf32>
    %316 = arith.addf %314, %315 : vector<8x80xf32>
    %cst_224 = arith.constant 0.000000e+00 : f32
    %317 = vector.broadcast %cst_224 : f32 to vector<8x80xf32>
    %318 = arith.maximumf %316, %317 : vector<8x80xf32>
    %319 = tpu.concatenate %80, %105, %130, %155, %180, %205 in 1 : vector<8x120xf32>, vector<8x120xf32>, vector<8x120xf32>, vector<8x120xf32>, vector<8x120xf32>, vector<8x120xf32> -> vector<8x720xf32>
    %cst_225 = arith.constant dense<0.000000e+00> : vector<8x320xf32>
    %320 = tpu.matmul %319, %2, %cst_225 {dimension_numbers = #tpu.dot_dimension_numbers<[1], [0], [0], [1], [0, 0, 1, 1], [], []>} : vector<8x720xf32>, vector<720x320xf32>, vector<8x320xf32> -> vector<8x320xf32>
    %321 = vector.extract_strided_slice %320 {offsets = [0, 0], sizes = [8, 80], strides = [1, 1]} : vector<8x320xf32> to vector<8x80xf32>
    %322 = vector.extract_strided_slice %320 {offsets = [0, 80], sizes = [8, 80], strides = [1, 1]} : vector<8x320xf32> to vector<8x80xf32>
    %323 = arith.maximumf %321, %322 : vector<8x80xf32>
    %324 = vector.extract_strided_slice %320 {offsets = [0, 160], sizes = [8, 80], strides = [1, 1]} : vector<8x320xf32> to vector<8x80xf32>
    %325 = vector.extract_strided_slice %320 {offsets = [0, 240], sizes = [8, 80], strides = [1, 1]} : vector<8x320xf32> to vector<8x80xf32>
    %326 = arith.maximumf %324, %325 : vector<8x80xf32>
    %327 = arith.maximumf %323, %326 : vector<8x80xf32>
    %328 = vector.broadcast %3 : vector<1x80xf32> to vector<8x80xf32>
    %329 = arith.addf %327, %328 : vector<8x80xf32>
    %cst_226 = arith.constant 0.000000e+00 : f32
    %330 = vector.broadcast %cst_226 : f32 to vector<8x80xf32>
    %331 = arith.maximumf %329, %330 : vector<8x80xf32>
    %332 = tpu.concatenate %130, %155, %180, %205, %230, %255 in 1 : vector<8x120xf32>, vector<8x120xf32>, vector<8x120xf32>, vector<8x120xf32>, vector<8x120xf32>, vector<8x120xf32> -> vector<8x720xf32>
    %cst_227 = arith.constant dense<0.000000e+00> : vector<8x320xf32>
    %333 = tpu.matmul %332, %2, %cst_227 {dimension_numbers = #tpu.dot_dimension_numbers<[1], [0], [0], [1], [0, 0, 1, 1], [], []>} : vector<8x720xf32>, vector<720x320xf32>, vector<8x320xf32> -> vector<8x320xf32>
    %334 = vector.extract_strided_slice %333 {offsets = [0, 0], sizes = [8, 80], strides = [1, 1]} : vector<8x320xf32> to vector<8x80xf32>
    %335 = vector.extract_strided_slice %333 {offsets = [0, 80], sizes = [8, 80], strides = [1, 1]} : vector<8x320xf32> to vector<8x80xf32>
    %336 = arith.maximumf %334, %335 : vector<8x80xf32>
    %337 = vector.extract_strided_slice %333 {offsets = [0, 160], sizes = [8, 80], strides = [1, 1]} : vector<8x320xf32> to vector<8x80xf32>
    %338 = vector.extract_strided_slice %333 {offsets = [0, 240], sizes = [8, 80], strides = [1, 1]} : vector<8x320xf32> to vector<8x80xf32>
    %339 = arith.maximumf %337, %338 : vector<8x80xf32>
    %340 = arith.maximumf %336, %339 : vector<8x80xf32>
    %341 = vector.broadcast %3 : vector<1x80xf32> to vector<8x80xf32>
    %342 = arith.addf %340, %341 : vector<8x80xf32>
    %cst_228 = arith.constant 0.000000e+00 : f32
    %343 = vector.broadcast %cst_228 : f32 to vector<8x80xf32>
    %344 = arith.maximumf %342, %343 : vector<8x80xf32>
    %345 = tpu.concatenate %180, %205, %230, %255, %280, %305 in 1 : vector<8x120xf32>, vector<8x120xf32>, vector<8x120xf32>, vector<8x120xf32>, vector<8x120xf32>, vector<8x120xf32> -> vector<8x720xf32>
    %cst_229 = arith.constant dense<0.000000e+00> : vector<8x320xf32>
    %346 = tpu.matmul %345, %2, %cst_229 {dimension_numbers = #tpu.dot_dimension_numbers<[1], [0], [0], [1], [0, 0, 1, 1], [], []>} : vector<8x720xf32>, vector<720x320xf32>, vector<8x320xf32> -> vector<8x320xf32>
    %347 = vector.extract_strided_slice %346 {offsets = [0, 0], sizes = [8, 80], strides = [1, 1]} : vector<8x320xf32> to vector<8x80xf32>
    %348 = vector.extract_strided_slice %346 {offsets = [0, 80], sizes = [8, 80], strides = [1, 1]} : vector<8x320xf32> to vector<8x80xf32>
    %349 = arith.maximumf %347, %348 : vector<8x80xf32>
    %350 = vector.extract_strided_slice %346 {offsets = [0, 160], sizes = [8, 80], strides = [1, 1]} : vector<8x320xf32> to vector<8x80xf32>
    %351 = vector.extract_strided_slice %346 {offsets = [0, 240], sizes = [8, 80], strides = [1, 1]} : vector<8x320xf32> to vector<8x80xf32>
    %352 = arith.maximumf %350, %351 : vector<8x80xf32>
    %353 = arith.maximumf %349, %352 : vector<8x80xf32>
    %354 = vector.broadcast %3 : vector<1x80xf32> to vector<8x80xf32>
    %355 = arith.addf %353, %354 : vector<8x80xf32>
    %cst_230 = arith.constant 0.000000e+00 : f32
    %356 = vector.broadcast %cst_230 : f32 to vector<8x80xf32>
    %357 = arith.maximumf %355, %356 : vector<8x80xf32>
    %358 = tpu.concatenate %318, %331, %344, %357 in 1 : vector<8x80xf32>, vector<8x80xf32>, vector<8x80xf32>, vector<8x80xf32> -> vector<8x320xf32>
    %cst_231 = arith.constant dense<0.000000e+00> : vector<8x10xf32>
    %359 = tpu.matmul %358, %4, %cst_231 {dimension_numbers = #tpu.dot_dimension_numbers<[1], [0], [0], [1], [0, 0, 1, 1], [], []>} : vector<8x320xf32>, vector<320x10xf32>, vector<8x10xf32> -> vector<8x10xf32>
    %360 = vector.broadcast %5 : vector<1x10xf32> to vector<8x10xf32>
    %361 = arith.addf %359, %360 : vector<8x10xf32>
    %c0_232 = arith.constant 0 : index
    %c0_233 = arith.constant 0 : index
    %362 = vector.load %arg8[%c0_232, %c0_233] : memref<8x10xf32, #tpu.memory_space<vmem>>, vector<8x10xf32>
    tpu.vector_store %arg8[%c0_232, %c0_233], %361 {strides = array<i32>} : memref<8x10xf32, #tpu.memory_space<vmem>>, vector<8x10xf32>,
    return
  }
  func.func @transform_0(%arg0: i32) -> (i32, i32, i32) {
    %c0_i32 = arith.constant 0 : i32
    %c0_i32_0 = arith.constant 0 : i32
    %c0_i32_1 = arith.constant 0 : i32
    return %arg0, %c0_i32, %c0_i32_0 : i32, i32, i32
  }
  func.func @transform_1(%arg0: i32) -> (i32, i32) {
    %c0_i32 = arith.constant 0 : i32
    %c0_i32_0 = arith.constant 0 : i32
    %c0_i32_1 = arith.constant 0 : i32
    return %c0_i32, %c0_i32_0 : i32, i32
  }
  func.func @transform_2(%arg0: i32) -> (i32, i32) {
    %c0_i32 = arith.constant 0 : i32
    %c0_i32_0 = arith.constant 0 : i32
    %c0_i32_1 = arith.constant 0 : i32
    return %c0_i32, %c0_i32_0 : i32, i32
  }
  func.func @transform_3(%arg0: i32) -> (i32, i32) {
    %c0_i32 = arith.constant 0 : i32
    %c0_i32_0 = arith.constant 0 : i32
    %c0_i32_1 = arith.constant 0 : i32
    return %c0_i32, %c0_i32_0 : i32, i32
  }
  func.func @transform_4(%arg0: i32) -> (i32, i32) {
    %c0_i32 = arith.constant 0 : i32
    %c0_i32_0 = arith.constant 0 : i32
    %c0_i32_1 = arith.constant 0 : i32
    return %c0_i32, %c0_i32_0 : i32, i32
  }
  func.func @transform_5(%arg0: i32) -> (i32, i32) {
    %c0_i32 = arith.constant 0 : i32
    %c0_i32_0 = arith.constant 0 : i32
    %c0_i32_1 = arith.constant 0 : i32
    return %c0_i32, %c0_i32_0 : i32, i32
  }
  func.func @transform_6(%arg0: i32) -> (i32, i32) {
    %c0_i32 = arith.constant 0 : i32
    %c0_i32_0 = arith.constant 0 : i32
    %c0_i32_1 = arith.constant 0 : i32
    return %c0_i32, %c0_i32_0 : i32, i32
  }
  func.func @transform_7(%arg0: i32) -> (i32, i32) {
    %c0_i32 = arith.constant 0 : i32
    %c0_i32_0 = arith.constant 0 : i32
    return %arg0, %c0_i32 : i32, i32
  }
}

</mosaic_0001>

<llo_original>
// kernel: net_forward.1
$region0: #{net_forward.1}
  #allocation0 [shape = 'u32[]', space=smem, size = 0x4, offset = 0x4, fixed_abs, tag = 'smem constant byte address 0x4 - core index']
  #allocation1 [shape = 'u32[72,128]{1,0:T(1,128)}', space=vmem, size = 0x9000, scoped, tag = 'internal scratch']
  %s0 = inlined_call_operand.vmem [shape: f32[8,28,28], index: 0, kind: input, shape index: {}]
  %s1 = inlined_call_operand.vmem [shape: f32[168,480], index: 1, kind: input, shape index: {}]
  %s2 = inlined_call_operand.vmem [shape: f32[1,120], index: 2, kind: input, shape index: {}]
  %s3 = inlined_call_operand.vmem [shape: f32[720,320], index: 3, kind: input, shape index: {}]
  %s4 = inlined_call_operand.vmem [shape: f32[1,80], index: 4, kind: input, shape index: {}]
  %s5 = inlined_call_operand.vmem [shape: f32[320,10], index: 5, kind: input, shape index: {}]
  %s6 = inlined_call_operand.vmem [shape: f32[1,10], index: 6, kind: input, shape index: {}]
  %s7 = inlined_call_operand.vmem [shape: f32[8,10], index: 7, kind: output, shape index: {}]
  %s8 = sld [smem:[#allocation0]]
  $region38: #{net_forward.1} parent=0
    _
  %s10 = ssub.s32 1, %s8
  %s11 = scalar_select 0, %s10, %s8
  // Predicated region
  $region2: #{net_forward.1} parent=0 // pred_check
    _
  $region3: #{net_forward.1} parent=0 // pred_check_branch
    %13 = sbr.rel (0) target = $region5
  $region4: #{net_forward.1} parent=0 // pred_region
    _
  $region5: #{net_forward.1} parent=0 // pred_fallthru
    _
  // Predicated region
  $region6: #{net_forward.1} parent=0 // pred_check
    _
  $region7: #{net_forward.1} parent=0 // pred_check_branch
    %15 = sbr.rel (0) target = $region9
  $region8: #{net_forward.1} parent=0 // pred_region
    _
  $region9: #{net_forward.1} parent=0 // pred_fallthru
    _
  // Predicated region
  $region10: #{net_forward.1} parent=0 // pred_check
    _
  $region11: #{net_forward.1} parent=0 // pred_check_branch
    %17 = sbr.rel (0) target = $region13
  $region12: #{net_forward.1} parent=0 // pred_region
    _
  $region13: #{net_forward.1} parent=0 // pred_fallthru
    _
  // Predicated region
  $region14: #{net_forward.1} parent=0 // pred_check
    _
  $region15: #{net_forward.1} parent=0 // pred_check_branch
    %19 = sbr.rel (0) target = $region17
  $region16: #{net_forward.1} parent=0 // pred_region
    _
  $region17: #{net_forward.1} parent=0 // pred_fallthru
    _
  // Predicated region
  $region18: #{net_forward.1} parent=0 // pred_check
    _
  $region19: #{net_forward.1} parent=0 // pred_check_branch
    %21 = sbr.rel (0) target = $region21
  $region20: #{net_forward.1} parent=0 // pred_region
    _
  $region21: #{net_forward.1} parent=0 // pred_fallthru
    _
  // Predicated region
  $region22: #{net_forward.1} parent=0 // pred_check
    _
  $region23: #{net_forward.1} parent=0 // pred_check_branch
    %23 = sbr.rel (0) target = $region25
  $region24: #{net_forward.1} parent=0 // pred_region
    _
  $region25: #{net_forward.1} parent=0 // pred_fallthru
    _
  // Predicated region
  $region26: #{net_forward.1} parent=0 // pred_check
    _
  $region27: #{net_forward.1} parent=0 // pred_check_branch
    %25 = sbr.rel (0) target = $region29
  $region28: #{net_forward.1} parent=0 // pred_region
    _
  $region29: #{net_forward.1} parent=0 // pred_fallthru
    _
  %v26 = vld [vmem:[%s1] sm:$0xff]
  %v27 = vld [vmem:[%s1 + $0x8] sm:$0xff]
  %v28 = vld [vmem:[%s1 + $0x10] sm:$0xff]
  %v29 = vld [vmem:[%s1 + $0x18] sm:$0xff]
  %v30 = vld [vmem:[%s1 + $0x20] sm:$0xff]
  %v31 = vld [vmem:[%s1 + $0x28] sm:$0xff]
  %v32 = vld [vmem:[%s1 + $0x30] sm:$0xff]
  %v33 = vld [vmem:[%s1 + $0x38] sm:$0xff]
  %v34 = vld [vmem:[%s1 + $0x40] sm:$0xff]
  %v35 = vld [vmem:[%s1 + $0x48] sm:$0xff]
  %v36 = vld [vmem:[%s1 + $0x50] sm:$0xff]
  %v37 = vld [vmem:[%s1 + $0x58] sm:$0xff]
  %v38 = vld [vmem:[%s1 + $0x60] sm:$0xff]
  %v39 = vld [vmem:[%s1 + $0x68] sm:$0xff]
  %v40 = vld [vmem:[%s1 + $0x70] sm:$0xff]
  %v41 = vld [vmem:[%s1 + $0x78] sm:$0xff]
  %v42 = vld [vmem:[%s1 + $0x80] sm:$0xff]
  %v43 = vld [vmem:[%s1 + $0x88] sm:$0xff]
  %v44 = vld [vmem:[%s1 + $0x90] sm:$0xff]
  %v45 = vld [vmem:[%s1 + $0x98] sm:$0xff]
  %v46 = vld [vmem:[%s1 + $0xa0] sm:$0xff]
  %v47 = vld [vmem:[%s1 + $0xa8] sm:$0xff]
  %v48 = vld [vmem:[%s1 + $0xb0] sm:$0xff]
  %v49 = vld [vmem:[%s1 + $0xb8] sm:$0xff]
  %v50 = vld [vmem:[%s1 + $0xc0] sm:$0xff]
  %v51 = vld [vmem:[%s1 + $0xc8] sm:$0xff]
  %v52 = vld [vmem:[%s1 + $0xd0] sm:$0xff]
  %v53 = vld [vmem:[%s1 + $0xd8] sm:$0xff]
  %v54 = vld [vmem:[%s1 + $0xe0] sm:$0xff]
  %v55 = vld [vmem:[%s1 + $0xe8] sm:$0xff]
  %v56 = vld [vmem:[%s1 + $0xf0] sm:$0xff]
  %v57 = vld [vmem:[%s1 + $0xf8] sm:$0xff]
  %v58 = vld [vmem:[%s1 + $0x100] sm:$0xff]
  %v59 = vld [vmem:[%s1 + $0x108] sm:$0xff]
  %v60 = vld [vmem:[%s1 + $0x110] sm:$0xff]
  %v61 = vld [vmem:[%s1 + $0x118] sm:$0xff]
  %v62 = vld [vmem:[%s1 + $0x120] sm:$0xff]
  %v63 = vld [vmem:[%s1 + $0x128] sm:$0xff]
  %v64 = vld [vmem:[%s1 + $0x130] sm:$0xff]
  %v65 = vld [vmem:[%s1 + $0x138] sm:$0xff]
  %v66 = vld [vmem:[%s1 + $0x140] sm:$0xff]
  %v67 = vld [vmem:[%s1 + $0x148] sm:$0xff]
  %v68 = vld [vmem:[%s1 + $0x150] sm:$0xff]
  %v69 = vld [vmem:[%s1 + $0x158] sm:$0xff]
  %v70 = vld [vmem:[%s1 + $0x160] sm:$0xff]
  %v71 = vld [vmem:[%s1 + $0x168] sm:$0xff]
  %v72 = vld [vmem:[%s1 + $0x170] sm:$0xff]
  %v73 = vld [vmem:[%s1 + $0x178] sm:$0xff]
  %v74 = vld [vmem:[%s1 + $0x180] sm:$0xff]
  %v75 = vld [vmem:[%s1 + $0x188] sm:$0xff]
  %v76 = vld [vmem:[%s1 + $0x190] sm:$0xff]
  %v77 = vld [vmem:[%s1 + $0x198] sm:$0xff]
  %v78 = vld [vmem:[%s1 + $0x1a0] sm:$0xff]
  %v79 = vld [vmem:[%s1 + $0x1a8] sm:$0xff]
  %v80 = vld [vmem:[%s1 + $0x1b0] sm:$0xff]
  %v81 = vld [vmem:[%s1 + $0x1b8] sm:$0xff]
  %v82 = vld [vmem:[%s1 + $0x1c0] sm:$0xff]
  %v83 = vld [vmem:[%s1 + $0x1c8] sm:$0xff]
  %v84 = vld [vmem:[%s1 + $0x1d0] sm:$0xff]
  %v85 = vld [vmem:[%s1 + $0x1d8] sm:$0xff]
  %v86 = vld [vmem:[%s1 + $0x1e0] sm:$0xff]
  %v87 = vld [vmem:[%s1 + $0x1e8] sm:$0xff]
  %v88 = vld [vmem:[%s1 + $0x1f0] sm:$0xff]
  %v89 = vld [vmem:[%s1 + $0x1f8] sm:$0xff]
  %v90 = vld [vmem:[%s1 + $0x200] sm:$0xff]
  %v91 = vld [vmem:[%s1 + $0x208] sm:$0xff]
  %v92 = vld [vmem:[%s1 + $0x210] sm:$0xff]
  %v93 = vld [vmem:[%s1 + $0x218] sm:$0xff]
  %v94 = vld [vmem:[%s1 + $0x220] sm:$0xff]
  %v95 = vld [vmem:[%s1 + $0x228] sm:$0xff]
  %v96 = vld [vmem:[%s1 + $0x230] sm:$0xff]
  %v97 = vld [vmem:[%s1 + $0x238] sm:$0xff]
  %v98 = vld [vmem:[%s1 + $0x240] sm:$0xff]
  %v99 = vld [vmem:[%s1 + $0x248] sm:$0xff]
  %v100 = vld [vmem:[%s1 + $0x250] sm:$0xff]
  %v101 = vld [vmem:[%s1 + $0x258] sm:$0xff]
  %v102 = vld [vmem:[%s1 + $0x260] sm:$0xff]
  %v103 = vld [vmem:[%s1 + $0x268] sm:$0xff]
  %v104 = vld [vmem:[%s1 + $0x270] sm:$0xff]
  %v105 = vld [vmem:[%s1 + $0x278] sm:$0xff]
  %v106 = vld [vmem:[%s1 + $0x280] sm:$0xff]
  %v107 = vld [vmem:[%s1 + $0x288] sm:$0xff]
  %v108 = vld [vmem:[%s1 + $0x290] sm:$0xff]
  %v109 = vld [vmem:[%s1 + $0x298] sm:$0xff]
  %v110 = vld [vmem:[%s2] sm:$0x1]
  %v111 = vld [vmem:[%s3] sm:$0xff]
  %v112 = vld [vmem:[%s3 + $0x8] sm:$0xff]
  %v113 = vld [vmem:[%s3 + $0x10] sm:$0xff]
  %v114 = vld [vmem:[%s3 + $0x18] sm:$0xff]
  %v115 = vld [vmem:[%s3 + $0x20] sm:$0xff]
  %v116 = vld [vmem:[%s3 + $0x28] sm:$0xff]
  %v117 = vld [vmem:[%s3 + $0x30] sm:$0xff]
  %v118 = vld [vmem:[%s3 + $0x38] sm:$0xff]
  %v119 = vld [vmem:[%s3 + $0x40] sm:$0xff]
  %v120 = vld [vmem:[%s3 + $0x48] sm:$0xff]
  %v121 = vld [vmem:[%s3 + $0x50] sm:$0xff]
  %v122 = vld [vmem:[%s3 + $0x58] sm:$0xff]
  %v123 = vld [vmem:[%s3 + $0x60] sm:$0xff]
  %v124 = vld [vmem:[%s3 + $0x68] sm:$0xff]
  %v125 = vld [vmem:[%s3 + $0x70] sm:$0xff]
  %v126 = vld [vmem:[%s3 + $0x78] sm:$0xff]
  %v127 = vld [vmem:[%s3 + $0x80] sm:$0xff]
  %v128 = vld [vmem:[%s3 + $0x88] sm:$0xff]
  %v129 = vld [vmem:[%s3 + $0x90] sm:$0xff]
  %v130 = vld [vmem:[%s3 + $0x98] sm:$0xff]
  %v131 = vld [vmem:[%s3 + $0xa0] sm:$0xff]
  %v132 = vld [vmem:[%s3 + $0xa8] sm:$0xff]
  %v133 = vld [vmem:[%s3 + $0xb0] sm:$0xff]
  %v134 = vld [vmem:[%s3 + $0xb8] sm:$0xff]
  %v135 = vld [vmem:[%s3 + $0xc0] sm:$0xff]
  %v136 = vld [vmem:[%s3 + $0xc8] sm:$0xff]
  %v137 = vld [vmem:[%s3 + $0xd0] sm:$0xff]
  %v138 = vld [vmem:[%s3 + $0xd8] sm:$0xff]
  %v139 = vld [vmem:[%s3 + $0xe0] sm:$0xff]
  %v140 = vld [vmem:[%s3 + $0xe8] sm:$0xff]
  %v141 = vld [vmem:[%s3 + $0xf0] sm:$0xff]
  %v142 = vld [vmem:[%s3 + $0xf8] sm:$0xff]
  %v143 = vld [vmem:[%s3 + $0x100] sm:$0xff]
  %v144 = vld [vmem:[%s3 + $0x108] sm:$0xff]
  %v145 = vld [vmem:[%s3 + $0x110] sm:$0xff]
  %v146 = vld [vmem:[%s3 + $0x118] sm:$0xff]
  %v147 = vld [vmem:[%s3 + $0x120] sm:$0xff]
  %v148 = vld [vmem:[%s3 + $0x128] sm:$0xff]
  %v149 = vld [vmem:[%s3 + $0x130] sm:$0xff]
  %v150 = vld [vmem:[%s3 + $0x138] sm:$0xff]
  %v151 = vld [vmem:[%s3 + $0x140] sm:$0xff]
  %v152 = vld [vmem:[%s3 + $0x148] sm:$0xff]
  %v153 = vld [vmem:[%s3 + $0x150] sm:$0xff]
  %v154 = vld [vmem:[%s3 + $0x158] sm:$0xff]
  %v155 = vld [vmem:[%s3 + $0x160] sm:$0xff]
  %v156 = vld [vmem:[%s3 + $0x168] sm:$0xff]
  %v157 = vld [vmem:[%s3 + $0x170] sm:$0xff]
  %v158 = vld [vmem:[%s3 + $0x178] sm:$0xff]
  %v159 = vld [vmem:[%s3 + $0x180] sm:$0xff]
  %v160 = vld [vmem:[%s3 + $0x188] sm:$0xff]
  %v161 = vld [vmem:[%s3 + $0x190] sm:$0xff]
  %v162 = vld [vmem:[%s3 + $0x198] sm:$0xff]
  %v163 = vld [vmem:[%s3 + $0x1a0] sm:$0xff]
  %v164 = vld [vmem:[%s3 + $0x1a8] sm:$0xff]
  %v165 = vld [vmem:[%s3 + $0x1b0] sm:$0xff]
  %v166 = vld [vmem:[%s3 + $0x1b8] sm:$0xff]
  %v167 = vld [vmem:[%s3 + $0x1c0] sm:$0xff]
  %v168 = vld [vmem:[%s3 + $0x1c8] sm:$0xff]
  %v169 = vld [vmem:[%s3 + $0x1d0] sm:$0xff]
  %v170 = vld [vmem:[%s3 + $0x1d8] sm:$0xff]
  %v171 = vld [vmem:[%s3 + $0x1e0] sm:$0xff]
  %v172 = vld [vmem:[%s3 + $0x1e8] sm:$0xff]
  %v173 = vld [vmem:[%s3 + $0x1f0] sm:$0xff]
  %v174 = vld [vmem:[%s3 + $0x1f8] sm:$0xff]
  %v175 = vld [vmem:[%s3 + $0x200] sm:$0xff]
  %v176 = vld [vmem:[%s3 + $0x208] sm:$0xff]
  %v177 = vld [vmem:[%s3 + $0x210] sm:$0xff]
  %v178 = vld [vmem:[%s3 + $0x218] sm:$0xff]
  %v179 = vld [vmem:[%s3 + $0x220] sm:$0xff]
  %v180 = vld [vmem:[%s3 + $0x228] sm:$0xff]
  %v181 = vld [vmem:[%s3 + $0x230] sm:$0xff]
  %v182 = vld [vmem:[%s3 + $0x238] sm:$0xff]
  %v183 = vld [vmem:[%s3 + $0x240] sm:$0xff]
  %v184 = vld [vmem:[%s3 + $0x248] sm:$0xff]
  %v185 = vld [vmem:[%s3 + $0x250] sm:$0xff]
  %v186 = vld [vmem:[%s3 + $0x258] sm:$0xff]
  %v187 = vld [vmem:[%s3 + $0x260] sm:$0xff]
  %v188 = vld [vmem:[%s3 + $0x268] sm:$0xff]
  %v189 = vld [vmem:[%s3 + $0x270] sm:$0xff]
  %v190 = vld [vmem:[%s3 + $0x278] sm:$0xff]
  %v191 = vld [vmem:[%s3 + $0x280] sm:$0xff]
  %v192 = vld [vmem:[%s3 + $0x288] sm:$0xff]
  %v193 = vld [vmem:[%s3 + $0x290] sm:$0xff]
  %v194 = vld [vmem:[%s3 + $0x298] sm:$0xff]
  %v195 = vld [vmem:[%s3 + $0x2a0] sm:$0xff]
  %v196 = vld [vmem:[%s3 + $0x2a8] sm:$0xff]
  %v197 = vld [vmem:[%s3 + $0x2b0] sm:$0xff]
  %v198 = vld [vmem:[%s3 + $0x2b8] sm:$0xff]
  %v199 = vld [vmem:[%s3 + $0x2c0] sm:$0xff]
  %v200 = vld [vmem:[%s3 + $0x2c8] sm:$0xff]
  %v201 = vld [vmem:[%s3 + $0x2d0] sm:$0xff]
  %v202 = vld [vmem:[%s3 + $0x2d8] sm:$0xff]
  %v203 = vld [vmem:[%s3 + $0x2e0] sm:$0xff]
  %v204 = vld [vmem:[%s3 + $0x2e8] sm:$0xff]
  %v205 = vld [vmem:[%s3 + $0x2f0] sm:$0xff]
  %v206 = vld [vmem:[%s3 + $0x2f8] sm:$0xff]
  %v207 = vld [vmem:[%s3 + $0x300] sm:$0xff]
  %v208 = vld [vmem:[%s3 + $0x308] sm:$0xff]
  %v209 = vld [vmem:[%s3 + $0x310] sm:$0xff]
  %v210 = vld [vmem:[%s3 + $0x318] sm:$0xff]
  %v211 = vld [vmem:[%s3 + $0x320] sm:$0xff]
  %v212 = vld [vmem:[%s3 + $0x328] sm:$0xff]
  %v213 = vld [vmem:[%s3 + $0x330] sm:$0xff]
  %v214 = vld [vmem:[%s3 + $0x338] sm:$0xff]
  %v215 = vld [vmem:[%s3 + $0x340] sm:$0xff]
  %v216 = vld [vmem:[%s3 + $0x348] sm:$0xff]
  %v217 = vld [vmem:[%s3 + $0x350] sm:$0xff]
  %v218 = vld [vmem:[%s3 + $0x358] sm:$0xff]
  %v219 = vld [vmem:[%s3 + $0x360] sm:$0xff]
  %v220 = vld [vmem:[%s3 + $0x368] sm:$0xff]
  %v221 = vld [vmem:[%s3 + $0x370] sm:$0xff]
  %v222 = vld [vmem:[%s3 + $0x378] sm:$0xff]
  %v223 = vld [vmem:[%s3 + $0x380] sm:$0xff]
  %v224 = vld [vmem:[%s3 + $0x388] sm:$0xff]
  %v225 = vld [vmem:[%s3 + $0x390] sm:$0xff]
  %v226 = vld [vmem:[%s3 + $0x398] sm:$0xff]
  %v227 = vld [vmem:[%s3 + $0x3a0] sm:$0xff]
  %v228 = vld [vmem:[%s3 + $0x3a8] sm:$0xff]
  %v229 = vld [vmem:[%s3 + $0x3b0] sm:$0xff]
  %v230 = vld [vmem:[%s3 + $0x3b8] sm:$0xff]
  %v231 = vld [vmem:[%s3 + $0x3c0] sm:$0xff]
  %v232 = vld [vmem:[%s3 + $0x3c8] sm:$0xff]
  %v233 = vld [vmem:[%s3 + $0x3d0] sm:$0xff]
  %v234 = vld [vmem:[%s3 + $0x3d8] sm:$0xff]
  %v235 = vld [vmem:[%s3 + $0x3e0] sm:$0xff]
  %v236 = vld [vmem:[%s3 + $0x3e8] sm:$0xff]
  %v237 = vld [vmem:[%s3 + $0x3f0] sm:$0xff]
  %v238 = vld [vmem:[%s3 + $0x3f8] sm:$0xff]
  %v239 = vld [vmem:[%s3 + $0x400] sm:$0xff]
  %v240 = vld [vmem:[%s3 + $0x408] sm:$0xff]
  %v241 = vld [vmem:[%s3 + $0x410] sm:$0xff]
  %v242 = vld [vmem:[%s3 + $0x418] sm:$0xff]
  %v243 = vld [vmem:[%s3 + $0x420] sm:$0xff]
  %v244 = vld [vmem:[%s3 + $0x428] sm:$0xff]
  %v245 = vld [vmem:[%s3 + $0x430] sm:$0xff]
  %v246 = vld [vmem:[%s3 + $0x438] sm:$0xff]
  %v247 = vld [vmem:[%s3 + $0x440] sm:$0xff]
  %v248 = vld [vmem:[%s3 + $0x448] sm:$0xff]
  %v249 = vld [vmem:[%s3 + $0x450] sm:$0xff]
  %v250 = vld [vmem:[%s3 + $0x458] sm:$0xff]
  %v251 = vld [vmem:[%s3 + $0x460] sm:$0xff]
  %v252 = vld [vmem:[%s3 + $0x468] sm:$0xff]
  %v253 = vld [vmem:[%s3 + $0x470] sm:$0xff]
  %v254 = vld [vmem:[%s3 + $0x478] sm:$0xff]
  %v255 = vld [vmem:[%s3 + $0x480] sm:$0xff]
  %v256 = vld [vmem:[%s3 + $0x488] sm:$0xff]
  %v257 = vld [vmem:[%s3 + $0x490] sm:$0xff]
  %v258 = vld [vmem:[%s3 + $0x498] sm:$0xff]
  %v259 = vld [vmem:[%s3 + $0x4a0] sm:$0xff]
  %v260 = vld [vmem:[%s3 + $0x4a8] sm:$0xff]
  %v261 = vld [vmem:[%s3 + $0x4b0] sm:$0xff]
  %v262 = vld [vmem:[%s3 + $0x4b8] sm:$0xff]
  %v263 = vld [vmem:[%s3 + $0x4c0] sm:$0xff]
  %v264 = vld [vmem:[%s3 + $0x4c8] sm:$0xff]
  %v265 = vld [vmem:[%s3 + $0x4d0] sm:$0xff]
  %v266 = vld [vmem:[%s3 + $0x4d8] sm:$0xff]
  %v267 = vld [vmem:[%s3 + $0x4e0] sm:$0xff]
  %v268 = vld [vmem:[%s3 + $0x4e8] sm:$0xff]
  %v269 = vld [vmem:[%s3 + $0x4f0] sm:$0xff]
  %v270 = vld [vmem:[%s3 + $0x4f8] sm:$0xff]
  %v271 = vld [vmem:[%s3 + $0x500] sm:$0xff]
  %v272 = vld [vmem:[%s3 + $0x508] sm:$0xff]
  %v273 = vld [vmem:[%s3 + $0x510] sm:$0xff]
  %v274 = vld [vmem:[%s3 + $0x518] sm:$0xff]
  %v275 = vld [vmem:[%s3 + $0x520] sm:$0xff]
  %v276 = vld [vmem:[%s3 + $0x528] sm:$0xff]
  %v277 = vld [vmem:[%s3 + $0x530] sm:$0xff]
  %v278 = vld [vmem:[%s3 + $0x538] sm:$0xff]
  %v279 = vld [vmem:[%s3 + $0x540] sm:$0xff]
  %v280 = vld [vmem:[%s3 + $0x548] sm:$0xff]
  %v281 = vld [vmem:[%s3 + $0x550] sm:$0xff]
  %v282 = vld [vmem:[%s3 + $0x558] sm:$0xff]
  %v283 = vld [vmem:[%s3 + $0x560] sm:$0xff]
  %v284 = vld [vmem:[%s3 + $0x568] sm:$0xff]
  %v285 = vld [vmem:[%s3 + $0x570] sm:$0xff]
  %v286 = vld [vmem:[%s3 + $0x578] sm:$0xff]
  %v287 = vld [vmem:[%s3 + $0x580] sm:$0xff]
  %v288 = vld [vmem:[%s3 + $0x588] sm:$0xff]
  %v289 = vld [vmem:[%s3 + $0x590] sm:$0xff]
  %v290 = vld [vmem:[%s3 + $0x598] sm:$0xff]
  %v291 = vld [vmem:[%s3 + $0x5a0] sm:$0xff]
  %v292 = vld [vmem:[%s3 + $0x5a8] sm:$0xff]
  %v293 = vld [vmem:[%s3 + $0x5b0] sm:$0xff]
  %v294 = vld [vmem:[%s3 + $0x5b8] sm:$0xff]
  %v295 = vld [vmem:[%s3 + $0x5c0] sm:$0xff]
  %v296 = vld [vmem:[%s3 + $0x5c8] sm:$0xff]
  %v297 = vld [vmem:[%s3 + $0x5d0] sm:$0xff]
  %v298 = vld [vmem:[%s3 + $0x5d8] sm:$0xff]
  %v299 = vld [vmem:[%s3 + $0x5e0] sm:$0xff]
  %v300 = vld [vmem:[%s3 + $0x5e8] sm:$0xff]
  %v301 = vld [vmem:[%s3 + $0x5f0] sm:$0xff]
  %v302 = vld [vmem:[%s3 + $0x5f8] sm:$0xff]
  %v303 = vld [vmem:[%s3 + $0x600] sm:$0xff]
  %v304 = vld [vmem:[%s3 + $0x608] sm:$0xff]
  %v305 = vld [vmem:[%s3 + $0x610] sm:$0xff]
  %v306 = vld [vmem:[%s3 + $0x618] sm:$0xff]
  %v307 = vld [vmem:[%s3 + $0x620] sm:$0xff]
  %v308 = vld [vmem:[%s3 + $0x628] sm:$0xff]
  %v309 = vld [vmem:[%s3 + $0x630] sm:$0xff]
  %v310 = vld [vmem:[%s3 + $0x638] sm:$0xff]
  %v311 = vld [vmem:[%s3 + $0x640] sm:$0xff]
  %v312 = vld [vmem:[%s3 + $0x648] sm:$0xff]
  %v313 = vld [vmem:[%s3 + $0x650] sm:$0xff]
  %v314 = vld [vmem:[%s3 + $0x658] sm:$0xff]
  %v315 = vld [vmem:[%s3 + $0x660] sm:$0xff]
  %v316 = vld [vmem:[%s3 + $0x668] sm:$0xff]
  %v317 = vld [vmem:[%s3 + $0x670] sm:$0xff]
  %v318 = vld [vmem:[%s3 + $0x678] sm:$0xff]
  %v319 = vld [vmem:[%s3 + $0x680] sm:$0xff]
  %v320 = vld [vmem:[%s3 + $0x688] sm:$0xff]
  %v321 = vld [vmem:[%s3 + $0x690] sm:$0xff]
  %v322 = vld [vmem:[%s3 + $0x698] sm:$0xff]
  %v323 = vld [vmem:[%s3 + $0x6a0] sm:$0xff]
  %v324 = vld [vmem:[%s3 + $0x6a8] sm:$0xff]
  %v325 = vld [vmem:[%s3 + $0x6b0] sm:$0xff]
  %v326 = vld [vmem:[%s3 + $0x6b8] sm:$0xff]
  %v327 = vld [vmem:[%s3 + $0x6c0] sm:$0xff]
  %v328 = vld [vmem:[%s3 + $0x6c8] sm:$0xff]
  %v329 = vld [vmem:[%s3 + $0x6d0] sm:$0xff]
  %v330 = vld [vmem:[%s3 + $0x6d8] sm:$0xff]
  %v331 = vld [vmem:[%s3 + $0x6e0] sm:$0xff]
  %v332 = vld [vmem:[%s3 + $0x6e8] sm:$0xff]
  %v333 = vld [vmem:[%s3 + $0x6f0] sm:$0xff]
  %v334 = vld [vmem:[%s3 + $0x6f8] sm:$0xff]
  %v335 = vld [vmem:[%s3 + $0x700] sm:$0xff]
  %v336 = vld [vmem:[%s3 + $0x708] sm:$0xff]
  %v337 = vld [vmem:[%s3 + $0x710] sm:$0xff]
  %v338 = vld [vmem:[%s3 + $0x718] sm:$0xff]
  %v339 = vld [vmem:[%s3 + $0x720] sm:$0xff]
  %v340 = vld [vmem:[%s3 + $0x728] sm:$0xff]
  %v341 = vld [vmem:[%s3 + $0x730] sm:$0xff]
  %v342 = vld [vmem:[%s3 + $0x738] sm:$0xff]
  %v343 = vld [vmem:[%s3 + $0x740] sm:$0xff]
  %v344 = vld [vmem:[%s3 + $0x748] sm:$0xff]
  %v345 = vld [vmem:[%s3 + $0x750] sm:$0xff]
  %v346 = vld [vmem:[%s3 + $0x758] sm:$0xff]
  %v347 = vld [vmem:[%s3 + $0x760] sm:$0xff]
  %v348 = vld [vmem:[%s3 + $0x768] sm:$0xff]
  %v349 = vld [vmem:[%s3 + $0x770] sm:$0xff]
  %v350 = vld [vmem:[%s3 + $0x778] sm:$0xff]
  %v351 = vld [vmem:[%s3 + $0x780] sm:$0xff]
  %v352 = vld [vmem:[%s3 + $0x788] sm:$0xff]
  %v353 = vld [vmem:[%s3 + $0x790] sm:$0xff]
  %v354 = vld [vmem:[%s3 + $0x798] sm:$0xff]
  %v355 = vld [vmem:[%s3 + $0x7a0] sm:$0xff]
  %v356 = vld [vmem:[%s3 + $0x7a8] sm:$0xff]
  %v357 = vld [vmem:[%s3 + $0x7b0] sm:$0xff]
  %v358 = vld [vmem:[%s3 + $0x7b8] sm:$0xff]
  %v359 = vld [vmem:[%s3 + $0x7c0] sm:$0xff]
  %v360 = vld [vmem:[%s3 + $0x7c8] sm:$0xff]
  %v361 = vld [vmem:[%s3 + $0x7d0] sm:$0xff]
  %v362 = vld [vmem:[%s3 + $0x7d8] sm:$0xff]
  %v363 = vld [vmem:[%s3 + $0x7e0] sm:$0xff]
  %v364 = vld [vmem:[%s3 + $0x7e8] sm:$0xff]
  %v365 = vld [vmem:[%s3 + $0x7f0] sm:$0xff]
  %v366 = vld [vmem:[%s3 + $0x7f8] sm:$0xff]
  %v367 = vld [vmem:[%s3 + $0x800] sm:$0xff]
  %v368 = vld [vmem:[%s3 + $0x808] sm:$0xff]
  %v369 = vld [vmem:[%s3 + $0x810] sm:$0xff]
  %v370 = vld [vmem:[%s3 + $0x818] sm:$0xff]
  %v371 = vld [vmem:[%s3 + $0x820] sm:$0xff]
  %v372 = vld [vmem:[%s3 + $0x828] sm:$0xff]
  %v373 = vld [vmem:[%s3 + $0x830] sm:$0xff]
  %v374 = vld [vmem:[%s3 + $0x838] sm:$0xff]
  %v375 = vld [vmem:[%s3 + $0x840] sm:$0xff]
  %v376 = vld [vmem:[%s3 + $0x848] sm:$0xff]
  %v377 = vld [vmem:[%s3 + $0x850] sm:$0xff]
  %v378 = vld [vmem:[%s3 + $0x858] sm:$0xff]
  %v379 = vld [vmem:[%s3 + $0x860] sm:$0xff]
  %v380 = vld [vmem:[%s3 + $0x868] sm:$0xff]
  %v381 = vld [vmem:[%s4] sm:$0x1]
  %v382 = vld [vmem:[%s5] sm:$0xff]
  %v383 = vld [vmem:[%s5 + $0x8] sm:$0xff]
  %v384 = vld [vmem:[%s5 + $0x10] sm:$0xff]
  %v385 = vld [vmem:[%s5 + $0x18] sm:$0xff]
  %v386 = vld [vmem:[%s5 + $0x20] sm:$0xff]
  %v387 = vld [vmem:[%s5 + $0x28] sm:$0xff]
  %v388 = vld [vmem:[%s5 + $0x30] sm:$0xff]
  %v389 = vld [vmem:[%s5 + $0x38] sm:$0xff]
  %v390 = vld [vmem:[%s5 + $0x40] sm:$0xff]
  %v391 = vld [vmem:[%s5 + $0x48] sm:$0xff]
  %v392 = vld [vmem:[%s5 + $0x50] sm:$0xff]
  %v393 = vld [vmem:[%s5 + $0x58] sm:$0xff]
  %v394 = vld [vmem:[%s5 + $0x60] sm:$0xff]
  %v395 = vld [vmem:[%s5 + $0x68] sm:$0xff]
  %v396 = vld [vmem:[%s5 + $0x70] sm:$0xff]
  %v397 = vld [vmem:[%s5 + $0x78] sm:$0xff]
  %v398 = vld [vmem:[%s5 + $0x80] sm:$0xff]
  %v399 = vld [vmem:[%s5 + $0x88] sm:$0xff]
  %v400 = vld [vmem:[%s5 + $0x90] sm:$0xff]
  %v401 = vld [vmem:[%s5 + $0x98] sm:$0xff]
  %v402 = vld [vmem:[%s5 + $0xa0] sm:$0xff]
  %v403 = vld [vmem:[%s5 + $0xa8] sm:$0xff]
  %v404 = vld [vmem:[%s5 + $0xb0] sm:$0xff]
  %v405 = vld [vmem:[%s5 + $0xb8] sm:$0xff]
  %v406 = vld [vmem:[%s5 + $0xc0] sm:$0xff]
  %v407 = vld [vmem:[%s5 + $0xc8] sm:$0xff]
  %v408 = vld [vmem:[%s5 + $0xd0] sm:$0xff]
  %v409 = vld [vmem:[%s5 + $0xd8] sm:$0xff]
  %v410 = vld [vmem:[%s5 + $0xe0] sm:$0xff]
  %v411 = vld [vmem:[%s5 + $0xe8] sm:$0xff]
  %v412 = vld [vmem:[%s5 + $0xf0] sm:$0xff]
  %v413 = vld [vmem:[%s5 + $0xf8] sm:$0xff]
  %v414 = vld [vmem:[%s5 + $0x100] sm:$0xff]
  %v415 = vld [vmem:[%s5 + $0x108] sm:$0xff]
  %v416 = vld [vmem:[%s5 + $0x110] sm:$0xff]
  %v417 = vld [vmem:[%s5 + $0x118] sm:$0xff]
  %v418 = vld [vmem:[%s5 + $0x120] sm:$0xff]
  %v419 = vld [vmem:[%s5 + $0x128] sm:$0xff]
  %v420 = vld [vmem:[%s5 + $0x130] sm:$0xff]
  %v421 = vld [vmem:[%s5 + $0x138] sm:$0xff]
  %v422 = vld [vmem:[%s6] sm:$0x1]
  %v423 = vld [vmem:[%s0] sm:$0x1]
  %v424 = vld [vmem:[%s0 + $0x20] sm:$0x1]
  %v425 = vld [vmem:[%s0 + $0x40] sm:$0x1]
  %v426 = vld [vmem:[%s0 + $0x60] sm:$0x1]
  %v427 = vld [vmem:[%s0 + $0x80] sm:$0x1]
  %v428 = vld [vmem:[%s0 + $0xa0] sm:$0x1]
  %v429 = vld [vmem:[%s0 + $0xc0] sm:$0x1]
  %v430 = vld [vmem:[%s0 + $0xe0] sm:$0x1]
  %v431 = vld [vmem:[%s0 + $0x1] sm:$0x1]
  %v432 = vld [vmem:[%s0 + $0x21] sm:$0x1]
  %v433 = vld [vmem:[%s0 + $0x41] sm:$0x1]
  %v434 = vld [vmem:[%s0 + $0x61] sm:$0x1]
  %v435 = vld [vmem:[%s0 + $0x81] sm:$0x1]
  %v436 = vld [vmem:[%s0 + $0xa1] sm:$0x1]
  %v437 = vld [vmem:[%s0 + $0xc1] sm:$0x1]
  %v438 = vld [vmem:[%s0 + $0xe1] sm:$0x1]
  %v439 = vld [vmem:[%s0 + $0x2] sm:$0x1]
  %v440 = vld [vmem:[%s0 + $0x22] sm:$0x1]
  %v441 = vld [vmem:[%s0 + $0x42] sm:$0x1]
  %v442 = vld [vmem:[%s0 + $0x62] sm:$0x1]
  %v443 = vld [vmem:[%s0 + $0x82] sm:$0x1]
  %v444 = vld [vmem:[%s0 + $0xa2] sm:$0x1]
  %v445 = vld [vmem:[%s0 + $0xc2] sm:$0x1]
  %v446 = vld [vmem:[%s0 + $0xe2] sm:$0x1]
  %v447 = vld [vmem:[%s0 + $0x3] sm:$0x1]
  %v448 = vld [vmem:[%s0 + $0x23] sm:$0x1]
  %v449 = vld [vmem:[%s0 + $0x43] sm:$0x1]
  %v450 = vld [vmem:[%s0 + $0x63] sm:$0x1]
  %v451 = vld [vmem:[%s0 + $0x83] sm:$0x1]
  %v452 = vld [vmem:[%s0 + $0xa3] sm:$0x1]
  %v453 = vld [vmem:[%s0 + $0xc3] sm:$0x1]
  %v454 = vld [vmem:[%s0 + $0xe3] sm:$0x1]
  %v455 = vld [vmem:[%s0 + $0x4] sm:$0x1]
  %v456 = vld [vmem:[%s0 + $0x24] sm:$0x1]
  %v457 = vld [vmem:[%s0 + $0x44] sm:$0x1]
  %v458 = vld [vmem:[%s0 + $0x64] sm:$0x1]
  %v459 = vld [vmem:[%s0 + $0x84] sm:$0x1]
  %v460 = vld [vmem:[%s0 + $0xa4] sm:$0x1]
  %v461 = vld [vmem:[%s0 + $0xc4] sm:$0x1]
  %v462 = vld [vmem:[%s0 + $0xe4] sm:$0x1]
  %v463 = vld [vmem:[%s0 + $0x5] sm:$0x1]
  %v464 = vld [vmem:[%s0 + $0x25] sm:$0x1]
  %v465 = vld [vmem:[%s0 + $0x45] sm:$0x1]
  %v466 = vld [vmem:[%s0 + $0x65] sm:$0x1]
  %v467 = vld [vmem:[%s0 + $0x85] sm:$0x1]
  %v468 = vld [vmem:[%s0 + $0xa5] sm:$0x1]
  %v469 = vld [vmem:[%s0 + $0xc5] sm:$0x1]
  %v470 = vld [vmem:[%s0 + $0xe5] sm:$0x1]
  %v479 = vrot.slane %v424, 7
  %vm480 = vcmask 1041409
  %v481 = vsel %vm480, %v479, %v423
  %v482 = vrot.slane %v425, 6
  %vm483 = vcmask 1042434
  %v484 = vsel %vm483, %v482, %v481
  %v485 = vrot.slane %v426, 5
  %vm486 = vcmask 1043459
  %v487 = vsel %vm486, %v485, %v484
  %v488 = vrot.slane %v427, 4
  %vm489 = vcmask 1044484
  %v490 = vsel %vm489, %v488, %v487
  %v491 = vrot.slane %v428, 3
  %vm492 = vcmask 1045509
  %v493 = vsel %vm492, %v491, %v490
  %v494 = vrot.slane %v429, 2
  %vm495 = vcmask 1046534
  %v496 = vsel %vm495, %v494, %v493
  %v497 = vrot.slane %v430, 1
  %vm498 = vcmask 1047559
  %v499 = vsel %vm498, %v497, %v496
  %v509 = vrot.slane %v432, 7
  %v510 = vsel %vm480, %v509, %v431
  %v511 = vrot.slane %v433, 6
  %v512 = vsel %vm483, %v511, %v510
  %v513 = vrot.slane %v434, 5
  %v514 = vsel %vm486, %v513, %v512
  %v515 = vrot.slane %v435, 4
  %v516 = vsel %vm489, %v515, %v514
  %v517 = vrot.slane %v436, 3
  %v518 = vsel %vm492, %v517, %v516
  %v519 = vrot.slane %v437, 2
  %v520 = vsel %vm495, %v519, %v518
  %v521 = vrot.slane %v438, 1
  %v522 = vsel %vm498, %v521, %v520
  %523 = vrot.lane.b32.xlu0 %v522, 28
  %v524 = vpop.permute.xlu0 %523
  %v534 = vrot.slane %v440, 7
  %v535 = vsel %vm480, %v534, %v439
  %v536 = vrot.slane %v441, 6
  %v537 = vsel %vm483, %v536, %v535
  %v538 = vrot.slane %v442, 5
  %v539 = vsel %vm486, %v538, %v537
  %v540 = vrot.slane %v443, 4
  %v541 = vsel %vm489, %v540, %v539
  %v542 = vrot.slane %v444, 3
  %v543 = vsel %vm492, %v542, %v541
  %v544 = vrot.slane %v445, 2
  %v545 = vsel %vm495, %v544, %v543
  %v546 = vrot.slane %v446, 1
  %v547 = vsel %vm498, %v546, %v545
  %548 = vrot.lane.b32.xlu0 %v547, 56
  %v549 = vpop.permute.xlu0 %548
  %v559 = vrot.slane %v448, 7
  %v560 = vsel %vm480, %v559, %v447
  %v561 = vrot.slane %v449, 6
  %v562 = vsel %vm483, %v561, %v560
  %v563 = vrot.slane %v450, 5
  %v564 = vsel %vm486, %v563, %v562
  %v565 = vrot.slane %v451, 4
  %v566 = vsel %vm489, %v565, %v564
  %v567 = vrot.slane %v452, 3
  %v568 = vsel %vm492, %v567, %v566
  %v569 = vrot.slane %v453, 2
  %v570 = vsel %vm495, %v569, %v568
  %v571 = vrot.slane %v454, 1
  %v572 = vsel %vm498, %v571, %v570
  %573 = vrot.lane.b32.xlu0 %v572, 84
  %v574 = vpop.permute.xlu0 %573
  %v584 = vrot.slane %v456, 7
  %v585 = vsel %vm480, %v584, %v455
  %v586 = vrot.slane %v457, 6
  %v587 = vsel %vm483, %v586, %v585
  %v588 = vrot.slane %v458, 5
  %v589 = vsel %vm486, %v588, %v587
  %v590 = vrot.slane %v459, 4
  %v591 = vsel %vm489, %v590, %v589
  %v592 = vrot.slane %v460, 3
  %v593 = vsel %vm492, %v592, %v591
  %v594 = vrot.slane %v461, 2
  %v595 = vsel %vm495, %v594, %v593
  %v596 = vrot.slane %v462, 1
  %v597 = vsel %vm498, %v596, %v595
  %598 = vrot.lane.b32.xlu0 %v597, 112
  %v599 = vpop.permute.xlu0 %598
  %v609 = vrot.slane %v464, 7
  %v610 = vsel %vm480, %v609, %v463
  %v611 = vrot.slane %v465, 6
  %v612 = vsel %vm483, %v611, %v610
  %v613 = vrot.slane %v466, 5
  %v614 = vsel %vm486, %v613, %v612
  %v615 = vrot.slane %v467, 4
  %v616 = vsel %vm489, %v615, %v614
  %v617 = vrot.slane %v468, 3
  %v618 = vsel %vm492, %v617, %v616
  %v619 = vrot.slane %v469, 2
  %v620 = vsel %vm495, %v619, %v618
  %v621 = vrot.slane %v470, 1
  %v622 = vsel %vm498, %v621, %v620
  %623 = vrot.lane.b32.xlu0 %v622, 12
  %v624 = vpop.permute.xlu0 %623
  %vm626 = vcmask 228352
  %v627 = vsel %vm626, %v499, %v524
  %vm628 = vcmask 457728
  %v629 = vsel %vm628, %v627, %v549
  %vm630 = vcmask 687104
  %v631 = vsel %vm630, %v629, %v574
  %vm632 = vcmask 916480
  %v633 = vsel %vm632, %v631, %v599
  %vm634 = vcmask 97280
  %v635 = vsel %vm634, %v599, %v624
  %vm636 = vcmask 326656
  %v638 = vsel %vm636, %v635, 0
  %640 = vmatpush.msra.mxu0 %v86
  %641 = vmatpush.msra.mxu0 %v82
  %642 = vmatpush.msra.mxu0 %v78
  %643 = vmatpush.msra.mxu0 %v74
  %644 = vmatpush.msra.mxu0 %v70
  %645 = vmatpush.msra.mxu0 %v66
  %646 = vmatpush.msra.mxu0 %v62
  %647 = vmatpush.msra.mxu0 %v58
  %648 = vmatpush.msra.mxu0 %v54
  %649 = vmatpush.msra.mxu0 %v50
  %650 = vmatpush.msra.mxu0 %v46
  %651 = vmatpush.msra.mxu0 %v42
  %652 = vmatpush.msra.mxu0 %v38
  %653 = vmatpush.msra.mxu0 %v34
  %654 = vmatpush.msra.mxu0 %v30
  %655 = vmatpush.msra.mxu0 %v26
  %656 = vmatmul.f32.gmra.mxu0 %v633
  %v657 = vpop.f32.mrf.mxu0
  %v658 = vadd.f32 0.0, %v657
  %659 = vdwg.mxu0
  %660 = vmatpush.msra.mxu0 0.0
  %661 = vmatpush.msra.mxu0 0.0
  %662 = vmatpush.msra.mxu0 0.0
  %663 = vmatpush.msra.mxu0 0.0
  %664 = vmatpush.msra.mxu0 0.0
  %665 = vmatpush.msra.mxu0 0.0
  %666 = vmatpush.msra.mxu0 0.0
  %667 = vmatpush.msra.mxu0 0.0
  %668 = vmatpush.msra.mxu0 0.0
  %669 = vmatpush.msra.mxu0 0.0
  %670 = vmatpush.msra.mxu0 0.0
  %671 = vmatpush.msra.mxu0 %v106
  %672 = vmatpush.msra.mxu0 %v102
  %673 = vmatpush.msra.mxu0 %v98
  %674 = vmatpush.msra.mxu0 %v94
  %675 = vmatpush.msra.mxu0 %v90
  %676 = vmatmul.f32.gmra.mxu0 %v638
  %v677 = vpop.f32.mrf.mxu0
  %v678 = vadd.f32 %v658, %v677
  %679 = vdwg.mxu0
  %680 = vmatpush.msra.mxu0 %v87
  %681 = vmatpush.msra.mxu0 %v83
  %682 = vmatpush.msra.mxu0 %v79
  %683 = vmatpush.msra.mxu0 %v75
  %684 = vmatpush.msra.mxu0 %v71
  %685 = vmatpush.msra.mxu0 %v67
  %686 = vmatpush.msra.mxu0 %v63
  %687 = vmatpush.msra.mxu0 %v59
  %688 = vmatpush.msra.mxu0 %v55
  %689 = vmatpush.msra.mxu0 %v51
  %690 = vmatpush.msra.mxu0 %v47
  %691 = vmatpush.msra.mxu0 %v43
  %692 = vmatpush.msra.mxu0 %v39
  %693 = vmatpush.msra.mxu0 %v35
  %694 = vmatpush.msra.mxu0 %v31
  %695 = vmatpush.msra.mxu0 %v27
  %696 = vmatmul.f32.gmra.mxu0 %v633
  %v697 = vpop.f32.mrf.mxu0
  %v698 = vadd.f32 0.0, %v697
  %699 = vdwg.mxu0
  %700 = vmatpush.msra.mxu0 0.0
  %701 = vmatpush.msra.mxu0 0.0
  %702 = vmatpush.msra.mxu0 0.0
  %703 = vmatpush.msra.mxu0 0.0
  %704 = vmatpush.msra.mxu0 0.0
  %705 = vmatpush.msra.mxu0 0.0
  %706 = vmatpush.msra.mxu0 0.0
  %707 = vmatpush.msra.mxu0 0.0
  %708 = vmatpush.msra.mxu0 0.0
  %709 = vmatpush.msra.mxu0 0.0
  %710 = vmatpush.msra.mxu0 0.0
  %711 = vmatpush.msra.mxu0 %v107
  %712 = vmatpush.msra.mxu0 %v103
  %713 = vmatpush.msra.mxu0 %v99
  %714 = vmatpush.msra.mxu0 %v95
  %715 = vmatpush.msra.mxu0 %v91
  %716 = vmatmul.f32.gmra.mxu0 %v638
  %v717 = vpop.f32.mrf.mxu0
  %v718 = vadd.f32 %v698, %v717
  %719 = vdwg.mxu0
  %720 = vmatpush.msra.mxu0 %v88
  %721 = vmatpush.msra.mxu0 %v84
  %722 = vmatpush.msra.mxu0 %v80
  %723 = vmatpush.msra.mxu0 %v76
  %724 = vmatpush.msra.mxu0 %v72
  %725 = vmatpush.msra.mxu0 %v68
  %726 = vmatpush.msra.mxu0 %v64
  %727 = vmatpush.msra.mxu0 %v60
  %728 = vmatpush.msra.mxu0 %v56
  %729 = vmatpush.msra.mxu0 %v52
  %730 = vmatpush.msra.mxu0 %v48
  %731 = vmatpush.msra.mxu0 %v44
  %732 = vmatpush.msra.mxu0 %v40
  %733 = vmatpush.msra.mxu0 %v36
  %734 = vmatpush.msra.mxu0 %v32
  %735 = vmatpush.msra.mxu0 %v28
  %736 = vmatmul.f32.gmra.mxu0 %v633
  %v737 = vpop.f32.mrf.mxu0
  %v738 = vadd.f32 0.0, %v737
  %739 = vdwg.mxu0
  %740 = vmatpush.msra.mxu0 0.0
  %741 = vmatpush.msra.mxu0 0.0
  %742 = vmatpush.msra.mxu0 0.0
  %743 = vmatpush.msra.mxu0 0.0
  %744 = vmatpush.msra.mxu0 0.0
  %745 = vmatpush.msra.mxu0 0.0
  %746 = vmatpush.msra.mxu0 0.0
  %747 = vmatpush.msra.mxu0 0.0
  %748 = vmatpush.msra.mxu0 0.0
  %749 = vmatpush.msra.mxu0 0.0
  %750 = vmatpush.msra.mxu0 0.0
  %751 = vmatpush.msra.mxu0 %v108
  %752 = vmatpush.msra.mxu0 %v104
  %753 = vmatpush.msra.mxu0 %v100
  %754 = vmatpush.msra.mxu0 %v96
  %755 = vmatpush.msra.mxu0 %v92
  %756 = vmatmul.f32.gmra.mxu0 %v638
  %v757 = vpop.f32.mrf.mxu0
  %v758 = vadd.f32 %v738, %v757
  %759 = vdwg.mxu0
  %760 = vmatpush.msra.mxu0 %v89
  %761 = vmatpush.msra.mxu0 %v85
  %762 = vmatpush.msra.mxu0 %v81
  %763 = vmatpush.msra.mxu0 %v77
  %764 = vmatpush.msra.mxu0 %v73
  %765 = vmatpush.msra.mxu0 %v69
  %766 = vmatpush.msra.mxu0 %v65
  %767 = vmatpush.msra.mxu0 %v61
  %768 = vmatpush.msra.mxu0 %v57
  %769 = vmatpush.msra.mxu0 %v53
  %770 = vmatpush.msra.mxu0 %v49
  %771 = vmatpush.msra.mxu0 %v45
  %772 = vmatpush.msra.mxu0 %v41
  %773 = vmatpush.msra.mxu0 %v37
  %774 = vmatpush.msra.mxu0 %v33
  %775 = vmatpush.msra.mxu0 %v29
  %776 = vmatmul.f32.gmra.mxu0 %v633
  %v777 = vpop.f32.mrf.mxu0
  %v778 = vadd.f32 0.0, %v777
  %779 = vdwg.mxu0
  %780 = vmatpush.msra.mxu0 0.0
  %781 = vmatpush.msra.mxu0 0.0
  %782 = vmatpush.msra.mxu0 0.0
  %783 = vmatpush.msra.mxu0 0.0
  %784 = vmatpush.msra.mxu0 0.0
  %785 = vmatpush.msra.mxu0 0.0
  %786 = vmatpush.msra.mxu0 0.0
  %787 = vmatpush.msra.mxu0 0.0
  %788 = vmatpush.msra.mxu0 0.0
  %789 = vmatpush.msra.mxu0 0.0
  %790 = vmatpush.msra.mxu0 0.0
  %791 = vmatpush.msra.mxu0 %v109
  %792 = vmatpush.msra.mxu0 %v105
  %793 = vmatpush.msra.mxu0 %v101
  %794 = vmatpush.msra.mxu0 %v97
  %795 = vmatpush.msra.mxu0 %v93
  %796 = vmatmul.f32.gmra.mxu0 %v638
  %v797 = vpop.f32.mrf.mxu0
  %v798 = vadd.f32 %v778, %v797
  %799 = vdwg.mxu0
  %802 = vrot.lane.b32.xlu0 %v678, 8
  %v803 = vpop.permute.xlu0 %802
  %804 = vrot.lane.b32.xlu0 %v718, 8
  %v805 = vpop.permute.xlu0 %804
  %vm806 = vcmask 64512
  %v807 = vsel %vm806, %v803, %v805
  %v809 = vmax.f32 %v678, %v807
  %812 = vrot.lane.b32.xlu0 %v758, 8
  %v813 = vpop.permute.xlu0 %812
  %814 = vrot.lane.b32.xlu0 %v798, 8
  %v815 = vpop.permute.xlu0 %814
  %v816 = vsel %vm806, %v813, %v815
  %v819 = vmax.f32 %v718, %v813
  %v820 = vmax.f32 %v758, %v816
  %823 = vrot.lane.b32.xlu0 %v819, 16
  %v824 = vpop.permute.xlu0 %823
  %825 = vrot.lane.b32.xlu0 %v820, 16
  %v826 = vpop.permute.xlu0 %825
  %vm827 = vcmask 130048
  %v828 = vsel %vm827, %v824, %v826
  %v830 = vmax.f32 %v809, %v828
  %v832 = vperm.slane %v110, 0
  %v834 = vadd.f32 %v830, %v832
  %v835 = vmax.f32 %v834, 0.0
  %v836 = vld [vmem:[%s0 + $0x6] sm:$0x1]
  %v837 = vld [vmem:[%s0 + $0x26] sm:$0x1]
  %v838 = vld [vmem:[%s0 + $0x46] sm:$0x1]
  %v839 = vld [vmem:[%s0 + $0x66] sm:$0x1]
  %v840 = vld [vmem:[%s0 + $0x86] sm:$0x1]
  %v841 = vld [vmem:[%s0 + $0xa6] sm:$0x1]
  %v842 = vld [vmem:[%s0 + $0xc6] sm:$0x1]
  %v843 = vld [vmem:[%s0 + $0xe6] sm:$0x1]
  %v844 = vld [vmem:[%s0 + $0x7] sm:$0x1]
  %v845 = vld [vmem:[%s0 + $0x27] sm:$0x1]
  %v846 = vld [vmem:[%s0 + $0x47] sm:$0x1]
  %v847 = vld [vmem:[%s0 + $0x67] sm:$0x1]
  %v848 = vld [vmem:[%s0 + $0x87] sm:$0x1]
  %v849 = vld [vmem:[%s0 + $0xa7] sm:$0x1]
  %v850 = vld [vmem:[%s0 + $0xc7] sm:$0x1]
  %v851 = vld [vmem:[%s0 + $0xe7] sm:$0x1]
  %853 = vrot.lane.b32.xlu0 %v572, 28
  %v854 = vpop.permute.xlu0 %853
  %856 = vrot.lane.b32.xlu0 %v597, 56
  %v857 = vpop.permute.xlu0 %856
  %859 = vrot.lane.b32.xlu0 %v622, 84
  %v860 = vpop.permute.xlu0 %859
  %v870 = vrot.slane %v837, 7
  %v871 = vsel %vm480, %v870, %v836
  %v872 = vrot.slane %v838, 6
  %v873 = vsel %vm483, %v872, %v871
  %v874 = vrot.slane %v839, 5
  %v875 = vsel %vm486, %v874, %v873
  %v876 = vrot.slane %v840, 4
  %v877 = vsel %vm489, %v876, %v875
  %v878 = vrot.slane %v841, 3
  %v879 = vsel %vm492, %v878, %v877
  %v880 = vrot.slane %v842, 2
  %v881 = vsel %vm495, %v880, %v879
  %v882 = vrot.slane %v843, 1
  %v883 = vsel %vm498, %v882, %v881
  %884 = vrot.lane.b32.xlu0 %v883, 112
  %v885 = vpop.permute.xlu0 %884
  %v895 = vrot.slane %v845, 7
  %v896 = vsel %vm480, %v895, %v844
  %v897 = vrot.slane %v846, 6
  %v898 = vsel %vm483, %v897, %v896
  %v899 = vrot.slane %v847, 5
  %v900 = vsel %vm486, %v899, %v898
  %v901 = vrot.slane %v848, 4
  %v902 = vsel %vm489, %v901, %v900
  %v903 = vrot.slane %v849, 3
  %v904 = vsel %vm492, %v903, %v902
  %v905 = vrot.slane %v850, 2
  %v906 = vsel %vm495, %v905, %v904
  %v907 = vrot.slane %v851, 1
  %v908 = vsel %vm498, %v907, %v906
  %909 = vrot.lane.b32.xlu0 %v908, 12
  %v910 = vpop.permute.xlu0 %909
  %v912 = vsel %vm626, %v547, %v854
  %v913 = vsel %vm628, %v912, %v857
  %v914 = vsel %vm630, %v913, %v860
  %v915 = vsel %vm632, %v914, %v885
  %v916 = vsel %vm634, %v885, %v910
  %v918 = vsel %vm636, %v916, 0
  %920 = vmatpush.msra.mxu0 %v86
  %921 = vmatpush.msra.mxu0 %v82
  %922 = vmatpush.msra.mxu0 %v78
  %923 = vmatpush.msra.mxu0 %v74
  %924 = vmatpush.msra.mxu0 %v70
  %925 = vmatpush.msra.mxu0 %v66
  %926 = vmatpush.msra.mxu0 %v62
  %927 = vmatpush.msra.mxu0 %v58
  %928 = vmatpush.msra.mxu0 %v54
  %929 = vmatpush.msra.mxu0 %v50
  %930 = vmatpush.msra.mxu0 %v46
  %931 = vmatpush.msra.mxu0 %v42
  %932 = vmatpush.msra.mxu0 %v38
  %933 = vmatpush.msra.mxu0 %v34
  %934 = vmatpush.msra.mxu0 %v30
  %935 = vmatpush.msra.mxu0 %v26
  %936 = vmatmul.f32.gmra.mxu0 %v915
  %v937 = vpop.f32.mrf.mxu0
  %v938 = vadd.f32 0.0, %v937
  %939 = vdwg.mxu0
  %940 = vmatpush.msra.mxu0 0.0
  %941 = vmatpush.msra.mxu0 0.0
  %942 = vmatpush.msra.mxu0 0.0
  %943 = vmatpush.msra.mxu0 0.0
  %944 = vmatpush.msra.mxu0 0.0
  %945 = vmatpush.msra.mxu0 0.0
  %946 = vmatpush.msra.mxu0 0.0
  %947 = vmatpush.msra.mxu0 0.0
  %948 = vmatpush.msra.mxu0 0.0
  %949 = vmatpush.msra.mxu0 0.0
  %950 = vmatpush.msra.mxu0 0.0
  %951 = vmatpush.msra.mxu0 %v106
  %952 = vmatpush.msra.mxu0 %v102
  %953 = vmatpush.msra.mxu0 %v98
  %954 = vmatpush.msra.mxu0 %v94
  %955 = vmatpush.msra.mxu0 %v90
  %956 = vmatmul.f32.gmra.mxu0 %v918
  %v957 = vpop.f32.mrf.mxu0
  %v958 = vadd.f32 %v938, %v957
  %959 = vdwg.mxu0
  %960 = vmatpush.msra.mxu0 %v87
  %961 = vmatpush.msra.mxu0 %v83
  %962 = vmatpush.msra.mxu0 %v79
  %963 = vmatpush.msra.mxu0 %v75
  %964 = vmatpush.msra.mxu0 %v71
  %965 = vmatpush.msra.mxu0 %v67
  %966 = vmatpush.msra.mxu0 %v63
  %967 = vmatpush.msra.mxu0 %v59
  %968 = vmatpush.msra.mxu0 %v55
  %969 = vmatpush.msra.mxu0 %v51
  %970 = vmatpush.msra.mxu0 %v47
  %971 = vmatpush.msra.mxu0 %v43
  %972 = vmatpush.msra.mxu0 %v39
  %973 = vmatpush.msra.mxu0 %v35
  %974 = vmatpush.msra.mxu0 %v31
  %975 = vmatpush.msra.mxu0 %v27
  %976 = vmatmul.f32.gmra.mxu0 %v915
  %v977 = vpop.f32.mrf.mxu0
  %v978 = vadd.f32 0.0, %v977
  %979 = vdwg.mxu0
  %980 = vmatpush.msra.mxu0 0.0
  %981 = vmatpush.msra.mxu0 0.0
  %982 = vmatpush.msra.mxu0 0.0
  %983 = vmatpush.msra.mxu0 0.0
  %984 = vmatpush.msra.mxu0 0.0
  %985 = vmatpush.msra.mxu0 0.0
  %986 = vmatpush.msra.mxu0 0.0
  %987 = vmatpush.msra.mxu0 0.0
  %988 = vmatpush.msra.mxu0 0.0
  %989 = vmatpush.msra.mxu0 0.0
  %990 = vmatpush.msra.mxu0 0.0
  %991 = vmatpush.msra.mxu0 %v107
  %992 = vmatpush.msra.mxu0 %v103
  %993 = vmatpush.msra.mxu0 %v99
  %994 = vmatpush.msra.mxu0 %v95
  %995 = vmatpush.msra.mxu0 %v91
  %996 = vmatmul.f32.gmra.mxu0 %v918
  %v997 = vpop.f32.mrf.mxu0
  %v998 = vadd.f32 %v978, %v997
  %999 = vdwg.mxu0
  %1000 = vmatpush.msra.mxu0 %v88
  %1001 = vmatpush.msra.mxu0 %v84
  %1002 = vmatpush.msra.mxu0 %v80
  %1003 = vmatpush.msra.mxu0 %v76
  %1004 = vmatpush.msra.mxu0 %v72
  %1005 = vmatpush.msra.mxu0 %v68
  %1006 = vmatpush.msra.mxu0 %v64
  %1007 = vmatpush.msra.mxu0 %v60
  %1008 = vmatpush.msra.mxu0 %v56
  %1009 = vmatpush.msra.mxu0 %v52
  %1010 = vmatpush.msra.mxu0 %v48
  %1011 = vmatpush.msra.mxu0 %v44
  %1012 = vmatpush.msra.mxu0 %v40
  %1013 = vmatpush.msra.mxu0 %v36
  %1014 = vmatpush.msra.mxu0 %v32
  %1015 = vmatpush.msra.mxu0 %v28
  %1016 = vmatmul.f32.gmra.mxu0 %v915
  %v1017 = vpop.f32.mrf.mxu0
  %v1018 = vadd.f32 0.0, %v1017
  %1019 = vdwg.mxu0
  %1020 = vmatpush.msra.mxu0 0.0
  %1021 = vmatpush.msra.mxu0 0.0
  %1022 = vmatpush.msra.mxu0 0.0
  %1023 = vmatpush.msra.mxu0 0.0
  %1024 = vmatpush.msra.mxu0 0.0
  %1025 = vmatpush.msra.mxu0 0.0
  %1026 = vmatpush.msra.mxu0 0.0
  %1027 = vmatpush.msra.mxu0 0.0
  %1028 = vmatpush.msra.mxu0 0.0
  %1029 = vmatpush.msra.mxu0 0.0
  %1030 = vmatpush.msra.mxu0 0.0
  %1031 = vmatpush.msra.mxu0 %v108
  %1032 = vmatpush.msra.mxu0 %v104
  %1033 = vmatpush.msra.mxu0 %v100
  %1034 = vmatpush.msra.mxu0 %v96
  %1035 = vmatpush.msra.mxu0 %v92
  %1036 = vmatmul.f32.gmra.mxu0 %v918
  %v1037 = vpop.f32.mrf.mxu0
  %v1038 = vadd.f32 %v1018, %v1037
  %1039 = vdwg.mxu0
  %1040 = vmatpush.msra.mxu0 %v89
  %1041 = vmatpush.msra.mxu0 %v85
  %1042 = vmatpush.msra.mxu0 %v81
  %1043 = vmatpush.msra.mxu0 %v77
  %1044 = vmatpush.msra.mxu0 %v73
  %1045 = vmatpush.msra.mxu0 %v69
  %1046 = vmatpush.msra.mxu0 %v65
  %1047 = vmatpush.msra.mxu0 %v61
  %1048 = vmatpush.msra.mxu0 %v57
  %1049 = vmatpush.msra.mxu0 %v53
  %1050 = vmatpush.msra.mxu0 %v49
  %1051 = vmatpush.msra.mxu0 %v45
  %1052 = vmatpush.msra.mxu0 %v41
  %1053 = vmatpush.msra.mxu0 %v37
  %1054 = vmatpush.msra.mxu0 %v33
  %1055 = vmatpush.msra.mxu0 %v29
  %1056 = vmatmul.f32.gmra.mxu0 %v915
  %v1057 = vpop.f32.mrf.mxu0
  %v1058 = vadd.f32 0.0, %v1057
  %1059 = vdwg.mxu0
  %1060 = vmatpush.msra.mxu0 0.0
  %1061 = vmatpush.msra.mxu0 0.0
  %1062 = vmatpush.msra.mxu0 0.0
  %1063 = vmatpush.msra.mxu0 0.0
  %1064 = vmatpush.msra.mxu0 0.0
  %1065 = vmatpush.msra.mxu0 0.0
  %1066 = vmatpush.msra.mxu0 0.0
  %1067 = vmatpush.msra.mxu0 0.0
  %1068 = vmatpush.msra.mxu0 0.0
  %1069 = vmatpush.msra.mxu0 0.0
  %1070 = vmatpush.msra.mxu0 0.0
  %1071 = vmatpush.msra.mxu0 %v109
  %1072 = vmatpush.msra.mxu0 %v105
  %1073 = vmatpush.msra.mxu0 %v101
  %1074 = vmatpush.msra.mxu0 %v97
  %1075 = vmatpush.msra.mxu0 %v93
  %1076 = vmatmul.f32.gmra.mxu0 %v918
  %v1077 = vpop.f32.mrf.mxu0
  %v1078 = vadd.f32 %v1058, %v1077
  %1079 = vdwg.mxu0
  %1082 = vrot.lane.b32.xlu0 %v958, 8
  %v1083 = vpop.permute.xlu0 %1082
  %1084 = vrot.lane.b32.xlu0 %v998, 8
  %v1085 = vpop.permute.xlu0 %1084
  %v1086 = vsel %vm806, %v1083, %v1085
  %v1088 = vmax.f32 %v958, %v1086
  %1091 = vrot.lane.b32.xlu0 %v1038, 8
  %v1092 = vpop.permute.xlu0 %1091
  %1093 = vrot.lane.b32.xlu0 %v1078, 8
  %v1094 = vpop.permute.xlu0 %1093
  %v1095 = vsel %vm806, %v1092, %v1094
  %v1098 = vmax.f32 %v998, %v1092
  %v1099 = vmax.f32 %v1038, %v1095
  %1102 = vrot.lane.b32.xlu0 %v1098, 16
  %v1103 = vpop.permute.xlu0 %1102
  %1104 = vrot.lane.b32.xlu0 %v1099, 16
  %v1105 = vpop.permute.xlu0 %1104
  %v1106 = vsel %vm827, %v1103, %v1105
  %v1108 = vmax.f32 %v1088, %v1106
  %v1109 = vadd.f32 %v1108, %v832
  %v1110 = vmax.f32 %v1109, 0.0
  %v1111 = vld [vmem:[%s0 + $0x8] sm:$0x1]
  %v1112 = vld [vmem:[%s0 + $0x28] sm:$0x1]
  %v1113 = vld [vmem:[%s0 + $0x48] sm:$0x1]
  %v1114 = vld [vmem:[%s0 + $0x68] sm:$0x1]
  %v1115 = vld [vmem:[%s0 + $0x88] sm:$0x1]
  %v1116 = vld [vmem:[%s0 + $0xa8] sm:$0x1]
  %v1117 = vld [vmem:[%s0 + $0xc8] sm:$0x1]
  %v1118 = vld [vmem:[%s0 + $0xe8] sm:$0x1]
  %v1119 = vld [vmem:[%s0 + $0x9] sm:$0x1]
  %v1120 = vld [vmem:[%s0 + $0x29] sm:$0x1]
  %v1121 = vld [vmem:[%s0 + $0x49] sm:$0x1]
  %v1122 = vld [vmem:[%s0 + $0x69] sm:$0x1]
  %v1123 = vld [vmem:[%s0 + $0x89] sm:$0x1]
  %v1124 = vld [vmem:[%s0 + $0xa9] sm:$0x1]
  %v1125 = vld [vmem:[%s0 + $0xc9] sm:$0x1]
  %v1126 = vld [vmem:[%s0 + $0xe9] sm:$0x1]
  %1128 = vrot.lane.b32.xlu0 %v622, 28
  %v1129 = vpop.permute.xlu0 %1128
  %1131 = vrot.lane.b32.xlu0 %v883, 56
  %v1132 = vpop.permute.xlu0 %1131
  %1134 = vrot.lane.b32.xlu0 %v908, 84
  %v1135 = vpop.permute.xlu0 %1134
  %v1145 = vrot.slane %v1112, 7
  %v1146 = vsel %vm480, %v1145, %v1111
  %v1147 = vrot.slane %v1113, 6
  %v1148 = vsel %vm483, %v1147, %v1146
  %v1149 = vrot.slane %v1114, 5
  %v1150 = vsel %vm486, %v1149, %v1148
  %v1151 = vrot.slane %v1115, 4
  %v1152 = vsel %vm489, %v1151, %v1150
  %v1153 = vrot.slane %v1116, 3
  %v1154 = vsel %vm492, %v1153, %v1152
  %v1155 = vrot.slane %v1117, 2
  %v1156 = vsel %vm495, %v1155, %v1154
  %v1157 = vrot.slane %v1118, 1
  %v1158 = vsel %vm498, %v1157, %v1156
  %1159 = vrot.lane.b32.xlu0 %v1158, 112
  %v1160 = vpop.permute.xlu0 %1159
  %v1170 = vrot.slane %v1120, 7
  %v1171 = vsel %vm480, %v1170, %v1119
  %v1172 = vrot.slane %v1121, 6
  %v1173 = vsel %vm483, %v1172, %v1171
  %v1174 = vrot.slane %v1122, 5
  %v1175 = vsel %vm486, %v1174, %v1173
  %v1176 = vrot.slane %v1123, 4
  %v1177 = vsel %vm489, %v1176, %v1175
  %v1178 = vrot.slane %v1124, 3
  %v1179 = vsel %vm492, %v1178, %v1177
  %v1180 = vrot.slane %v1125, 2
  %v1181 = vsel %vm495, %v1180, %v1179
  %v1182 = vrot.slane %v1126, 1
  %v1183 = vsel %vm498, %v1182, %v1181
  %1184 = vrot.lane.b32.xlu0 %v1183, 12
  %v1185 = vpop.permute.xlu0 %1184
  %v1187 = vsel %vm626, %v597, %v1129
  %v1188 = vsel %vm628, %v1187, %v1132
  %v1189 = vsel %vm630, %v1188, %v1135
  %v1190 = vsel %vm632, %v1189, %v1160
  %v1191 = vsel %vm634, %v1160, %v1185
  %v1193 = vsel %vm636, %v1191, 0
  %1195 = vmatpush.msra.mxu0 %v86
  %1196 = vmatpush.msra.mxu0 %v82
  %1197 = vmatpush.msra.mxu0 %v78
  %1198 = vmatpush.msra.mxu0 %v74
  %1199 = vmatpush.msra.mxu0 %v70
  %1200 = vmatpush.msra.mxu0 %v66
  %1201 = vmatpush.msra.mxu0 %v62
  %1202 = vmatpush.msra.mxu0 %v58
  %1203 = vmatpush.msra.mxu0 %v54
  %1204 = vmatpush.msra.mxu0 %v50
  %1205 = vmatpush.msra.mxu0 %v46
  %1206 = vmatpush.msra.mxu0 %v42
  %1207 = vmatpush.msra.mxu0 %v38
  %1208 = vmatpush.msra.mxu0 %v34
  %1209 = vmatpush.msra.mxu0 %v30
  %1210 = vmatpush.msra.mxu0 %v26
  %1211 = vmatmul.f32.gmra.mxu0 %v1190
  %v1212 = vpop.f32.mrf.mxu0
  %v1213 = vadd.f32 0.0, %v1212
  %1214 = vdwg.mxu0
  %1215 = vmatpush.msra.mxu0 0.0
  %1216 = vmatpush.msra.mxu0 0.0
  %1217 = vmatpush.msra.mxu0 0.0
  %1218 = vmatpush.msra.mxu0 0.0
  %1219 = vmatpush.msra.mxu0 0.0
  %1220 = vmatpush.msra.mxu0 0.0
  %1221 = vmatpush.msra.mxu0 0.0
  %1222 = vmatpush.msra.mxu0 0.0
  %1223 = vmatpush.msra.mxu0 0.0
  %1224 = vmatpush.msra.mxu0 0.0
  %1225 = vmatpush.msra.mxu0 0.0
  %1226 = vmatpush.msra.mxu0 %v106
  %1227 = vmatpush.msra.mxu0 %v102
  %1228 = vmatpush.msra.mxu0 %v98
  %1229 = vmatpush.msra.mxu0 %v94
  %1230 = vmatpush.msra.mxu0 %v90
  %1231 = vmatmul.f32.gmra.mxu0 %v1193
  %v1232 = vpop.f32.mrf.mxu0
  %v1233 = vadd.f32 %v1213, %v1232
  %1234 = vdwg.mxu0
  %1235 = vmatpush.msra.mxu0 %v87
  %1236 = vmatpush.msra.mxu0 %v83
  %1237 = vmatpush.msra.mxu0 %v79
  %1238 = vmatpush.msra.mxu0 %v75
  %1239 = vmatpush.msra.mxu0 %v71
  %1240 = vmatpush.msra.mxu0 %v67
  %1241 = vmatpush.msra.mxu0 %v63
  %1242 = vmatpush.msra.mxu0 %v59
  %1243 = vmatpush.msra.mxu0 %v55
  %1244 = vmatpush.msra.mxu0 %v51
  %1245 = vmatpush.msra.mxu0 %v47
  %1246 = vmatpush.msra.mxu0 %v43
  %1247 = vmatpush.msra.mxu0 %v39
  %1248 = vmatpush.msra.mxu0 %v35
  %1249 = vmatpush.msra.mxu0 %v31
  %1250 = vmatpush.msra.mxu0 %v27
  %1251 = vmatmul.f32.gmra.mxu0 %v1190
  %v1252 = vpop.f32.mrf.mxu0
  %v1253 = vadd.f32 0.0, %v1252
  %1254 = vdwg.mxu0
  %1255 = vmatpush.msra.mxu0 0.0
  %1256 = vmatpush.msra.mxu0 0.0
  %1257 = vmatpush.msra.mxu0 0.0
  %1258 = vmatpush.msra.mxu0 0.0
  %1259 = vmatpush.msra.mxu0 0.0
  %1260 = vmatpush.msra.mxu0 0.0
  %1261 = vmatpush.msra.mxu0 0.0
  %1262 = vmatpush.msra.mxu0 0.0
  %1263 = vmatpush.msra.mxu0 0.0
  %1264 = vmatpush.msra.mxu0 0.0
  %1265 = vmatpush.msra.mxu0 0.0
  %1266 = vmatpush.msra.mxu0 %v107
  %1267 = vmatpush.msra.mxu0 %v103
  %1268 = vmatpush.msra.mxu0 %v99
  %1269 = vmatpush.msra.mxu0 %v95
  %1270 = vmatpush.msra.mxu0 %v91
  %1271 = vmatmul.f32.gmra.mxu0 %v1193
  %v1272 = vpop.f32.mrf.mxu0
  %v1273 = vadd.f32 %v1253, %v1272
  %1274 = vdwg.mxu0
  %1275 = vmatpush.msra.mxu0 %v88
  %1276 = vmatpush.msra.mxu0 %v84
  %1277 = vmatpush.msra.mxu0 %v80
  %1278 = vmatpush.msra.mxu0 %v76
  %1279 = vmatpush.msra.mxu0 %v72
  %1280 = vmatpush.msra.mxu0 %v68
  %1281 = vmatpush.msra.mxu0 %v64
  %1282 = vmatpush.msra.mxu0 %v60
  %1283 = vmatpush.msra.mxu0 %v56
  %1284 = vmatpush.msra.mxu0 %v52
  %1285 = vmatpush.msra.mxu0 %v48
  %1286 = vmatpush.msra.mxu0 %v44
  %1287 = vmatpush.msra.mxu0 %v40
  %1288 = vmatpush.msra.mxu0 %v36
  %1289 = vmatpush.msra.mxu0 %v32
  %1290 = vmatpush.msra.mxu0 %v28
  %1291 = vmatmul.f32.gmra.mxu0 %v1190
  %v1292 = vpop.f32.mrf.mxu0
  %v1293 = vadd.f32 0.0, %v1292
  %1294 = vdwg.mxu0
  %1295 = vmatpush.msra.mxu0 0.0
  %1296 = vmatpush.msra.mxu0 0.0
  %1297 = vmatpush.msra.mxu0 0.0
  %1298 = vmatpush.msra.mxu0 0.0
  %1299 = vmatpush.msra.mxu0 0.0
  %1300 = vmatpush.msra.mxu0 0.0
  %1301 = vmatpush.msra.mxu0 0.0
  %1302 = vmatpush.msra.mxu0 0.0
  %1303 = vmatpush.msra.mxu0 0.0
  %1304 = vmatpush.msra.mxu0 0.0
  %1305 = vmatpush.msra.mxu0 0.0
  %1306 = vmatpush.msra.mxu0 %v108
  %1307 = vmatpush.msra.mxu0 %v104
  %1308 = vmatpush.msra.mxu0 %v100
  %1309 = vmatpush.msra.mxu0 %v96
  %1310 = vmatpush.msra.mxu0 %v92
  %1311 = vmatmul.f32.gmra.mxu0 %v1193
  %v1312 = vpop.f32.mrf.mxu0
  %v1313 = vadd.f32 %v1293, %v1312
  %1314 = vdwg.mxu0
  %1315 = vmatpush.msra.mxu0 %v89
  %1316 = vmatpush.msra.mxu0 %v85
  %1317 = vmatpush.msra.mxu0 %v81
  %1318 = vmatpush.msra.mxu0 %v77
  %1319 = vmatpush.msra.mxu0 %v73
  %1320 = vmatpush.msra.mxu0 %v69
  %1321 = vmatpush.msra.mxu0 %v65
  %1322 = vmatpush.msra.mxu0 %v61
  %1323 = vmatpush.msra.mxu0 %v57
  %1324 = vmatpush.msra.mxu0 %v53
  %1325 = vmatpush.msra.mxu0 %v49
  %1326 = vmatpush.msra.mxu0 %v45
  %1327 = vmatpush.msra.mxu0 %v41
  %1328 = vmatpush.msra.mxu0 %v37
  %1329 = vmatpush.msra.mxu0 %v33
  %1330 = vmatpush.msra.mxu0 %v29
  %1331 = vmatmul.f32.gmra.mxu0 %v1190
  %v1332 = vpop.f32.mrf.mxu0
  %v1333 = vadd.f32 0.0, %v1332
  %1334 = vdwg.mxu0
  %1335 = vmatpush.msra.mxu0 0.0
  %1336 = vmatpush.msra.mxu0 0.0
  %1337 = vmatpush.msra.mxu0 0.0
  %1338 = vmatpush.msra.mxu0 0.0
  %1339 = vmatpush.msra.mxu0 0.0
  %1340 = vmatpush.msra.mxu0 0.0
  %1341 = vmatpush.msra.mxu0 0.0
  %1342 = vmatpush.msra.mxu0 0.0
  %1343 = vmatpush.msra.mxu0 0.0
  %1344 = vmatpush.msra.mxu0 0.0
  %1345 = vmatpush.msra.mxu0 0.0
  %1346 = vmatpush.msra.mxu0 %v109
  %1347 = vmatpush.msra.mxu0 %v105
  %1348 = vmatpush.msra.mxu0 %v101
  %1349 = vmatpush.msra.mxu0 %v97
  %1350 = vmatpush.msra.mxu0 %v93
  %1351 = vmatmul.f32.gmra.mxu0 %v1193
  %v1352 = vpop.f32.mrf.mxu0
  %v1353 = vadd.f32 %v1333, %v1352
  %1354 = vdwg.mxu0
  %1357 = vrot.lane.b32.xlu0 %v1233, 8
  %v1358 = vpop.permute.xlu0 %1357
  %1359 = vrot.lane.b32.xlu0 %v1273, 8
  %v1360 = vpop.permute.xlu0 %1359
  %v1361 = vsel %vm806, %v1358, %v1360
  %v1363 = vmax.f32 %v1233, %v1361
  %1366 = vrot.lane.b32.xlu0 %v1313, 8
  %v1367 = vpop.permute.xlu0 %1366
  %1368 = vrot.lane.b32.xlu0 %v1353, 8
  %v1369 = vpop.permute.xlu0 %1368
  %v1370 = vsel %vm806, %v1367, %v1369
  %v1373 = vmax.f32 %v1273, %v1367
  %v1374 = vmax.f32 %v1313, %v1370
  %1377 = vrot.lane.b32.xlu0 %v1373, 16
  %v1378 = vpop.permute.xlu0 %1377
  %1379 = vrot.lane.b32.xlu0 %v1374, 16
  %v1380 = vpop.permute.xlu0 %1379
  %v1381 = vsel %vm827, %v1378, %v1380
  %v1383 = vmax.f32 %v1363, %v1381
  %v1384 = vadd.f32 %v1383, %v832
  %v1385 = vmax.f32 %v1384, 0.0
  %v1386 = vld [vmem:[%s0 + $0xa] sm:$0x1]
  %v1387 = vld [vmem:[%s0 + $0x2a] sm:$0x1]
  %v1388 = vld [vmem:[%s0 + $0x4a] sm:$0x1]
  %v1389 = vld [vmem:[%s0 + $0x6a] sm:$0x1]
  %v1390 = vld [vmem:[%s0 + $0x8a] sm:$0x1]
  %v1391 = vld [vmem:[%s0 + $0xaa] sm:$0x1]
  %v1392 = vld [vmem:[%s0 + $0xca] sm:$0x1]
  %v1393 = vld [vmem:[%s0 + $0xea] sm:$0x1]
  %v1394 = vld [vmem:[%s0 + $0xb] sm:$0x1]
  %v1395 = vld [vmem:[%s0 + $0x2b] sm:$0x1]
  %v1396 = vld [vmem:[%s0 + $0x4b] sm:$0x1]
  %v1397 = vld [vmem:[%s0 + $0x6b] sm:$0x1]
  %v1398 = vld [vmem:[%s0 + $0x8b] sm:$0x1]
  %v1399 = vld [vmem:[%s0 + $0xab] sm:$0x1]
  %v1400 = vld [vmem:[%s0 + $0xcb] sm:$0x1]
  %v1401 = vld [vmem:[%s0 + $0xeb] sm:$0x1]
  %1403 = vrot.lane.b32.xlu0 %v908, 28
  %v1404 = vpop.permute.xlu0 %1403
  %1406 = vrot.lane.b32.xlu0 %v1158, 56
  %v1407 = vpop.permute.xlu0 %1406
  %1409 = vrot.lane.b32.xlu0 %v1183, 84
  %v1410 = vpop.permute.xlu0 %1409
  %v1420 = vrot.slane %v1387, 7
  %v1421 = vsel %vm480, %v1420, %v1386
  %v1422 = vrot.slane %v1388, 6
  %v1423 = vsel %vm483, %v1422, %v1421
  %v1424 = vrot.slane %v1389, 5
  %v1425 = vsel %vm486, %v1424, %v1423
  %v1426 = vrot.slane %v1390, 4
  %v1427 = vsel %vm489, %v1426, %v1425
  %v1428 = vrot.slane %v1391, 3
  %v1429 = vsel %vm492, %v1428, %v1427
  %v1430 = vrot.slane %v1392, 2
  %v1431 = vsel %vm495, %v1430, %v1429
  %v1432 = vrot.slane %v1393, 1
  %v1433 = vsel %vm498, %v1432, %v1431
  %1434 = vrot.lane.b32.xlu0 %v1433, 112
  %v1435 = vpop.permute.xlu0 %1434
  %v1445 = vrot.slane %v1395, 7
  %v1446 = vsel %vm480, %v1445, %v1394
  %v1447 = vrot.slane %v1396, 6
  %v1448 = vsel %vm483, %v1447, %v1446
  %v1449 = vrot.slane %v1397, 5
  %v1450 = vsel %vm486, %v1449, %v1448
  %v1451 = vrot.slane %v1398, 4
  %v1452 = vsel %vm489, %v1451, %v1450
  %v1453 = vrot.slane %v1399, 3
  %v1454 = vsel %vm492, %v1453, %v1452
  %v1455 = vrot.slane %v1400, 2
  %v1456 = vsel %vm495, %v1455, %v1454
  %v1457 = vrot.slane %v1401, 1
  %v1458 = vsel %vm498, %v1457, %v1456
  %1459 = vrot.lane.b32.xlu0 %v1458, 12
  %v1460 = vpop.permute.xlu0 %1459
  %v1462 = vsel %vm626, %v883, %v1404
  %v1463 = vsel %vm628, %v1462, %v1407
  %v1464 = vsel %vm630, %v1463, %v1410
  %v1465 = vsel %vm632, %v1464, %v1435
  %v1466 = vsel %vm634, %v1435, %v1460
  %v1468 = vsel %vm636, %v1466, 0
  %1470 = vmatpush.msra.mxu0 %v86
  %1471 = vmatpush.msra.mxu0 %v82
  %1472 = vmatpush.msra.mxu0 %v78
  %1473 = vmatpush.msra.mxu0 %v74
  %1474 = vmatpush.msra.mxu0 %v70
  %1475 = vmatpush.msra.mxu0 %v66
  %1476 = vmatpush.msra.mxu0 %v62
  %1477 = vmatpush.msra.mxu0 %v58
  %1478 = vmatpush.msra.mxu0 %v54
  %1479 = vmatpush.msra.mxu0 %v50
  %1480 = vmatpush.msra.mxu0 %v46
  %1481 = vmatpush.msra.mxu0 %v42
  %1482 = vmatpush.msra.mxu0 %v38
  %1483 = vmatpush.msra.mxu0 %v34
  %1484 = vmatpush.msra.mxu0 %v30
  %1485 = vmatpush.msra.mxu0 %v26
  %1486 = vmatmul.f32.gmra.mxu0 %v1465
  %v1487 = vpop.f32.mrf.mxu0
  %v1488 = vadd.f32 0.0, %v1487
  %1489 = vdwg.mxu0
  %1490 = vmatpush.msra.mxu0 0.0
  %1491 = vmatpush.msra.mxu0 0.0
  %1492 = vmatpush.msra.mxu0 0.0
  %1493 = vmatpush.msra.mxu0 0.0
  %1494 = vmatpush.msra.mxu0 0.0
  %1495 = vmatpush.msra.mxu0 0.0
  %1496 = vmatpush.msra.mxu0 0.0
  %1497 = vmatpush.msra.mxu0 0.0
  %1498 = vmatpush.msra.mxu0 0.0
  %1499 = vmatpush.msra.mxu0 0.0
  %1500 = vmatpush.msra.mxu0 0.0
  %1501 = vmatpush.msra.mxu0 %v106
  %1502 = vmatpush.msra.mxu0 %v102
  %1503 = vmatpush.msra.mxu0 %v98
  %1504 = vmatpush.msra.mxu0 %v94
  %1505 = vmatpush.msra.mxu0 %v90
  %1506 = vmatmul.f32.gmra.mxu0 %v1468
  %v1507 = vpop.f32.mrf.mxu0
  %v1508 = vadd.f32 %v1488, %v1507
  %1509 = vdwg.mxu0
  %1510 = vmatpush.msra.mxu0 %v87
  %1511 = vmatpush.msra.mxu0 %v83
  %1512 = vmatpush.msra.mxu0 %v79
  %1513 = vmatpush.msra.mxu0 %v75
  %1514 = vmatpush.msra.mxu0 %v71
  %1515 = vmatpush.msra.mxu0 %v67
  %1516 = vmatpush.msra.mxu0 %v63
  %1517 = vmatpush.msra.mxu0 %v59
  %1518 = vmatpush.msra.mxu0 %v55
  %1519 = vmatpush.msra.mxu0 %v51
  %1520 = vmatpush.msra.mxu0 %v47
  %1521 = vmatpush.msra.mxu0 %v43
  %1522 = vmatpush.msra.mxu0 %v39
  %1523 = vmatpush.msra.mxu0 %v35
  %1524 = vmatpush.msra.mxu0 %v31
  %1525 = vmatpush.msra.mxu0 %v27
  %1526 = vmatmul.f32.gmra.mxu0 %v1465
  %v1527 = vpop.f32.mrf.mxu0
  %v1528 = vadd.f32 0.0, %v1527
  %1529 = vdwg.mxu0
  %1530 = vmatpush.msra.mxu0 0.0
  %1531 = vmatpush.msra.mxu0 0.0
  %1532 = vmatpush.msra.mxu0 0.0
  %1533 = vmatpush.msra.mxu0 0.0
  %1534 = vmatpush.msra.mxu0 0.0
  %1535 = vmatpush.msra.mxu0 0.0
  %1536 = vmatpush.msra.mxu0 0.0
  %1537 = vmatpush.msra.mxu0 0.0
  %1538 = vmatpush.msra.mxu0 0.0
  %1539 = vmatpush.msra.mxu0 0.0
  %1540 = vmatpush.msra.mxu0 0.0
  %1541 = vmatpush.msra.mxu0 %v107
  %1542 = vmatpush.msra.mxu0 %v103
  %1543 = vmatpush.msra.mxu0 %v99
  %1544 = vmatpush.msra.mxu0 %v95
  %1545 = vmatpush.msra.mxu0 %v91
  %1546 = vmatmul.f32.gmra.mxu0 %v1468
  %v1547 = vpop.f32.mrf.mxu0
  %v1548 = vadd.f32 %v1528, %v1547
  %1549 = vdwg.mxu0
  %1550 = vmatpush.msra.mxu0 %v88
  %1551 = vmatpush.msra.mxu0 %v84
  %1552 = vmatpush.msra.mxu0 %v80
  %1553 = vmatpush.msra.mxu0 %v76
  %1554 = vmatpush.msra.mxu0 %v72
  %1555 = vmatpush.msra.mxu0 %v68
  %1556 = vmatpush.msra.mxu0 %v64
  %1557 = vmatpush.msra.mxu0 %v60
  %1558 = vmatpush.msra.mxu0 %v56
  %1559 = vmatpush.msra.mxu0 %v52
  %1560 = vmatpush.msra.mxu0 %v48
  %1561 = vmatpush.msra.mxu0 %v44
  %1562 = vmatpush.msra.mxu0 %v40
  %1563 = vmatpush.msra.mxu0 %v36
  %1564 = vmatpush.msra.mxu0 %v32
  %1565 = vmatpush.msra.mxu0 %v28
  %1566 = vmatmul.f32.gmra.mxu0 %v1465
  %v1567 = vpop.f32.mrf.mxu0
  %v1568 = vadd.f32 0.0, %v1567
  %1569 = vdwg.mxu0
  %1570 = vmatpush.msra.mxu0 0.0
  %1571 = vmatpush.msra.mxu0 0.0
  %1572 = vmatpush.msra.mxu0 0.0
  %1573 = vmatpush.msra.mxu0 0.0
  %1574 = vmatpush.msra.mxu0 0.0
  %1575 = vmatpush.msra.mxu0 0.0
  %1576 = vmatpush.msra.mxu0 0.0
  %1577 = vmatpush.msra.mxu0 0.0
  %1578 = vmatpush.msra.mxu0 0.0
  %1579 = vmatpush.msra.mxu0 0.0
  %1580 = vmatpush.msra.mxu0 0.0
  %1581 = vmatpush.msra.mxu0 %v108
  %1582 = vmatpush.msra.mxu0 %v104
  %1583 = vmatpush.msra.mxu0 %v100
  %1584 = vmatpush.msra.mxu0 %v96
  %1585 = vmatpush.msra.mxu0 %v92
  %1586 = vmatmul.f32.gmra.mxu0 %v1468
  %v1587 = vpop.f32.mrf.mxu0
  %v1588 = vadd.f32 %v1568, %v1587
  %1589 = vdwg.mxu0
  %1590 = vmatpush.msra.mxu0 %v89
  %1591 = vmatpush.msra.mxu0 %v85
  %1592 = vmatpush.msra.mxu0 %v81
  %1593 = vmatpush.msra.mxu0 %v77
  %1594 = vmatpush.msra.mxu0 %v73
  %1595 = vmatpush.msra.mxu0 %v69
  %1596 = vmatpush.msra.mxu0 %v65
  %1597 = vmatpush.msra.mxu0 %v61
  %1598 = vmatpush.msra.mxu0 %v57
  %1599 = vmatpush.msra.mxu0 %v53
  %1600 = vmatpush.msra.mxu0 %v49
  %1601 = vmatpush.msra.mxu0 %v45
  %1602 = vmatpush.msra.mxu0 %v41
  %1603 = vmatpush.msra.mxu0 %v37
  %1604 = vmatpush.msra.mxu0 %v33
  %1605 = vmatpush.msra.mxu0 %v29
  %1606 = vmatmul.f32.gmra.mxu0 %v1465
  %v1607 = vpop.f32.mrf.mxu0
  %v1608 = vadd.f32 0.0, %v1607
  %1609 = vdwg.mxu0
  %1610 = vmatpush.msra.mxu0 0.0
  %1611 = vmatpush.msra.mxu0 0.0
  %1612 = vmatpush.msra.mxu0 0.0
  %1613 = vmatpush.msra.mxu0 0.0
  %1614 = vmatpush.msra.mxu0 0.0
  %1615 = vmatpush.msra.mxu0 0.0
  %1616 = vmatpush.msra.mxu0 0.0
  %1617 = vmatpush.msra.mxu0 0.0
  %1618 = vmatpush.msra.mxu0 0.0
  %1619 = vmatpush.msra.mxu0 0.0
  %1620 = vmatpush.msra.mxu0 0.0
  %1621 = vmatpush.msra.mxu0 %v109
  %1622 = vmatpush.msra.mxu0 %v105
  %1623 = vmatpush.msra.mxu0 %v101
  %1624 = vmatpush.msra.mxu0 %v97
  %1625 = vmatpush.msra.mxu0 %v93
  %1626 = vmatmul.f32.gmra.mxu0 %v1468
  %v1627 = vpop.f32.mrf.mxu0
  %v1628 = vadd.f32 %v1608, %v1627
  %1629 = vdwg.mxu0
  %1632 = vrot.lane.b32.xlu0 %v1508, 8
  %v1633 = vpop.permute.xlu0 %1632
  %1634 = vrot.lane.b32.xlu0 %v1548, 8
  %v1635 = vpop.permute.xlu0 %1634
  %v1636 = vsel %vm806, %v1633, %v1635
  %v1638 = vmax.f32 %v1508, %v1636
  %1641 = vrot.lane.b32.xlu0 %v1588, 8
  %v1642 = vpop.permute.xlu0 %1641
  %1643 = vrot.lane.b32.xlu0 %v1628, 8
  %v1644 = vpop.permute.xlu0 %1643
  %v1645 = vsel %vm806, %v1642, %v1644
  %v1648 = vmax.f32 %v1548, %v1642
  %v1649 = vmax.f32 %v1588, %v1645
  %1652 = vrot.lane.b32.xlu0 %v1648, 16
  %v1653 = vpop.permute.xlu0 %1652
  %1654 = vrot.lane.b32.xlu0 %v1649, 16
  %v1655 = vpop.permute.xlu0 %1654
  %v1656 = vsel %vm827, %v1653, %v1655
  %v1658 = vmax.f32 %v1638, %v1656
  %v1659 = vadd.f32 %v1658, %v832
  %v1660 = vmax.f32 %v1659, 0.0
  %v1661 = vld [vmem:[%s0 + $0xc] sm:$0x1]
  %v1662 = vld [vmem:[%s0 + $0x2c] sm:$0x1]
  %v1663 = vld [vmem:[%s0 + $0x4c] sm:$0x1]
  %v1664 = vld [vmem:[%s0 + $0x6c] sm:$0x1]
  %v1665 = vld [vmem:[%s0 + $0x8c] sm:$0x1]
  %v1666 = vld [vmem:[%s0 + $0xac] sm:$0x1]
  %v1667 = vld [vmem:[%s0 + $0xcc] sm:$0x1]
  %v1668 = vld [vmem:[%s0 + $0xec] sm:$0x1]
  %v1669 = vld [vmem:[%s0 + $0xd] sm:$0x1]
  %v1670 = vld [vmem:[%s0 + $0x2d] sm:$0x1]
  %v1671 = vld [vmem:[%s0 + $0x4d] sm:$0x1]
  %v1672 = vld [vmem:[%s0 + $0x6d] sm:$0x1]
  %v1673 = vld [vmem:[%s0 + $0x8d] sm:$0x1]
  %v1674 = vld [vmem:[%s0 + $0xad] sm:$0x1]
  %v1675 = vld [vmem:[%s0 + $0xcd] sm:$0x1]
  %v1676 = vld [vmem:[%s0 + $0xed] sm:$0x1]
  %1678 = vrot.lane.b32.xlu0 %v1183, 28
  %v1679 = vpop.permute.xlu0 %1678
  %1681 = vrot.lane.b32.xlu0 %v1433, 56
  %v1682 = vpop.permute.xlu0 %1681
  %1684 = vrot.lane.b32.xlu0 %v1458, 84
  %v1685 = vpop.permute.xlu0 %1684
  %v1695 = vrot.slane %v1662, 7
  %v1696 = vsel %vm480, %v1695, %v1661
  %v1697 = vrot.slane %v1663, 6
  %v1698 = vsel %vm483, %v1697, %v1696
  %v1699 = vrot.slane %v1664, 5
  %v1700 = vsel %vm486, %v1699, %v1698
  %v1701 = vrot.slane %v1665, 4
  %v1702 = vsel %vm489, %v1701, %v1700
  %v1703 = vrot.slane %v1666, 3
  %v1704 = vsel %vm492, %v1703, %v1702
  %v1705 = vrot.slane %v1667, 2
  %v1706 = vsel %vm495, %v1705, %v1704
  %v1707 = vrot.slane %v1668, 1
  %v1708 = vsel %vm498, %v1707, %v1706
  %1709 = vrot.lane.b32.xlu0 %v1708, 112
  %v1710 = vpop.permute.xlu0 %1709
  %v1720 = vrot.slane %v1670, 7
  %v1721 = vsel %vm480, %v1720, %v1669
  %v1722 = vrot.slane %v1671, 6
  %v1723 = vsel %vm483, %v1722, %v1721
  %v1724 = vrot.slane %v1672, 5
  %v1725 = vsel %vm486, %v1724, %v1723
  %v1726 = vrot.slane %v1673, 4
  %v1727 = vsel %vm489, %v1726, %v1725
  %v1728 = vrot.slane %v1674, 3
  %v1729 = vsel %vm492, %v1728, %v1727
  %v1730 = vrot.slane %v1675, 2
  %v1731 = vsel %vm495, %v1730, %v1729
  %v1732 = vrot.slane %v1676, 1
  %v1733 = vsel %vm498, %v1732, %v1731
  %1734 = vrot.lane.b32.xlu0 %v1733, 12
  %v1735 = vpop.permute.xlu0 %1734
  %v1737 = vsel %vm626, %v1158, %v1679
  %v1738 = vsel %vm628, %v1737, %v1682
  %v1739 = vsel %vm630, %v1738, %v1685
  %v1740 = vsel %vm632, %v1739, %v1710
  %v1741 = vsel %vm634, %v1710, %v1735
  %v1743 = vsel %vm636, %v1741, 0
  %1745 = vmatpush.msra.mxu0 %v86
  %1746 = vmatpush.msra.mxu0 %v82
  %1747 = vmatpush.msra.mxu0 %v78
  %1748 = vmatpush.msra.mxu0 %v74
  %1749 = vmatpush.msra.mxu0 %v70
  %1750 = vmatpush.msra.mxu0 %v66
  %1751 = vmatpush.msra.mxu0 %v62
  %1752 = vmatpush.msra.mxu0 %v58
  %1753 = vmatpush.msra.mxu0 %v54
  %1754 = vmatpush.msra.mxu0 %v50
  %1755 = vmatpush.msra.mxu0 %v46
  %1756 = vmatpush.msra.mxu0 %v42
  %1757 = vmatpush.msra.mxu0 %v38
  %1758 = vmatpush.msra.mxu0 %v34
  %1759 = vmatpush.msra.mxu0 %v30
  %1760 = vmatpush.msra.mxu0 %v26
  %1761 = vmatmul.f32.gmra.mxu0 %v1740
  %v1762 = vpop.f32.mrf.mxu0
  %v1763 = vadd.f32 0.0, %v1762
  %1764 = vdwg.mxu0
  %1765 = vmatpush.msra.mxu0 0.0
  %1766 = vmatpush.msra.mxu0 0.0
  %1767 = vmatpush.msra.mxu0 0.0
  %1768 = vmatpush.msra.mxu0 0.0
  %1769 = vmatpush.msra.mxu0 0.0
  %1770 = vmatpush.msra.mxu0 0.0
  %1771 = vmatpush.msra.mxu0 0.0
  %1772 = vmatpush.msra.mxu0 0.0
  %1773 = vmatpush.msra.mxu0 0.0
  %1774 = vmatpush.msra.mxu0 0.0
  %1775 = vmatpush.msra.mxu0 0.0
  %1776 = vmatpush.msra.mxu0 %v106
  %1777 = vmatpush.msra.mxu0 %v102
  %1778 = vmatpush.msra.mxu0 %v98
  %1779 = vmatpush.msra.mxu0 %v94
  %1780 = vmatpush.msra.mxu0 %v90
  %1781 = vmatmul.f32.gmra.mxu0 %v1743
  %v1782 = vpop.f32.mrf.mxu0
  %v1783 = vadd.f32 %v1763, %v1782
  %1784 = vdwg.mxu0
  %1785 = vmatpush.msra.mxu0 %v87
  %1786 = vmatpush.msra.mxu0 %v83
  %1787 = vmatpush.msra.mxu0 %v79
  %1788 = vmatpush.msra.mxu0 %v75
  %1789 = vmatpush.msra.mxu0 %v71
  %1790 = vmatpush.msra.mxu0 %v67
  %1791 = vmatpush.msra.mxu0 %v63
  %1792 = vmatpush.msra.mxu0 %v59
  %1793 = vmatpush.msra.mxu0 %v55
  %1794 = vmatpush.msra.mxu0 %v51
  %1795 = vmatpush.msra.mxu0 %v47
  %1796 = vmatpush.msra.mxu0 %v43
  %1797 = vmatpush.msra.mxu0 %v39
  %1798 = vmatpush.msra.mxu0 %v35
  %1799 = vmatpush.msra.mxu0 %v31
  %1800 = vmatpush.msra.mxu0 %v27
  %1801 = vmatmul.f32.gmra.mxu0 %v1740
  %v1802 = vpop.f32.mrf.mxu0
  %v1803 = vadd.f32 0.0, %v1802
  %1804 = vdwg.mxu0
  %1805 = vmatpush.msra.mxu0 0.0
  %1806 = vmatpush.msra.mxu0 0.0
  %1807 = vmatpush.msra.mxu0 0.0
  %1808 = vmatpush.msra.mxu0 0.0
  %1809 = vmatpush.msra.mxu0 0.0
  %1810 = vmatpush.msra.mxu0 0.0
  %1811 = vmatpush.msra.mxu0 0.0
  %1812 = vmatpush.msra.mxu0 0.0
  %1813 = vmatpush.msra.mxu0 0.0
  %1814 = vmatpush.msra.mxu0 0.0
  %1815 = vmatpush.msra.mxu0 0.0
  %1816 = vmatpush.msra.mxu0 %v107
  %1817 = vmatpush.msra.mxu0 %v103
  %1818 = vmatpush.msra.mxu0 %v99
  %1819 = vmatpush.msra.mxu0 %v95
  %1820 = vmatpush.msra.mxu0 %v91
  %1821 = vmatmul.f32.gmra.mxu0 %v1743
  %v1822 = vpop.f32.mrf.mxu0
  %v1823 = vadd.f32 %v1803, %v1822
  %1824 = vdwg.mxu0
  %1825 = vmatpush.msra.mxu0 %v88
  %1826 = vmatpush.msra.mxu0 %v84
  %1827 = vmatpush.msra.mxu0 %v80
  %1828 = vmatpush.msra.mxu0 %v76
  %1829 = vmatpush.msra.mxu0 %v72
  %1830 = vmatpush.msra.mxu0 %v68
  %1831 = vmatpush.msra.mxu0 %v64
  %1832 = vmatpush.msra.mxu0 %v60
  %1833 = vmatpush.msra.mxu0 %v56
  %1834 = vmatpush.msra.mxu0 %v52
  %1835 = vmatpush.msra.mxu0 %v48
  %1836 = vmatpush.msra.mxu0 %v44
  %1837 = vmatpush.msra.mxu0 %v40
  %1838 = vmatpush.msra.mxu0 %v36
  %1839 = vmatpush.msra.mxu0 %v32
  %1840 = vmatpush.msra.mxu0 %v28
  %1841 = vmatmul.f32.gmra.mxu0 %v1740
  %v1842 = vpop.f32.mrf.mxu0
  %v1843 = vadd.f32 0.0, %v1842
  %1844 = vdwg.mxu0
  %1845 = vmatpush.msra.mxu0 0.0
  %1846 = vmatpush.msra.mxu0 0.0
  %1847 = vmatpush.msra.mxu0 0.0
  %1848 = vmatpush.msra.mxu0 0.0
  %1849 = vmatpush.msra.mxu0 0.0
  %1850 = vmatpush.msra.mxu0 0.0
  %1851 = vmatpush.msra.mxu0 0.0
  %1852 = vmatpush.msra.mxu0 0.0
  %1853 = vmatpush.msra.mxu0 0.0
  %1854 = vmatpush.msra.mxu0 0.0
  %1855 = vmatpush.msra.mxu0 0.0
  %1856 = vmatpush.msra.mxu0 %v108
  %1857 = vmatpush.msra.mxu0 %v104
  %1858 = vmatpush.msra.mxu0 %v100
  %1859 = vmatpush.msra.mxu0 %v96
  %1860 = vmatpush.msra.mxu0 %v92
  %1861 = vmatmul.f32.gmra.mxu0 %v1743
  %v1862 = vpop.f32.mrf.mxu0
  %v1863 = vadd.f32 %v1843, %v1862
  %1864 = vdwg.mxu0
  %1865 = vmatpush.msra.mxu0 %v89
  %1866 = vmatpush.msra.mxu0 %v85
  %1867 = vmatpush.msra.mxu0 %v81
  %1868 = vmatpush.msra.mxu0 %v77
  %1869 = vmatpush.msra.mxu0 %v73
  %1870 = vmatpush.msra.mxu0 %v69
  %1871 = vmatpush.msra.mxu0 %v65
  %1872 = vmatpush.msra.mxu0 %v61
  %1873 = vmatpush.msra.mxu0 %v57
  %1874 = vmatpush.msra.mxu0 %v53
  %1875 = vmatpush.msra.mxu0 %v49
  %1876 = vmatpush.msra.mxu0 %v45
  %1877 = vmatpush.msra.mxu0 %v41
  %1878 = vmatpush.msra.mxu0 %v37
  %1879 = vmatpush.msra.mxu0 %v33
  %1880 = vmatpush.msra.mxu0 %v29
  %1881 = vmatmul.f32.gmra.mxu0 %v1740
  %v1882 = vpop.f32.mrf.mxu0
  %v1883 = vadd.f32 0.0, %v1882
  %1884 = vdwg.mxu0
  %1885 = vmatpush.msra.mxu0 0.0
  %1886 = vmatpush.msra.mxu0 0.0
  %1887 = vmatpush.msra.mxu0 0.0
  %1888 = vmatpush.msra.mxu0 0.0
  %1889 = vmatpush.msra.mxu0 0.0
  %1890 = vmatpush.msra.mxu0 0.0
  %1891 = vmatpush.msra.mxu0 0.0
  %1892 = vmatpush.msra.mxu0 0.0
  %1893 = vmatpush.msra.mxu0 0.0
  %1894 = vmatpush.msra.mxu0 0.0
  %1895 = vmatpush.msra.mxu0 0.0
  %1896 = vmatpush.msra.mxu0 %v109
  %1897 = vmatpush.msra.mxu0 %v105
  %1898 = vmatpush.msra.mxu0 %v101
  %1899 = vmatpush.msra.mxu0 %v97
  %1900 = vmatpush.msra.mxu0 %v93
  %1901 = vmatmul.f32.gmra.mxu0 %v1743
  %v1902 = vpop.f32.mrf.mxu0
  %v1903 = vadd.f32 %v1883, %v1902
  %1904 = vdwg.mxu0
  %1907 = vrot.lane.b32.xlu0 %v1783, 8
  %v1908 = vpop.permute.xlu0 %1907
  %1909 = vrot.lane.b32.xlu0 %v1823, 8
  %v1910 = vpop.permute.xlu0 %1909
  %v1911 = vsel %vm806, %v1908, %v1910
  %v1913 = vmax.f32 %v1783, %v1911
  %1916 = vrot.lane.b32.xlu0 %v1863, 8
  %v1917 = vpop.permute.xlu0 %1916
  %1918 = vrot.lane.b32.xlu0 %v1903, 8
  %v1919 = vpop.permute.xlu0 %1918
  %v1920 = vsel %vm806, %v1917, %v1919
  %v1923 = vmax.f32 %v1823, %v1917
  %v1924 = vmax.f32 %v1863, %v1920
  %1927 = vrot.lane.b32.xlu0 %v1923, 16
  %v1928 = vpop.permute.xlu0 %1927
  %1929 = vrot.lane.b32.xlu0 %v1924, 16
  %v1930 = vpop.permute.xlu0 %1929
  %v1931 = vsel %vm827, %v1928, %v1930
  %v1933 = vmax.f32 %v1913, %v1931
  %v1934 = vadd.f32 %v1933, %v832
  %v1935 = vmax.f32 %v1934, 0.0
  %v1936 = vld [vmem:[%s0 + $0xe] sm:$0x1]
  %v1937 = vld [vmem:[%s0 + $0x2e] sm:$0x1]
  %v1938 = vld [vmem:[%s0 + $0x4e] sm:$0x1]
  %v1939 = vld [vmem:[%s0 + $0x6e] sm:$0x1]
  %v1940 = vld [vmem:[%s0 + $0x8e] sm:$0x1]
  %v1941 = vld [vmem:[%s0 + $0xae] sm:$0x1]
  %v1942 = vld [vmem:[%s0 + $0xce] sm:$0x1]
  %v1943 = vld [vmem:[%s0 + $0xee] sm:$0x1]
  %v1944 = vld [vmem:[%s0 + $0xf] sm:$0x1]
  %v1945 = vld [vmem:[%s0 + $0x2f] sm:$0x1]
  %v1946 = vld [vmem:[%s0 + $0x4f] sm:$0x1]
  %v1947 = vld [vmem:[%s0 + $0x6f] sm:$0x1]
  %v1948 = vld [vmem:[%s0 + $0x8f] sm:$0x1]
  %v1949 = vld [vmem:[%s0 + $0xaf] sm:$0x1]
  %v1950 = vld [vmem:[%s0 + $0xcf] sm:$0x1]
  %v1951 = vld [vmem:[%s0 + $0xef] sm:$0x1]
  %1953 = vrot.lane.b32.xlu0 %v1458, 28
  %v1954 = vpop.permute.xlu0 %1953
  %1956 = vrot.lane.b32.xlu0 %v1708, 56
  %v1957 = vpop.permute.xlu0 %1956
  %1959 = vrot.lane.b32.xlu0 %v1733, 84
  %v1960 = vpop.permute.xlu0 %1959
  %v1970 = vrot.slane %v1937, 7
  %v1971 = vsel %vm480, %v1970, %v1936
  %v1972 = vrot.slane %v1938, 6
  %v1973 = vsel %vm483, %v1972, %v1971
  %v1974 = vrot.slane %v1939, 5
  %v1975 = vsel %vm486, %v1974, %v1973
  %v1976 = vrot.slane %v1940, 4
  %v1977 = vsel %vm489, %v1976, %v1975
  %v1978 = vrot.slane %v1941, 3
  %v1979 = vsel %vm492, %v1978, %v1977
  %v1980 = vrot.slane %v1942, 2
  %v1981 = vsel %vm495, %v1980, %v1979
  %v1982 = vrot.slane %v1943, 1
  %v1983 = vsel %vm498, %v1982, %v1981
  %1984 = vrot.lane.b32.xlu0 %v1983, 112
  %v1985 = vpop.permute.xlu0 %1984
  %v1995 = vrot.slane %v1945, 7
  %v1996 = vsel %vm480, %v1995, %v1944
  %v1997 = vrot.slane %v1946, 6
  %v1998 = vsel %vm483, %v1997, %v1996
  %v1999 = vrot.slane %v1947, 5
  %v2000 = vsel %vm486, %v1999, %v1998
  %v2001 = vrot.slane %v1948, 4
  %v2002 = vsel %vm489, %v2001, %v2000
  %v2003 = vrot.slane %v1949, 3
  %v2004 = vsel %vm492, %v2003, %v2002
  %v2005 = vrot.slane %v1950, 2
  %v2006 = vsel %vm495, %v2005, %v2004
  %v2007 = vrot.slane %v1951, 1
  %v2008 = vsel %vm498, %v2007, %v2006
  %2009 = vrot.lane.b32.xlu0 %v2008, 12
  %v2010 = vpop.permute.xlu0 %2009
  %v2012 = vsel %vm626, %v1433, %v1954
  %v2013 = vsel %vm628, %v2012, %v1957
  %v2014 = vsel %vm630, %v2013, %v1960
  %v2015 = vsel %vm632, %v2014, %v1985
  %v2016 = vsel %vm634, %v1985, %v2010
  %v2018 = vsel %vm636, %v2016, 0
  %2020 = vmatpush.msra.mxu0 %v86
  %2021 = vmatpush.msra.mxu0 %v82
  %2022 = vmatpush.msra.mxu0 %v78
  %2023 = vmatpush.msra.mxu0 %v74
  %2024 = vmatpush.msra.mxu0 %v70
  %2025 = vmatpush.msra.mxu0 %v66
  %2026 = vmatpush.msra.mxu0 %v62
  %2027 = vmatpush.msra.mxu0 %v58
  %2028 = vmatpush.msra.mxu0 %v54
  %2029 = vmatpush.msra.mxu0 %v50
  %2030 = vmatpush.msra.mxu0 %v46
  %2031 = vmatpush.msra.mxu0 %v42
  %2032 = vmatpush.msra.mxu0 %v38
  %2033 = vmatpush.msra.mxu0 %v34
  %2034 = vmatpush.msra.mxu0 %v30
  %2035 = vmatpush.msra.mxu0 %v26
  %2036 = vmatmul.f32.gmra.mxu0 %v2015
  %v2037 = vpop.f32.mrf.mxu0
  %v2038 = vadd.f32 0.0, %v2037
  %2039 = vdwg.mxu0
  %2040 = vmatpush.msra.mxu0 0.0
  %2041 = vmatpush.msra.mxu0 0.0
  %2042 = vmatpush.msra.mxu0 0.0
  %2043 = vmatpush.msra.mxu0 0.0
  %2044 = vmatpush.msra.mxu0 0.0
  %2045 = vmatpush.msra.mxu0 0.0
  %2046 = vmatpush.msra.mxu0 0.0
  %2047 = vmatpush.msra.mxu0 0.0
  %2048 = vmatpush.msra.mxu0 0.0
  %2049 = vmatpush.msra.mxu0 0.0
  %2050 = vmatpush.msra.mxu0 0.0
  %2051 = vmatpush.msra.mxu0 %v106
  %2052 = vmatpush.msra.mxu0 %v102
  %2053 = vmatpush.msra.mxu0 %v98
  %2054 = vmatpush.msra.mxu0 %v94
  %2055 = vmatpush.msra.mxu0 %v90
  %2056 = vmatmul.f32.gmra.mxu0 %v2018
  %v2057 = vpop.f32.mrf.mxu0
  %v2058 = vadd.f32 %v2038, %v2057
  %2059 = vdwg.mxu0
  %2060 = vmatpush.msra.mxu0 %v87
  %2061 = vmatpush.msra.mxu0 %v83
  %2062 = vmatpush.msra.mxu0 %v79
  %2063 = vmatpush.msra.mxu0 %v75
  %2064 = vmatpush.msra.mxu0 %v71
  %2065 = vmatpush.msra.mxu0 %v67
  %2066 = vmatpush.msra.mxu0 %v63
  %2067 = vmatpush.msra.mxu0 %v59
  %2068 = vmatpush.msra.mxu0 %v55
  %2069 = vmatpush.msra.mxu0 %v51
  %2070 = vmatpush.msra.mxu0 %v47
  %2071 = vmatpush.msra.mxu0 %v43
  %2072 = vmatpush.msra.mxu0 %v39
  %2073 = vmatpush.msra.mxu0 %v35
  %2074 = vmatpush.msra.mxu0 %v31
  %2075 = vmatpush.msra.mxu0 %v27
  %2076 = vmatmul.f32.gmra.mxu0 %v2015
  %v2077 = vpop.f32.mrf.mxu0
  %v2078 = vadd.f32 0.0, %v2077
  %2079 = vdwg.mxu0
  %2080 = vmatpush.msra.mxu0 0.0
  %2081 = vmatpush.msra.mxu0 0.0
  %2082 = vmatpush.msra.mxu0 0.0
  %2083 = vmatpush.msra.mxu0 0.0
  %2084 = vmatpush.msra.mxu0 0.0
  %2085 = vmatpush.msra.mxu0 0.0
  %2086 = vmatpush.msra.mxu0 0.0
  %2087 = vmatpush.msra.mxu0 0.0
  %2088 = vmatpush.msra.mxu0 0.0
  %2089 = vmatpush.msra.mxu0 0.0
  %2090 = vmatpush.msra.mxu0 0.0
  %2091 = vmatpush.msra.mxu0 %v107
  %2092 = vmatpush.msra.mxu0 %v103
  %2093 = vmatpush.msra.mxu0 %v99
  %2094 = vmatpush.msra.mxu0 %v95
  %2095 = vmatpush.msra.mxu0 %v91
  %2096 = vmatmul.f32.gmra.mxu0 %v2018
  %v2097 = vpop.f32.mrf.mxu0
  %v2098 = vadd.f32 %v2078, %v2097
  %2099 = vdwg.mxu0
  %2100 = vmatpush.msra.mxu0 %v88
  %2101 = vmatpush.msra.mxu0 %v84
  %2102 = vmatpush.msra.mxu0 %v80
  %2103 = vmatpush.msra.mxu0 %v76
  %2104 = vmatpush.msra.mxu0 %v72
  %2105 = vmatpush.msra.mxu0 %v68
  %2106 = vmatpush.msra.mxu0 %v64
  %2107 = vmatpush.msra.mxu0 %v60
  %2108 = vmatpush.msra.mxu0 %v56
  %2109 = vmatpush.msra.mxu0 %v52
  %2110 = vmatpush.msra.mxu0 %v48
  %2111 = vmatpush.msra.mxu0 %v44
  %2112 = vmatpush.msra.mxu0 %v40
  %2113 = vmatpush.msra.mxu0 %v36
  %2114 = vmatpush.msra.mxu0 %v32
  %2115 = vmatpush.msra.mxu0 %v28
  %2116 = vmatmul.f32.gmra.mxu0 %v2015
  %v2117 = vpop.f32.mrf.mxu0
  %v2118 = vadd.f32 0.0, %v2117
  %2119 = vdwg.mxu0
  %2120 = vmatpush.msra.mxu0 0.0
  %2121 = vmatpush.msra.mxu0 0.0
  %2122 = vmatpush.msra.mxu0 0.0
  %2123 = vmatpush.msra.mxu0 0.0
  %2124 = vmatpush.msra.mxu0 0.0
  %2125 = vmatpush.msra.mxu0 0.0
  %2126 = vmatpush.msra.mxu0 0.0
  %2127 = vmatpush.msra.mxu0 0.0
  %2128 = vmatpush.msra.mxu0 0.0
  %2129 = vmatpush.msra.mxu0 0.0
  %2130 = vmatpush.msra.mxu0 0.0
  %2131 = vmatpush.msra.mxu0 %v108
  %2132 = vmatpush.msra.mxu0 %v104
  %2133 = vmatpush.msra.mxu0 %v100
  %2134 = vmatpush.msra.mxu0 %v96
  %2135 = vmatpush.msra.mxu0 %v92
  %2136 = vmatmul.f32.gmra.mxu0 %v2018
  %v2137 = vpop.f32.mrf.mxu0
  %v2138 = vadd.f32 %v2118, %v2137
  %2139 = vdwg.mxu0
  %2140 = vmatpush.msra.mxu0 %v89
  %2141 = vmatpush.msra.mxu0 %v85
  %2142 = vmatpush.msra.mxu0 %v81
  %2143 = vmatpush.msra.mxu0 %v77
  %2144 = vmatpush.msra.mxu0 %v73
  %2145 = vmatpush.msra.mxu0 %v69
  %2146 = vmatpush.msra.mxu0 %v65
  %2147 = vmatpush.msra.mxu0 %v61
  %2148 = vmatpush.msra.mxu0 %v57
  %2149 = vmatpush.msra.mxu0 %v53
  %2150 = vmatpush.msra.mxu0 %v49
  %2151 = vmatpush.msra.mxu0 %v45
  %2152 = vmatpush.msra.mxu0 %v41
  %2153 = vmatpush.msra.mxu0 %v37
  %2154 = vmatpush.msra.mxu0 %v33
  %2155 = vmatpush.msra.mxu0 %v29
  %2156 = vmatmul.f32.gmra.mxu0 %v2015
  %v2157 = vpop.f32.mrf.mxu0
  %v2158 = vadd.f32 0.0, %v2157
  %2159 = vdwg.mxu0
  %2160 = vmatpush.msra.mxu0 0.0
  %2161 = vmatpush.msra.mxu0 0.0
  %2162 = vmatpush.msra.mxu0 0.0
  %2163 = vmatpush.msra.mxu0 0.0
  %2164 = vmatpush.msra.mxu0 0.0
  %2165 = vmatpush.msra.mxu0 0.0
  %2166 = vmatpush.msra.mxu0 0.0
  %2167 = vmatpush.msra.mxu0 0.0
  %2168 = vmatpush.msra.mxu0 0.0
  %2169 = vmatpush.msra.mxu0 0.0
  %2170 = vmatpush.msra.mxu0 0.0
  %2171 = vmatpush.msra.mxu0 %v109
  %2172 = vmatpush.msra.mxu0 %v105
  %2173 = vmatpush.msra.mxu0 %v101
  %2174 = vmatpush.msra.mxu0 %v97
  %2175 = vmatpush.msra.mxu0 %v93
  %2176 = vmatmul.f32.gmra.mxu0 %v2018
  %v2177 = vpop.f32.mrf.mxu0
  %v2178 = vadd.f32 %v2158, %v2177
  %2179 = vdwg.mxu0
  %2182 = vrot.lane.b32.xlu0 %v2058, 8
  %v2183 = vpop.permute.xlu0 %2182
  %2184 = vrot.lane.b32.xlu0 %v2098, 8
  %v2185 = vpop.permute.xlu0 %2184
  %v2186 = vsel %vm806, %v2183, %v2185
  %v2188 = vmax.f32 %v2058, %v2186
  %2191 = vrot.lane.b32.xlu0 %v2138, 8
  %v2192 = vpop.permute.xlu0 %2191
  %2193 = vrot.lane.b32.xlu0 %v2178, 8
  %v2194 = vpop.permute.xlu0 %2193
  %v2195 = vsel %vm806, %v2192, %v2194
  %v2198 = vmax.f32 %v2098, %v2192
  %v2199 = vmax.f32 %v2138, %v2195
  %2202 = vrot.lane.b32.xlu0 %v2198, 16
  %v2203 = vpop.permute.xlu0 %2202
  %2204 = vrot.lane.b32.xlu0 %v2199, 16
  %v2205 = vpop.permute.xlu0 %2204
  %v2206 = vsel %vm827, %v2203, %v2205
  %v2208 = vmax.f32 %v2188, %v2206
  %v2209 = vadd.f32 %v2208, %v832
  %v2210 = vmax.f32 %v2209, 0.0
  %v2211 = vld [vmem:[%s0 + $0x10] sm:$0x1]
  %v2212 = vld [vmem:[%s0 + $0x30] sm:$0x1]
  %v2213 = vld [vmem:[%s0 + $0x50] sm:$0x1]
  %v2214 = vld [vmem:[%s0 + $0x70] sm:$0x1]
  %v2215 = vld [vmem:[%s0 + $0x90] sm:$0x1]
  %v2216 = vld [vmem:[%s0 + $0xb0] sm:$0x1]
  %v2217 = vld [vmem:[%s0 + $0xd0] sm:$0x1]
  %v2218 = vld [vmem:[%s0 + $0xf0] sm:$0x1]
  %v2219 = vld [vmem:[%s0 + $0x11] sm:$0x1]
  %v2220 = vld [vmem:[%s0 + $0x31] sm:$0x1]
  %v2221 = vld [vmem:[%s0 + $0x51] sm:$0x1]
  %v2222 = vld [vmem:[%s0 + $0x71] sm:$0x1]
  %v2223 = vld [vmem:[%s0 + $0x91] sm:$0x1]
  %v2224 = vld [vmem:[%s0 + $0xb1] sm:$0x1]
  %v2225 = vld [vmem:[%s0 + $0xd1] sm:$0x1]
  %v2226 = vld [vmem:[%s0 + $0xf1] sm:$0x1]
  %2228 = vrot.lane.b32.xlu0 %v1733, 28
  %v2229 = vpop.permute.xlu0 %2228
  %2231 = vrot.lane.b32.xlu0 %v1983, 56
  %v2232 = vpop.permute.xlu0 %2231
  %2234 = vrot.lane.b32.xlu0 %v2008, 84
  %v2235 = vpop.permute.xlu0 %2234
  %v2245 = vrot.slane %v2212, 7
  %v2246 = vsel %vm480, %v2245, %v2211
  %v2247 = vrot.slane %v2213, 6
  %v2248 = vsel %vm483, %v2247, %v2246
  %v2249 = vrot.slane %v2214, 5
  %v2250 = vsel %vm486, %v2249, %v2248
  %v2251 = vrot.slane %v2215, 4
  %v2252 = vsel %vm489, %v2251, %v2250
  %v2253 = vrot.slane %v2216, 3
  %v2254 = vsel %vm492, %v2253, %v2252
  %v2255 = vrot.slane %v2217, 2
  %v2256 = vsel %vm495, %v2255, %v2254
  %v2257 = vrot.slane %v2218, 1
  %v2258 = vsel %vm498, %v2257, %v2256
  %2259 = vrot.lane.b32.xlu0 %v2258, 112
  %v2260 = vpop.permute.xlu0 %2259
  %v2270 = vrot.slane %v2220, 7
  %v2271 = vsel %vm480, %v2270, %v2219
  %v2272 = vrot.slane %v2221, 6
  %v2273 = vsel %vm483, %v2272, %v2271
  %v2274 = vrot.slane %v2222, 5
  %v2275 = vsel %vm486, %v2274, %v2273
  %v2276 = vrot.slane %v2223, 4
  %v2277 = vsel %vm489, %v2276, %v2275
  %v2278 = vrot.slane %v2224, 3
  %v2279 = vsel %vm492, %v2278, %v2277
  %v2280 = vrot.slane %v2225, 2
  %v2281 = vsel %vm495, %v2280, %v2279
  %v2282 = vrot.slane %v2226, 1
  %v2283 = vsel %vm498, %v2282, %v2281
  %2284 = vrot.lane.b32.xlu0 %v2283, 12
  %v2285 = vpop.permute.xlu0 %2284
  %v2287 = vsel %vm626, %v1708, %v2229
  %v2288 = vsel %vm628, %v2287, %v2232
  %v2289 = vsel %vm630, %v2288, %v2235
  %v2290 = vsel %vm632, %v2289, %v2260
  %v2291 = vsel %vm634, %v2260, %v2285
  %v2293 = vsel %vm636, %v2291, 0
  %2295 = vmatpush.msra.mxu0 %v86
  %2296 = vmatpush.msra.mxu0 %v82
  %2297 = vmatpush.msra.mxu0 %v78
  %2298 = vmatpush.msra.mxu0 %v74
  %2299 = vmatpush.msra.mxu0 %v70
  %2300 = vmatpush.msra.mxu0 %v66
  %2301 = vmatpush.msra.mxu0 %v62
  %2302 = vmatpush.msra.mxu0 %v58
  %2303 = vmatpush.msra.mxu0 %v54
  %2304 = vmatpush.msra.mxu0 %v50
  %2305 = vmatpush.msra.mxu0 %v46
  %2306 = vmatpush.msra.mxu0 %v42
  %2307 = vmatpush.msra.mxu0 %v38
  %2308 = vmatpush.msra.mxu0 %v34
  %2309 = vmatpush.msra.mxu0 %v30
  %2310 = vmatpush.msra.mxu0 %v26
  %2311 = vmatmul.f32.gmra.mxu0 %v2290
  %v2312 = vpop.f32.mrf.mxu0
  %v2313 = vadd.f32 0.0, %v2312
  %2314 = vdwg.mxu0
  %2315 = vmatpush.msra.mxu0 0.0
  %2316 = vmatpush.msra.mxu0 0.0
  %2317 = vmatpush.msra.mxu0 0.0
  %2318 = vmatpush.msra.mxu0 0.0
  %2319 = vmatpush.msra.mxu0 0.0
  %2320 = vmatpush.msra.mxu0 0.0
  %2321 = vmatpush.msra.mxu0 0.0
  %2322 = vmatpush.msra.mxu0 0.0
  %2323 = vmatpush.msra.mxu0 0.0
  %2324 = vmatpush.msra.mxu0 0.0
  %2325 = vmatpush.msra.mxu0 0.0
  %2326 = vmatpush.msra.mxu0 %v106
  %2327 = vmatpush.msra.mxu0 %v102
  %2328 = vmatpush.msra.mxu0 %v98
  %2329 = vmatpush.msra.mxu0 %v94
  %2330 = vmatpush.msra.mxu0 %v90
  %2331 = vmatmul.f32.gmra.mxu0 %v2293
  %v2332 = vpop.f32.mrf.mxu0
  %v2333 = vadd.f32 %v2313, %v2332
  %2334 = vdwg.mxu0
  %2335 = vmatpush.msra.mxu0 %v87
  %2336 = vmatpush.msra.mxu0 %v83
  %2337 = vmatpush.msra.mxu0 %v79
  %2338 = vmatpush.msra.mxu0 %v75
  %2339 = vmatpush.msra.mxu0 %v71
  %2340 = vmatpush.msra.mxu0 %v67
  %2341 = vmatpush.msra.mxu0 %v63
  %2342 = vmatpush.msra.mxu0 %v59
  %2343 = vmatpush.msra.mxu0 %v55
  %2344 = vmatpush.msra.mxu0 %v51
  %2345 = vmatpush.msra.mxu0 %v47
  %2346 = vmatpush.msra.mxu0 %v43
  %2347 = vmatpush.msra.mxu0 %v39
  %2348 = vmatpush.msra.mxu0 %v35
  %2349 = vmatpush.msra.mxu0 %v31
  %2350 = vmatpush.msra.mxu0 %v27
  %2351 = vmatmul.f32.gmra.mxu0 %v2290
  %v2352 = vpop.f32.mrf.mxu0
  %v2353 = vadd.f32 0.0, %v2352
  %2354 = vdwg.mxu0
  %2355 = vmatpush.msra.mxu0 0.0
  %2356 = vmatpush.msra.mxu0 0.0
  %2357 = vmatpush.msra.mxu0 0.0
  %2358 = vmatpush.msra.mxu0 0.0
  %2359 = vmatpush.msra.mxu0 0.0
  %2360 = vmatpush.msra.mxu0 0.0
  %2361 = vmatpush.msra.mxu0 0.0
  %2362 = vmatpush.msra.mxu0 0.0
  %2363 = vmatpush.msra.mxu0 0.0
  %2364 = vmatpush.msra.mxu0 0.0
  %2365 = vmatpush.msra.mxu0 0.0
  %2366 = vmatpush.msra.mxu0 %v107
  %2367 = vmatpush.msra.mxu0 %v103
  %2368 = vmatpush.msra.mxu0 %v99
  %2369 = vmatpush.msra.mxu0 %v95
  %2370 = vmatpush.msra.mxu0 %v91
  %2371 = vmatmul.f32.gmra.mxu0 %v2293
  %v2372 = vpop.f32.mrf.mxu0
  %v2373 = vadd.f32 %v2353, %v2372
  %2374 = vdwg.mxu0
  %2375 = vmatpush.msra.mxu0 %v88
  %2376 = vmatpush.msra.mxu0 %v84
  %2377 = vmatpush.msra.mxu0 %v80
  %2378 = vmatpush.msra.mxu0 %v76
  %2379 = vmatpush.msra.mxu0 %v72
  %2380 = vmatpush.msra.mxu0 %v68
  %2381 = vmatpush.msra.mxu0 %v64
  %2382 = vmatpush.msra.mxu0 %v60
  %2383 = vmatpush.msra.mxu0 %v56
  %2384 = vmatpush.msra.mxu0 %v52
  %2385 = vmatpush.msra.mxu0 %v48
  %2386 = vmatpush.msra.mxu0 %v44
  %2387 = vmatpush.msra.mxu0 %v40
  %2388 = vmatpush.msra.mxu0 %v36
  %2389 = vmatpush.msra.mxu0 %v32
  %2390 = vmatpush.msra.mxu0 %v28
  %2391 = vmatmul.f32.gmra.mxu0 %v2290
  %v2392 = vpop.f32.mrf.mxu0
  %v2393 = vadd.f32 0.0, %v2392
  %2394 = vdwg.mxu0
  %2395 = vmatpush.msra.mxu0 0.0
  %2396 = vmatpush.msra.mxu0 0.0
  %2397 = vmatpush.msra.mxu0 0.0
  %2398 = vmatpush.msra.mxu0 0.0
  %2399 = vmatpush.msra.mxu0 0.0
  %2400 = vmatpush.msra.mxu0 0.0
  %2401 = vmatpush.msra.mxu0 0.0
  %2402 = vmatpush.msra.mxu0 0.0
  %2403 = vmatpush.msra.mxu0 0.0
  %2404 = vmatpush.msra.mxu0 0.0
  %2405 = vmatpush.msra.mxu0 0.0
  %2406 = vmatpush.msra.mxu0 %v108
  %2407 = vmatpush.msra.mxu0 %v104
  %2408 = vmatpush.msra.mxu0 %v100
  %2409 = vmatpush.msra.mxu0 %v96
  %2410 = vmatpush.msra.mxu0 %v92
  %2411 = vmatmul.f32.gmra.mxu0 %v2293
  %v2412 = vpop.f32.mrf.mxu0
  %v2413 = vadd.f32 %v2393, %v2412
  %2414 = vdwg.mxu0
  %2415 = vmatpush.msra.mxu0 %v89
  %2416 = vmatpush.msra.mxu0 %v85
  %2417 = vmatpush.msra.mxu0 %v81
  %2418 = vmatpush.msra.mxu0 %v77
  %2419 = vmatpush.msra.mxu0 %v73
  %2420 = vmatpush.msra.mxu0 %v69
  %2421 = vmatpush.msra.mxu0 %v65
  %2422 = vmatpush.msra.mxu0 %v61
  %2423 = vmatpush.msra.mxu0 %v57
  %2424 = vmatpush.msra.mxu0 %v53
  %2425 = vmatpush.msra.mxu0 %v49
  %2426 = vmatpush.msra.mxu0 %v45
  %2427 = vmatpush.msra.mxu0 %v41
  %2428 = vmatpush.msra.mxu0 %v37
  %2429 = vmatpush.msra.mxu0 %v33
  %2430 = vmatpush.msra.mxu0 %v29
  %2431 = vmatmul.f32.gmra.mxu0 %v2290
  %v2432 = vpop.f32.mrf.mxu0
  %v2433 = vadd.f32 0.0, %v2432
  %2434 = vdwg.mxu0
  %2435 = vmatpush.msra.mxu0 0.0
  %2436 = vmatpush.msra.mxu0 0.0
  %2437 = vmatpush.msra.mxu0 0.0
  %2438 = vmatpush.msra.mxu0 0.0
  %2439 = vmatpush.msra.mxu0 0.0
  %2440 = vmatpush.msra.mxu0 0.0
  %2441 = vmatpush.msra.mxu0 0.0
  %2442 = vmatpush.msra.mxu0 0.0
  %2443 = vmatpush.msra.mxu0 0.0
  %2444 = vmatpush.msra.mxu0 0.0
  %2445 = vmatpush.msra.mxu0 0.0
  %2446 = vmatpush.msra.mxu0 %v109
  %2447 = vmatpush.msra.mxu0 %v105
  %2448 = vmatpush.msra.mxu0 %v101
  %2449 = vmatpush.msra.mxu0 %v97
  %2450 = vmatpush.msra.mxu0 %v93
  %2451 = vmatmul.f32.gmra.mxu0 %v2293
  %v2452 = vpop.f32.mrf.mxu0
  %v2453 = vadd.f32 %v2433, %v2452
  %2454 = vdwg.mxu0
  %2457 = vrot.lane.b32.xlu0 %v2333, 8
  %v2458 = vpop.permute.xlu0 %2457
  %2459 = vrot.lane.b32.xlu0 %v2373, 8
  %v2460 = vpop.permute.xlu0 %2459
  %v2461 = vsel %vm806, %v2458, %v2460
  %v2463 = vmax.f32 %v2333, %v2461
  %2466 = vrot.lane.b32.xlu0 %v2413, 8
  %v2467 = vpop.permute.xlu0 %2466
  %2468 = vrot.lane.b32.xlu0 %v2453, 8
  %v2469 = vpop.permute.xlu0 %2468
  %v2470 = vsel %vm806, %v2467, %v2469
  %v2473 = vmax.f32 %v2373, %v2467
  %v2474 = vmax.f32 %v2413, %v2470
  %2477 = vrot.lane.b32.xlu0 %v2473, 16
  %v2478 = vpop.permute.xlu0 %2477
  %2479 = vrot.lane.b32.xlu0 %v2474, 16
  %v2480 = vpop.permute.xlu0 %2479
  %v2481 = vsel %vm827, %v2478, %v2480
  %v2483 = vmax.f32 %v2463, %v2481
  %v2484 = vadd.f32 %v2483, %v832
  %v2485 = vmax.f32 %v2484, 0.0
  %v2486 = vld [vmem:[%s0 + $0x12] sm:$0x1]
  %v2487 = vld [vmem:[%s0 + $0x32] sm:$0x1]
  %v2488 = vld [vmem:[%s0 + $0x52] sm:$0x1]
  %v2489 = vld [vmem:[%s0 + $0x72] sm:$0x1]
  %v2490 = vld [vmem:[%s0 + $0x92] sm:$0x1]
  %v2491 = vld [vmem:[%s0 + $0xb2] sm:$0x1]
  %v2492 = vld [vmem:[%s0 + $0xd2] sm:$0x1]
  %v2493 = vld [vmem:[%s0 + $0xf2] sm:$0x1]
  %v2494 = vld [vmem:[%s0 + $0x13] sm:$0x1]
  %v2495 = vld [vmem:[%s0 + $0x33] sm:$0x1]
  %v2496 = vld [vmem:[%s0 + $0x53] sm:$0x1]
  %v2497 = vld [vmem:[%s0 + $0x73] sm:$0x1]
  %v2498 = vld [vmem:[%s0 + $0x93] sm:$0x1]
  %v2499 = vld [vmem:[%s0 + $0xb3] sm:$0x1]
  %v2500 = vld [vmem:[%s0 + $0xd3] sm:$0x1]
  %v2501 = vld [vmem:[%s0 + $0xf3] sm:$0x1]
  %2503 = vrot.lane.b32.xlu0 %v2008, 28
  %v2504 = vpop.permute.xlu0 %2503
  %2506 = vrot.lane.b32.xlu0 %v2258, 56
  %v2507 = vpop.permute.xlu0 %2506
  %2509 = vrot.lane.b32.xlu0 %v2283, 84
  %v2510 = vpop.permute.xlu0 %2509
  %v2520 = vrot.slane %v2487, 7
  %v2521 = vsel %vm480, %v2520, %v2486
  %v2522 = vrot.slane %v2488, 6
  %v2523 = vsel %vm483, %v2522, %v2521
  %v2524 = vrot.slane %v2489, 5
  %v2525 = vsel %vm486, %v2524, %v2523
  %v2526 = vrot.slane %v2490, 4
  %v2527 = vsel %vm489, %v2526, %v2525
  %v2528 = vrot.slane %v2491, 3
  %v2529 = vsel %vm492, %v2528, %v2527
  %v2530 = vrot.slane %v2492, 2
  %v2531 = vsel %vm495, %v2530, %v2529
  %v2532 = vrot.slane %v2493, 1
  %v2533 = vsel %vm498, %v2532, %v2531
  %2534 = vrot.lane.b32.xlu0 %v2533, 112
  %v2535 = vpop.permute.xlu0 %2534
  %v2545 = vrot.slane %v2495, 7
  %v2546 = vsel %vm480, %v2545, %v2494
  %v2547 = vrot.slane %v2496, 6
  %v2548 = vsel %vm483, %v2547, %v2546
  %v2549 = vrot.slane %v2497, 5
  %v2550 = vsel %vm486, %v2549, %v2548
  %v2551 = vrot.slane %v2498, 4
  %v2552 = vsel %vm489, %v2551, %v2550
  %v2553 = vrot.slane %v2499, 3
  %v2554 = vsel %vm492, %v2553, %v2552
  %v2555 = vrot.slane %v2500, 2
  %v2556 = vsel %vm495, %v2555, %v2554
  %v2557 = vrot.slane %v2501, 1
  %v2558 = vsel %vm498, %v2557, %v2556
  %2559 = vrot.lane.b32.xlu0 %v2558, 12
  %v2560 = vpop.permute.xlu0 %2559
  %v2562 = vsel %vm626, %v1983, %v2504
  %v2563 = vsel %vm628, %v2562, %v2507
  %v2564 = vsel %vm630, %v2563, %v2510
  %v2565 = vsel %vm632, %v2564, %v2535
  %v2566 = vsel %vm634, %v2535, %v2560
  %v2568 = vsel %vm636, %v2566, 0
  %2570 = vmatpush.msra.mxu0 %v86
  %2571 = vmatpush.msra.mxu0 %v82
  %2572 = vmatpush.msra.mxu0 %v78
  %2573 = vmatpush.msra.mxu0 %v74
  %2574 = vmatpush.msra.mxu0 %v70
  %2575 = vmatpush.msra.mxu0 %v66
  %2576 = vmatpush.msra.mxu0 %v62
  %2577 = vmatpush.msra.mxu0 %v58
  %2578 = vmatpush.msra.mxu0 %v54
  %2579 = vmatpush.msra.mxu0 %v50
  %2580 = vmatpush.msra.mxu0 %v46
  %2581 = vmatpush.msra.mxu0 %v42
  %2582 = vmatpush.msra.mxu0 %v38
  %2583 = vmatpush.msra.mxu0 %v34
  %2584 = vmatpush.msra.mxu0 %v30
  %2585 = vmatpush.msra.mxu0 %v26
  %2586 = vmatmul.f32.gmra.mxu0 %v2565
  %v2587 = vpop.f32.mrf.mxu0
  %v2588 = vadd.f32 0.0, %v2587
  %2589 = vdwg.mxu0
  %2590 = vmatpush.msra.mxu0 0.0
  %2591 = vmatpush.msra.mxu0 0.0
  %2592 = vmatpush.msra.mxu0 0.0
  %2593 = vmatpush.msra.mxu0 0.0
  %2594 = vmatpush.msra.mxu0 0.0
  %2595 = vmatpush.msra.mxu0 0.0
  %2596 = vmatpush.msra.mxu0 0.0
  %2597 = vmatpush.msra.mxu0 0.0
  %2598 = vmatpush.msra.mxu0 0.0
  %2599 = vmatpush.msra.mxu0 0.0
  %2600 = vmatpush.msra.mxu0 0.0
  %2601 = vmatpush.msra.mxu0 %v106
  %2602 = vmatpush.msra.mxu0 %v102
  %2603 = vmatpush.msra.mxu0 %v98
  %2604 = vmatpush.msra.mxu0 %v94
  %2605 = vmatpush.msra.mxu0 %v90
  %2606 = vmatmul.f32.gmra.mxu0 %v2568
  %v2607 = vpop.f32.mrf.mxu0
  %v2608 = vadd.f32 %v2588, %v2607
  %2609 = vdwg.mxu0
  %2610 = vmatpush.msra.mxu0 %v87
  %2611 = vmatpush.msra.mxu0 %v83
  %2612 = vmatpush.msra.mxu0 %v79
  %2613 = vmatpush.msra.mxu0 %v75
  %2614 = vmatpush.msra.mxu0 %v71
  %2615 = vmatpush.msra.mxu0 %v67
  %2616 = vmatpush.msra.mxu0 %v63
  %2617 = vmatpush.msra.mxu0 %v59
  %2618 = vmatpush.msra.mxu0 %v55
  %2619 = vmatpush.msra.mxu0 %v51
  %2620 = vmatpush.msra.mxu0 %v47
  %2621 = vmatpush.msra.mxu0 %v43
  %2622 = vmatpush.msra.mxu0 %v39
  %2623 = vmatpush.msra.mxu0 %v35
  %2624 = vmatpush.msra.mxu0 %v31
  %2625 = vmatpush.msra.mxu0 %v27
  %2626 = vmatmul.f32.gmra.mxu0 %v2565
  %v2627 = vpop.f32.mrf.mxu0
  %v2628 = vadd.f32 0.0, %v2627
  %2629 = vdwg.mxu0
  %2630 = vmatpush.msra.mxu0 0.0
  %2631 = vmatpush.msra.mxu0 0.0
  %2632 = vmatpush.msra.mxu0 0.0
  %2633 = vmatpush.msra.mxu0 0.0
  %2634 = vmatpush.msra.mxu0 0.0
  %2635 = vmatpush.msra.mxu0 0.0
  %2636 = vmatpush.msra.mxu0 0.0
  %2637 = vmatpush.msra.mxu0 0.0
  %2638 = vmatpush.msra.mxu0 0.0
  %2639 = vmatpush.msra.mxu0 0.0
  %2640 = vmatpush.msra.mxu0 0.0
  %2641 = vmatpush.msra.mxu0 %v107
  %2642 = vmatpush.msra.mxu0 %v103
  %2643 = vmatpush.msra.mxu0 %v99
  %2644 = vmatpush.msra.mxu0 %v95
  %2645 = vmatpush.msra.mxu0 %v91
  %2646 = vmatmul.f32.gmra.mxu0 %v2568
  %v2647 = vpop.f32.mrf.mxu0
  %v2648 = vadd.f32 %v2628, %v2647
  %2649 = vdwg.mxu0
  %2650 = vmatpush.msra.mxu0 %v88
  %2651 = vmatpush.msra.mxu0 %v84
  %2652 = vmatpush.msra.mxu0 %v80
  %2653 = vmatpush.msra.mxu0 %v76
  %2654 = vmatpush.msra.mxu0 %v72
  %2655 = vmatpush.msra.mxu0 %v68
  %2656 = vmatpush.msra.mxu0 %v64
  %2657 = vmatpush.msra.mxu0 %v60
  %2658 = vmatpush.msra.mxu0 %v56
  %2659 = vmatpush.msra.mxu0 %v52
  %2660 = vmatpush.msra.mxu0 %v48
  %2661 = vmatpush.msra.mxu0 %v44
  %2662 = vmatpush.msra.mxu0 %v40
  %2663 = vmatpush.msra.mxu0 %v36
  %2664 = vmatpush.msra.mxu0 %v32
  %2665 = vmatpush.msra.mxu0 %v28
  %2666 = vmatmul.f32.gmra.mxu0 %v2565
  %v2667 = vpop.f32.mrf.mxu0
  %v2668 = vadd.f32 0.0, %v2667
  %2669 = vdwg.mxu0
  %2670 = vmatpush.msra.mxu0 0.0
  %2671 = vmatpush.msra.mxu0 0.0
  %2672 = vmatpush.msra.mxu0 0.0
  %2673 = vmatpush.msra.mxu0 0.0
  %2674 = vmatpush.msra.mxu0 0.0
  %2675 = vmatpush.msra.mxu0 0.0
  %2676 = vmatpush.msra.mxu0 0.0
  %2677 = vmatpush.msra.mxu0 0.0
  %2678 = vmatpush.msra.mxu0 0.0
  %2679 = vmatpush.msra.mxu0 0.0
  %2680 = vmatpush.msra.mxu0 0.0
  %2681 = vmatpush.msra.mxu0 %v108
  %2682 = vmatpush.msra.mxu0 %v104
  %2683 = vmatpush.msra.mxu0 %v100
  %2684 = vmatpush.msra.mxu0 %v96
  %2685 = vmatpush.msra.mxu0 %v92
  %2686 = vmatmul.f32.gmra.mxu0 %v2568
  %v2687 = vpop.f32.mrf.mxu0
  %v2688 = vadd.f32 %v2668, %v2687
  %2689 = vdwg.mxu0
  %2690 = vmatpush.msra.mxu0 %v89
  %2691 = vmatpush.msra.mxu0 %v85
  %2692 = vmatpush.msra.mxu0 %v81
  %2693 = vmatpush.msra.mxu0 %v77
  %2694 = vmatpush.msra.mxu0 %v73
  %2695 = vmatpush.msra.mxu0 %v69
  %2696 = vmatpush.msra.mxu0 %v65
  %2697 = vmatpush.msra.mxu0 %v61
  %2698 = vmatpush.msra.mxu0 %v57
  %2699 = vmatpush.msra.mxu0 %v53
  %2700 = vmatpush.msra.mxu0 %v49
  %2701 = vmatpush.msra.mxu0 %v45
  %2702 = vmatpush.msra.mxu0 %v41
  %2703 = vmatpush.msra.mxu0 %v37
  %2704 = vmatpush.msra.mxu0 %v33
  %2705 = vmatpush.msra.mxu0 %v29
  %2706 = vmatmul.f32.gmra.mxu0 %v2565
  %v2707 = vpop.f32.mrf.mxu0
  %v2708 = vadd.f32 0.0, %v2707
  %2709 = vdwg.mxu0
  %2710 = vmatpush.msra.mxu0 0.0
  %2711 = vmatpush.msra.mxu0 0.0
  %2712 = vmatpush.msra.mxu0 0.0
  %2713 = vmatpush.msra.mxu0 0.0
  %2714 = vmatpush.msra.mxu0 0.0
  %2715 = vmatpush.msra.mxu0 0.0
  %2716 = vmatpush.msra.mxu0 0.0
  %2717 = vmatpush.msra.mxu0 0.0
  %2718 = vmatpush.msra.mxu0 0.0
  %2719 = vmatpush.msra.mxu0 0.0
  %2720 = vmatpush.msra.mxu0 0.0
  %2721 = vmatpush.msra.mxu0 %v109
  %2722 = vmatpush.msra.mxu0 %v105
  %2723 = vmatpush.msra.mxu0 %v101
  %2724 = vmatpush.msra.mxu0 %v97
  %2725 = vmatpush.msra.mxu0 %v93
  %2726 = vmatmul.f32.gmra.mxu0 %v2568
  %v2727 = vpop.f32.mrf.mxu0
  %v2728 = vadd.f32 %v2708, %v2727
  %2729 = vdwg.mxu0
  %2732 = vrot.lane.b32.xlu0 %v2608, 8
  %v2733 = vpop.permute.xlu0 %2732
  %2734 = vrot.lane.b32.xlu0 %v2648, 8
  %v2735 = vpop.permute.xlu0 %2734
  %v2736 = vsel %vm806, %v2733, %v2735
  %v2738 = vmax.f32 %v2608, %v2736
  %2741 = vrot.lane.b32.xlu0 %v2688, 8
  %v2742 = vpop.permute.xlu0 %2741
  %2743 = vrot.lane.b32.xlu0 %v2728, 8
  %v2744 = vpop.permute.xlu0 %2743
  %v2745 = vsel %vm806, %v2742, %v2744
  %v2748 = vmax.f32 %v2648, %v2742
  %v2749 = vmax.f32 %v2688, %v2745
  %2752 = vrot.lane.b32.xlu0 %v2748, 16
  %v2753 = vpop.permute.xlu0 %2752
  %2754 = vrot.lane.b32.xlu0 %v2749, 16
  %v2755 = vpop.permute.xlu0 %2754
  %v2756 = vsel %vm827, %v2753, %v2755
  %v2758 = vmax.f32 %v2738, %v2756
  %v2759 = vadd.f32 %v2758, %v832
  %v2760 = vmax.f32 %v2759, 0.0
  %v2761 = vld [vmem:[%s0 + $0x14] sm:$0x1]
  %v2762 = vld [vmem:[%s0 + $0x34] sm:$0x1]
  %v2763 = vld [vmem:[%s0 + $0x54] sm:$0x1]
  %v2764 = vld [vmem:[%s0 + $0x74] sm:$0x1]
  %v2765 = vld [vmem:[%s0 + $0x94] sm:$0x1]
  %v2766 = vld [vmem:[%s0 + $0xb4] sm:$0x1]
  %v2767 = vld [vmem:[%s0 + $0xd4] sm:$0x1]
  %v2768 = vld [vmem:[%s0 + $0xf4] sm:$0x1]
  %v2769 = vld [vmem:[%s0 + $0x15] sm:$0x1]
  %v2770 = vld [vmem:[%s0 + $0x35] sm:$0x1]
  %v2771 = vld [vmem:[%s0 + $0x55] sm:$0x1]
  %v2772 = vld [vmem:[%s0 + $0x75] sm:$0x1]
  %v2773 = vld [vmem:[%s0 + $0x95] sm:$0x1]
  %v2774 = vld [vmem:[%s0 + $0xb5] sm:$0x1]
  %v2775 = vld [vmem:[%s0 + $0xd5] sm:$0x1]
  %v2776 = vld [vmem:[%s0 + $0xf5] sm:$0x1]
  %2778 = vrot.lane.b32.xlu0 %v2283, 28
  %v2779 = vpop.permute.xlu0 %2778
  %2781 = vrot.lane.b32.xlu0 %v2533, 56
  %v2782 = vpop.permute.xlu0 %2781
  %2784 = vrot.lane.b32.xlu0 %v2558, 84
  %v2785 = vpop.permute.xlu0 %2784
  %v2795 = vrot.slane %v2762, 7
  %v2796 = vsel %vm480, %v2795, %v2761
  %v2797 = vrot.slane %v2763, 6
  %v2798 = vsel %vm483, %v2797, %v2796
  %v2799 = vrot.slane %v2764, 5
  %v2800 = vsel %vm486, %v2799, %v2798
  %v2801 = vrot.slane %v2765, 4
  %v2802 = vsel %vm489, %v2801, %v2800
  %v2803 = vrot.slane %v2766, 3
  %v2804 = vsel %vm492, %v2803, %v2802
  %v2805 = vrot.slane %v2767, 2
  %v2806 = vsel %vm495, %v2805, %v2804
  %v2807 = vrot.slane %v2768, 1
  %v2808 = vsel %vm498, %v2807, %v2806
  %2809 = vrot.lane.b32.xlu0 %v2808, 112
  %v2810 = vpop.permute.xlu0 %2809
  %v2820 = vrot.slane %v2770, 7
  %v2821 = vsel %vm480, %v2820, %v2769
  %v2822 = vrot.slane %v2771, 6
  %v2823 = vsel %vm483, %v2822, %v2821
  %v2824 = vrot.slane %v2772, 5
  %v2825 = vsel %vm486, %v2824, %v2823
  %v2826 = vrot.slane %v2773, 4
  %v2827 = vsel %vm489, %v2826, %v2825
  %v2828 = vrot.slane %v2774, 3
  %v2829 = vsel %vm492, %v2828, %v2827
  %v2830 = vrot.slane %v2775, 2
  %v2831 = vsel %vm495, %v2830, %v2829
  %v2832 = vrot.slane %v2776, 1
  %v2833 = vsel %vm498, %v2832, %v2831
  %2834 = vrot.lane.b32.xlu0 %v2833, 12
  %v2835 = vpop.permute.xlu0 %2834
  %v2837 = vsel %vm626, %v2258, %v2779
  %v2838 = vsel %vm628, %v2837, %v2782
  %v2839 = vsel %vm630, %v2838, %v2785
  %v2840 = vsel %vm632, %v2839, %v2810
  %v2841 = vsel %vm634, %v2810, %v2835
  %v2843 = vsel %vm636, %v2841, 0
  %2845 = vmatpush.msra.mxu0 %v86
  %2846 = vmatpush.msra.mxu0 %v82
  %2847 = vmatpush.msra.mxu0 %v78
  %2848 = vmatpush.msra.mxu0 %v74
  %2849 = vmatpush.msra.mxu0 %v70
  %2850 = vmatpush.msra.mxu0 %v66
  %2851 = vmatpush.msra.mxu0 %v62
  %2852 = vmatpush.msra.mxu0 %v58
  %2853 = vmatpush.msra.mxu0 %v54
  %2854 = vmatpush.msra.mxu0 %v50
  %2855 = vmatpush.msra.mxu0 %v46
  %2856 = vmatpush.msra.mxu0 %v42
  %2857 = vmatpush.msra.mxu0 %v38
  %2858 = vmatpush.msra.mxu0 %v34
  %2859 = vmatpush.msra.mxu0 %v30
  %2860 = vmatpush.msra.mxu0 %v26
  %2861 = vmatmul.f32.gmra.mxu0 %v2840
  %v2862 = vpop.f32.mrf.mxu0
  %v2863 = vadd.f32 0.0, %v2862
  %2864 = vdwg.mxu0
  %2865 = vmatpush.msra.mxu0 0.0
  %2866 = vmatpush.msra.mxu0 0.0
  %2867 = vmatpush.msra.mxu0 0.0
  %2868 = vmatpush.msra.mxu0 0.0
  %2869 = vmatpush.msra.mxu0 0.0
  %2870 = vmatpush.msra.mxu0 0.0
  %2871 = vmatpush.msra.mxu0 0.0
  %2872 = vmatpush.msra.mxu0 0.0
  %2873 = vmatpush.msra.mxu0 0.0
  %2874 = vmatpush.msra.mxu0 0.0
  %2875 = vmatpush.msra.mxu0 0.0
  %2876 = vmatpush.msra.mxu0 %v106
  %2877 = vmatpush.msra.mxu0 %v102
  %2878 = vmatpush.msra.mxu0 %v98
  %2879 = vmatpush.msra.mxu0 %v94
  %2880 = vmatpush.msra.mxu0 %v90
  %2881 = vmatmul.f32.gmra.mxu0 %v2843
  %v2882 = vpop.f32.mrf.mxu0
  %v2883 = vadd.f32 %v2863, %v2882
  %2884 = vdwg.mxu0
  %2885 = vmatpush.msra.mxu0 %v87
  %2886 = vmatpush.msra.mxu0 %v83
  %2887 = vmatpush.msra.mxu0 %v79
  %2888 = vmatpush.msra.mxu0 %v75
  %2889 = vmatpush.msra.mxu0 %v71
  %2890 = vmatpush.msra.mxu0 %v67
  %2891 = vmatpush.msra.mxu0 %v63
  %2892 = vmatpush.msra.mxu0 %v59
  %2893 = vmatpush.msra.mxu0 %v55
  %2894 = vmatpush.msra.mxu0 %v51
  %2895 = vmatpush.msra.mxu0 %v47
  %2896 = vmatpush.msra.mxu0 %v43
  %2897 = vmatpush.msra.mxu0 %v39
  %2898 = vmatpush.msra.mxu0 %v35
  %2899 = vmatpush.msra.mxu0 %v31
  %2900 = vmatpush.msra.mxu0 %v27
  %2901 = vmatmul.f32.gmra.mxu0 %v2840
  %v2902 = vpop.f32.mrf.mxu0
  %v2903 = vadd.f32 0.0, %v2902
  %2904 = vdwg.mxu0
  %2905 = vmatpush.msra.mxu0 0.0
  %2906 = vmatpush.msra.mxu0 0.0
  %2907 = vmatpush.msra.mxu0 0.0
  %2908 = vmatpush.msra.mxu0 0.0
  %2909 = vmatpush.msra.mxu0 0.0
  %2910 = vmatpush.msra.mxu0 0.0
  %2911 = vmatpush.msra.mxu0 0.0
  %2912 = vmatpush.msra.mxu0 0.0
  %2913 = vmatpush.msra.mxu0 0.0
  %2914 = vmatpush.msra.mxu0 0.0
  %2915 = vmatpush.msra.mxu0 0.0
  %2916 = vmatpush.msra.mxu0 %v107
  %2917 = vmatpush.msra.mxu0 %v103
  %2918 = vmatpush.msra.mxu0 %v99
  %2919 = vmatpush.msra.mxu0 %v95
  %2920 = vmatpush.msra.mxu0 %v91
  %2921 = vmatmul.f32.gmra.mxu0 %v2843
  %v2922 = vpop.f32.mrf.mxu0
  %v2923 = vadd.f32 %v2903, %v2922
  %2924 = vdwg.mxu0
  %2925 = vmatpush.msra.mxu0 %v88
  %2926 = vmatpush.msra.mxu0 %v84
  %2927 = vmatpush.msra.mxu0 %v80
  %2928 = vmatpush.msra.mxu0 %v76
  %2929 = vmatpush.msra.mxu0 %v72
  %2930 = vmatpush.msra.mxu0 %v68
  %2931 = vmatpush.msra.mxu0 %v64
  %2932 = vmatpush.msra.mxu0 %v60
  %2933 = vmatpush.msra.mxu0 %v56
  %2934 = vmatpush.msra.mxu0 %v52
  %2935 = vmatpush.msra.mxu0 %v48
  %2936 = vmatpush.msra.mxu0 %v44
  %2937 = vmatpush.msra.mxu0 %v40
  %2938 = vmatpush.msra.mxu0 %v36
  %2939 = vmatpush.msra.mxu0 %v32
  %2940 = vmatpush.msra.mxu0 %v28
  %2941 = vmatmul.f32.gmra.mxu0 %v2840
  %v2942 = vpop.f32.mrf.mxu0
  %v2943 = vadd.f32 0.0, %v2942
  %2944 = vdwg.mxu0
  %2945 = vmatpush.msra.mxu0 0.0
  %2946 = vmatpush.msra.mxu0 0.0
  %2947 = vmatpush.msra.mxu0 0.0
  %2948 = vmatpush.msra.mxu0 0.0
  %2949 = vmatpush.msra.mxu0 0.0
  %2950 = vmatpush.msra.mxu0 0.0
  %2951 = vmatpush.msra.mxu0 0.0
  %2952 = vmatpush.msra.mxu0 0.0
  %2953 = vmatpush.msra.mxu0 0.0
  %2954 = vmatpush.msra.mxu0 0.0
  %2955 = vmatpush.msra.mxu0 0.0
  %2956 = vmatpush.msra.mxu0 %v108
  %2957 = vmatpush.msra.mxu0 %v104
  %2958 = vmatpush.msra.mxu0 %v100
  %2959 = vmatpush.msra.mxu0 %v96
  %2960 = vmatpush.msra.mxu0 %v92
  %2961 = vmatmul.f32.gmra.mxu0 %v2843
  %v2962 = vpop.f32.mrf.mxu0
  %v2963 = vadd.f32 %v2943, %v2962
  %2964 = vdwg.mxu0
  %2965 = vmatpush.msra.mxu0 %v89
  %2966 = vmatpush.msra.mxu0 %v85
  %2967 = vmatpush.msra.mxu0 %v81
  %2968 = vmatpush.msra.mxu0 %v77
  %2969 = vmatpush.msra.mxu0 %v73
  %2970 = vmatpush.msra.mxu0 %v69
  %2971 = vmatpush.msra.mxu0 %v65
  %2972 = vmatpush.msra.mxu0 %v61
  %2973 = vmatpush.msra.mxu0 %v57
  %2974 = vmatpush.msra.mxu0 %v53
  %2975 = vmatpush.msra.mxu0 %v49
  %2976 = vmatpush.msra.mxu0 %v45
  %2977 = vmatpush.msra.mxu0 %v41
  %2978 = vmatpush.msra.mxu0 %v37
  %2979 = vmatpush.msra.mxu0 %v33
  %2980 = vmatpush.msra.mxu0 %v29
  %2981 = vmatmul.f32.gmra.mxu0 %v2840
  %v2982 = vpop.f32.mrf.mxu0
  %v2983 = vadd.f32 0.0, %v2982
  %2984 = vdwg.mxu0
  %2985 = vmatpush.msra.mxu0 0.0
  %2986 = vmatpush.msra.mxu0 0.0
  %2987 = vmatpush.msra.mxu0 0.0
  %2988 = vmatpush.msra.mxu0 0.0
  %2989 = vmatpush.msra.mxu0 0.0
  %2990 = vmatpush.msra.mxu0 0.0
  %2991 = vmatpush.msra.mxu0 0.0
  %2992 = vmatpush.msra.mxu0 0.0
  %2993 = vmatpush.msra.mxu0 0.0
  %2994 = vmatpush.msra.mxu0 0.0
  %2995 = vmatpush.msra.mxu0 0.0
  %2996 = vmatpush.msra.mxu0 %v109
  %2997 = vmatpush.msra.mxu0 %v105
  %2998 = vmatpush.msra.mxu0 %v101
  %2999 = vmatpush.msra.mxu0 %v97
  %3000 = vmatpush.msra.mxu0 %v93
  %3001 = vmatmul.f32.gmra.mxu0 %v2843
  %v3002 = vpop.f32.mrf.mxu0
  %v3003 = vadd.f32 %v2983, %v3002
  %3004 = vdwg.mxu0
  %3007 = vrot.lane.b32.xlu0 %v2883, 8
  %v3008 = vpop.permute.xlu0 %3007
  %3009 = vrot.lane.b32.xlu0 %v2923, 8
  %v3010 = vpop.permute.xlu0 %3009
  %v3011 = vsel %vm806, %v3008, %v3010
  %v3013 = vmax.f32 %v2883, %v3011
  %3016 = vrot.lane.b32.xlu0 %v2963, 8
  %v3017 = vpop.permute.xlu0 %3016
  %3018 = vrot.lane.b32.xlu0 %v3003, 8
  %v3019 = vpop.permute.xlu0 %3018
  %v3020 = vsel %vm806, %v3017, %v3019
  %v3023 = vmax.f32 %v2923, %v3017
  %v3024 = vmax.f32 %v2963, %v3020
  %3027 = vrot.lane.b32.xlu0 %v3023, 16
  %v3028 = vpop.permute.xlu0 %3027
  %3029 = vrot.lane.b32.xlu0 %v3024, 16
  %v3030 = vpop.permute.xlu0 %3029
  %v3031 = vsel %vm827, %v3028, %v3030
  %v3033 = vmax.f32 %v3013, %v3031
  %v3034 = vadd.f32 %v3033, %v832
  %v3035 = vmax.f32 %v3034, 0.0
  %v3036 = vld [vmem:[%s0 + $0x16] sm:$0x1]
  %v3037 = vld [vmem:[%s0 + $0x36] sm:$0x1]
  %v3038 = vld [vmem:[%s0 + $0x56] sm:$0x1]
  %v3039 = vld [vmem:[%s0 + $0x76] sm:$0x1]
  %v3040 = vld [vmem:[%s0 + $0x96] sm:$0x1]
  %v3041 = vld [vmem:[%s0 + $0xb6] sm:$0x1]
  %v3042 = vld [vmem:[%s0 + $0xd6] sm:$0x1]
  %v3043 = vld [vmem:[%s0 + $0xf6] sm:$0x1]
  %v3044 = vld [vmem:[%s0 + $0x17] sm:$0x1]
  %v3045 = vld [vmem:[%s0 + $0x37] sm:$0x1]
  %v3046 = vld [vmem:[%s0 + $0x57] sm:$0x1]
  %v3047 = vld [vmem:[%s0 + $0x77] sm:$0x1]
  %v3048 = vld [vmem:[%s0 + $0x97] sm:$0x1]
  %v3049 = vld [vmem:[%s0 + $0xb7] sm:$0x1]
  %v3050 = vld [vmem:[%s0 + $0xd7] sm:$0x1]
  %v3051 = vld [vmem:[%s0 + $0xf7] sm:$0x1]
  %3053 = vrot.lane.b32.xlu0 %v2558, 28
  %v3054 = vpop.permute.xlu0 %3053
  %3056 = vrot.lane.b32.xlu0 %v2808, 56
  %v3057 = vpop.permute.xlu0 %3056
  %3059 = vrot.lane.b32.xlu0 %v2833, 84
  %v3060 = vpop.permute.xlu0 %3059
  %v3070 = vrot.slane %v3037, 7
  %v3071 = vsel %vm480, %v3070, %v3036
  %v3072 = vrot.slane %v3038, 6
  %v3073 = vsel %vm483, %v3072, %v3071
  %v3074 = vrot.slane %v3039, 5
  %v3075 = vsel %vm486, %v3074, %v3073
  %v3076 = vrot.slane %v3040, 4
  %v3077 = vsel %vm489, %v3076, %v3075
  %v3078 = vrot.slane %v3041, 3
  %v3079 = vsel %vm492, %v3078, %v3077
  %v3080 = vrot.slane %v3042, 2
  %v3081 = vsel %vm495, %v3080, %v3079
  %v3082 = vrot.slane %v3043, 1
  %v3083 = vsel %vm498, %v3082, %v3081
  %3084 = vrot.lane.b32.xlu0 %v3083, 112
  %v3085 = vpop.permute.xlu0 %3084
  %v3095 = vrot.slane %v3045, 7
  %v3096 = vsel %vm480, %v3095, %v3044
  %v3097 = vrot.slane %v3046, 6
  %v3098 = vsel %vm483, %v3097, %v3096
  %v3099 = vrot.slane %v3047, 5
  %v3100 = vsel %vm486, %v3099, %v3098
  %v3101 = vrot.slane %v3048, 4
  %v3102 = vsel %vm489, %v3101, %v3100
  %v3103 = vrot.slane %v3049, 3
  %v3104 = vsel %vm492, %v3103, %v3102
  %v3105 = vrot.slane %v3050, 2
  %v3106 = vsel %vm495, %v3105, %v3104
  %v3107 = vrot.slane %v3051, 1
  %v3108 = vsel %vm498, %v3107, %v3106
  %3109 = vrot.lane.b32.xlu0 %v3108, 12
  %v3110 = vpop.permute.xlu0 %3109
  %v3112 = vsel %vm626, %v2533, %v3054
  %v3113 = vsel %vm628, %v3112, %v3057
  %v3114 = vsel %vm630, %v3113, %v3060
  %v3115 = vsel %vm632, %v3114, %v3085
  %v3116 = vsel %vm634, %v3085, %v3110
  %v3118 = vsel %vm636, %v3116, 0
  %3120 = vmatpush.msra.mxu0 %v86
  %3121 = vmatpush.msra.mxu0 %v82
  %3122 = vmatpush.msra.mxu0 %v78
  %3123 = vmatpush.msra.mxu0 %v74
  %3124 = vmatpush.msra.mxu0 %v70
  %3125 = vmatpush.msra.mxu0 %v66
  %3126 = vmatpush.msra.mxu0 %v62
  %3127 = vmatpush.msra.mxu0 %v58
  %3128 = vmatpush.msra.mxu0 %v54
  %3129 = vmatpush.msra.mxu0 %v50
  %3130 = vmatpush.msra.mxu0 %v46
  %3131 = vmatpush.msra.mxu0 %v42
  %3132 = vmatpush.msra.mxu0 %v38
  %3133 = vmatpush.msra.mxu0 %v34
  %3134 = vmatpush.msra.mxu0 %v30
  %3135 = vmatpush.msra.mxu0 %v26
  %3136 = vmatmul.f32.gmra.mxu0 %v3115
  %v3137 = vpop.f32.mrf.mxu0
  %v3138 = vadd.f32 0.0, %v3137
  %3139 = vdwg.mxu0
  %3140 = vmatpush.msra.mxu0 0.0
  %3141 = vmatpush.msra.mxu0 0.0
  %3142 = vmatpush.msra.mxu0 0.0
  %3143 = vmatpush.msra.mxu0 0.0
  %3144 = vmatpush.msra.mxu0 0.0
  %3145 = vmatpush.msra.mxu0 0.0
  %3146 = vmatpush.msra.mxu0 0.0
  %3147 = vmatpush.msra.mxu0 0.0
  %3148 = vmatpush.msra.mxu0 0.0
  %3149 = vmatpush.msra.mxu0 0.0
  %3150 = vmatpush.msra.mxu0 0.0
  %3151 = vmatpush.msra.mxu0 %v106
  %3152 = vmatpush.msra.mxu0 %v102
  %3153 = vmatpush.msra.mxu0 %v98
  %3154 = vmatpush.msra.mxu0 %v94
  %3155 = vmatpush.msra.mxu0 %v90
  %3156 = vmatmul.f32.gmra.mxu0 %v3118
  %v3157 = vpop.f32.mrf.mxu0
  %v3158 = vadd.f32 %v3138, %v3157
  %3159 = vdwg.mxu0
  %3160 = vmatpush.msra.mxu0 %v87
  %3161 = vmatpush.msra.mxu0 %v83
  %3162 = vmatpush.msra.mxu0 %v79
  %3163 = vmatpush.msra.mxu0 %v75
  %3164 = vmatpush.msra.mxu0 %v71
  %3165 = vmatpush.msra.mxu0 %v67
  %3166 = vmatpush.msra.mxu0 %v63
  %3167 = vmatpush.msra.mxu0 %v59
  %3168 = vmatpush.msra.mxu0 %v55
  %3169 = vmatpush.msra.mxu0 %v51
  %3170 = vmatpush.msra.mxu0 %v47
  %3171 = vmatpush.msra.mxu0 %v43
  %3172 = vmatpush.msra.mxu0 %v39
  %3173 = vmatpush.msra.mxu0 %v35
  %3174 = vmatpush.msra.mxu0 %v31
  %3175 = vmatpush.msra.mxu0 %v27
  %3176 = vmatmul.f32.gmra.mxu0 %v3115
  %v3177 = vpop.f32.mrf.mxu0
  %v3178 = vadd.f32 0.0, %v3177
  %3179 = vdwg.mxu0
  %3180 = vmatpush.msra.mxu0 0.0
  %3181 = vmatpush.msra.mxu0 0.0
  %3182 = vmatpush.msra.mxu0 0.0
  %3183 = vmatpush.msra.mxu0 0.0
  %3184 = vmatpush.msra.mxu0 0.0
  %3185 = vmatpush.msra.mxu0 0.0
  %3186 = vmatpush.msra.mxu0 0.0
  %3187 = vmatpush.msra.mxu0 0.0
  %3188 = vmatpush.msra.mxu0 0.0
  %3189 = vmatpush.msra.mxu0 0.0
  %3190 = vmatpush.msra.mxu0 0.0
  %3191 = vmatpush.msra.mxu0 %v107
  %3192 = vmatpush.msra.mxu0 %v103
  %3193 = vmatpush.msra.mxu0 %v99
  %3194 = vmatpush.msra.mxu0 %v95
  %3195 = vmatpush.msra.mxu0 %v91
  %3196 = vmatmul.f32.gmra.mxu0 %v3118
  %v3197 = vpop.f32.mrf.mxu0
  %v3198 = vadd.f32 %v3178, %v3197
  %3199 = vdwg.mxu0
  %3200 = vmatpush.msra.mxu0 %v88
  %3201 = vmatpush.msra.mxu0 %v84
  %3202 = vmatpush.msra.mxu0 %v80
  %3203 = vmatpush.msra.mxu0 %v76
  %3204 = vmatpush.msra.mxu0 %v72
  %3205 = vmatpush.msra.mxu0 %v68
  %3206 = vmatpush.msra.mxu0 %v64
  %3207 = vmatpush.msra.mxu0 %v60
  %3208 = vmatpush.msra.mxu0 %v56
  %3209 = vmatpush.msra.mxu0 %v52
  %3210 = vmatpush.msra.mxu0 %v48
  %3211 = vmatpush.msra.mxu0 %v44
  %3212 = vmatpush.msra.mxu0 %v40
  %3213 = vmatpush.msra.mxu0 %v36
  %3214 = vmatpush.msra.mxu0 %v32
  %3215 = vmatpush.msra.mxu0 %v28
  %3216 = vmatmul.f32.gmra.mxu0 %v3115
  %v3217 = vpop.f32.mrf.mxu0
  %v3218 = vadd.f32 0.0, %v3217
  %3219 = vdwg.mxu0
  %3220 = vmatpush.msra.mxu0 0.0
  %3221 = vmatpush.msra.mxu0 0.0
  %3222 = vmatpush.msra.mxu0 0.0
  %3223 = vmatpush.msra.mxu0 0.0
  %3224 = vmatpush.msra.mxu0 0.0
  %3225 = vmatpush.msra.mxu0 0.0
  %3226 = vmatpush.msra.mxu0 0.0
  %3227 = vmatpush.msra.mxu0 0.0
  %3228 = vmatpush.msra.mxu0 0.0
  %3229 = vmatpush.msra.mxu0 0.0
  %3230 = vmatpush.msra.mxu0 0.0
  %3231 = vmatpush.msra.mxu0 %v108
  %3232 = vmatpush.msra.mxu0 %v104
  %3233 = vmatpush.msra.mxu0 %v100
  %3234 = vmatpush.msra.mxu0 %v96
  %3235 = vmatpush.msra.mxu0 %v92
  %3236 = vmatmul.f32.gmra.mxu0 %v3118
  %v3237 = vpop.f32.mrf.mxu0
  %v3238 = vadd.f32 %v3218, %v3237
  %3239 = vdwg.mxu0
  %3240 = vmatpush.msra.mxu0 %v89
  %3241 = vmatpush.msra.mxu0 %v85
  %3242 = vmatpush.msra.mxu0 %v81
  %3243 = vmatpush.msra.mxu0 %v77
  %3244 = vmatpush.msra.mxu0 %v73
  %3245 = vmatpush.msra.mxu0 %v69
  %3246 = vmatpush.msra.mxu0 %v65
  %3247 = vmatpush.msra.mxu0 %v61
  %3248 = vmatpush.msra.mxu0 %v57
  %3249 = vmatpush.msra.mxu0 %v53
  %3250 = vmatpush.msra.mxu0 %v49
  %3251 = vmatpush.msra.mxu0 %v45
  %3252 = vmatpush.msra.mxu0 %v41
  %3253 = vmatpush.msra.mxu0 %v37
  %3254 = vmatpush.msra.mxu0 %v33
  %3255 = vmatpush.msra.mxu0 %v29
  %3256 = vmatmul.f32.gmra.mxu0 %v3115
  %v3257 = vpop.f32.mrf.mxu0
  %v3258 = vadd.f32 0.0, %v3257
  %3259 = vdwg.mxu0
  %3260 = vmatpush.msra.mxu0 0.0
  %3261 = vmatpush.msra.mxu0 0.0
  %3262 = vmatpush.msra.mxu0 0.0
  %3263 = vmatpush.msra.mxu0 0.0
  %3264 = vmatpush.msra.mxu0 0.0
  %3265 = vmatpush.msra.mxu0 0.0
  %3266 = vmatpush.msra.mxu0 0.0
  %3267 = vmatpush.msra.mxu0 0.0
  %3268 = vmatpush.msra.mxu0 0.0
  %3269 = vmatpush.msra.mxu0 0.0
  %3270 = vmatpush.msra.mxu0 0.0
  %3271 = vmatpush.msra.mxu0 %v109
  %3272 = vmatpush.msra.mxu0 %v105
  %3273 = vmatpush.msra.mxu0 %v101
  %3274 = vmatpush.msra.mxu0 %v97
  %3275 = vmatpush.msra.mxu0 %v93
  %3276 = vmatmul.f32.gmra.mxu0 %v3118
  %v3277 = vpop.f32.mrf.mxu0
  %v3278 = vadd.f32 %v3258, %v3277
  %3279 = vdwg.mxu0
  %3282 = vrot.lane.b32.xlu0 %v3158, 8
  %v3283 = vpop.permute.xlu0 %3282
  %3284 = vrot.lane.b32.xlu0 %v3198, 8
  %v3285 = vpop.permute.xlu0 %3284
  %v3286 = vsel %vm806, %v3283, %v3285
  %v3288 = vmax.f32 %v3158, %v3286
  %3291 = vrot.lane.b32.xlu0 %v3238, 8
  %v3292 = vpop.permute.xlu0 %3291
  %3293 = vrot.lane.b32.xlu0 %v3278, 8
  %v3294 = vpop.permute.xlu0 %3293
  %v3295 = vsel %vm806, %v3292, %v3294
  %v3298 = vmax.f32 %v3198, %v3292
  %v3299 = vmax.f32 %v3238, %v3295
  %3302 = vrot.lane.b32.xlu0 %v3298, 16
  %v3303 = vpop.permute.xlu0 %3302
  %3304 = vrot.lane.b32.xlu0 %v3299, 16
  %v3305 = vpop.permute.xlu0 %3304
  %v3306 = vsel %vm827, %v3303, %v3305
  %v3308 = vmax.f32 %v3288, %v3306
  %v3309 = vadd.f32 %v3308, %v832
  %v3310 = vmax.f32 %v3309, 0.0
  %v3311 = vld [vmem:[%s0 + $0x18] sm:$0x1]
  %v3312 = vld [vmem:[%s0 + $0x38] sm:$0x1]
  %v3313 = vld [vmem:[%s0 + $0x58] sm:$0x1]
  %v3314 = vld [vmem:[%s0 + $0x78] sm:$0x1]
  %v3315 = vld [vmem:[%s0 + $0x98] sm:$0x1]
  %v3316 = vld [vmem:[%s0 + $0xb8] sm:$0x1]
  %v3317 = vld [vmem:[%s0 + $0xd8] sm:$0x1]
  %v3318 = vld [vmem:[%s0 + $0xf8] sm:$0x1]
  %v3319 = vld [vmem:[%s0 + $0x19] sm:$0x1]
  %v3320 = vld [vmem:[%s0 + $0x39] sm:$0x1]
  %v3321 = vld [vmem:[%s0 + $0x59] sm:$0x1]
  %v3322 = vld [vmem:[%s0 + $0x79] sm:$0x1]
  %v3323 = vld [vmem:[%s0 + $0x99] sm:$0x1]
  %v3324 = vld [vmem:[%s0 + $0xb9] sm:$0x1]
  %v3325 = vld [vmem:[%s0 + $0xd9] sm:$0x1]
  %v3326 = vld [vmem:[%s0 + $0xf9] sm:$0x1]
  %3328 = vrot.lane.b32.xlu0 %v2833, 28
  %v3329 = vpop.permute.xlu0 %3328
  %3331 = vrot.lane.b32.xlu0 %v3083, 56
  %v3332 = vpop.permute.xlu0 %3331
  %3334 = vrot.lane.b32.xlu0 %v3108, 84
  %v3335 = vpop.permute.xlu0 %3334
  %v3345 = vrot.slane %v3312, 7
  %v3346 = vsel %vm480, %v3345, %v3311
  %v3347 = vrot.slane %v3313, 6
  %v3348 = vsel %vm483, %v3347, %v3346
  %v3349 = vrot.slane %v3314, 5
  %v3350 = vsel %vm486, %v3349, %v3348
  %v3351 = vrot.slane %v3315, 4
  %v3352 = vsel %vm489, %v3351, %v3350
  %v3353 = vrot.slane %v3316, 3
  %v3354 = vsel %vm492, %v3353, %v3352
  %v3355 = vrot.slane %v3317, 2
  %v3356 = vsel %vm495, %v3355, %v3354
  %v3357 = vrot.slane %v3318, 1
  %v3358 = vsel %vm498, %v3357, %v3356
  %3359 = vrot.lane.b32.xlu0 %v3358, 112
  %v3360 = vpop.permute.xlu0 %3359
  %v3370 = vrot.slane %v3320, 7
  %v3371 = vsel %vm480, %v3370, %v3319
  %v3372 = vrot.slane %v3321, 6
  %v3373 = vsel %vm483, %v3372, %v3371
  %v3374 = vrot.slane %v3322, 5
  %v3375 = vsel %vm486, %v3374, %v3373
  %v3376 = vrot.slane %v3323, 4
  %v3377 = vsel %vm489, %v3376, %v3375
  %v3378 = vrot.slane %v3324, 3
  %v3379 = vsel %vm492, %v3378, %v3377
  %v3380 = vrot.slane %v3325, 2
  %v3381 = vsel %vm495, %v3380, %v3379
  %v3382 = vrot.slane %v3326, 1
  %v3383 = vsel %vm498, %v3382, %v3381
  %3384 = vrot.lane.b32.xlu0 %v3383, 12
  %v3385 = vpop.permute.xlu0 %3384
  %v3387 = vsel %vm626, %v2808, %v3329
  %v3388 = vsel %vm628, %v3387, %v3332
  %v3389 = vsel %vm630, %v3388, %v3335
  %v3390 = vsel %vm632, %v3389, %v3360
  %v3391 = vsel %vm634, %v3360, %v3385
  %v3393 = vsel %vm636, %v3391, 0
  %3395 = vmatpush.msra.mxu0 %v86
  %3396 = vmatpush.msra.mxu0 %v82
  %3397 = vmatpush.msra.mxu0 %v78
  %3398 = vmatpush.msra.mxu0 %v74
  %3399 = vmatpush.msra.mxu0 %v70
  %3400 = vmatpush.msra.mxu0 %v66
  %3401 = vmatpush.msra.mxu0 %v62
  %3402 = vmatpush.msra.mxu0 %v58
  %3403 = vmatpush.msra.mxu0 %v54
  %3404 = vmatpush.msra.mxu0 %v50
  %3405 = vmatpush.msra.mxu0 %v46
  %3406 = vmatpush.msra.mxu0 %v42
  %3407 = vmatpush.msra.mxu0 %v38
  %3408 = vmatpush.msra.mxu0 %v34
  %3409 = vmatpush.msra.mxu0 %v30
  %3410 = vmatpush.msra.mxu0 %v26
  %3411 = vmatmul.f32.gmra.mxu0 %v3390
  %v3412 = vpop.f32.mrf.mxu0
  %v3413 = vadd.f32 0.0, %v3412
  %3414 = vdwg.mxu0
  %3415 = vmatpush.msra.mxu0 0.0
  %3416 = vmatpush.msra.mxu0 0.0
  %3417 = vmatpush.msra.mxu0 0.0
  %3418 = vmatpush.msra.mxu0 0.0
  %3419 = vmatpush.msra.mxu0 0.0
  %3420 = vmatpush.msra.mxu0 0.0
  %3421 = vmatpush.msra.mxu0 0.0
  %3422 = vmatpush.msra.mxu0 0.0
  %3423 = vmatpush.msra.mxu0 0.0
  %3424 = vmatpush.msra.mxu0 0.0
  %3425 = vmatpush.msra.mxu0 0.0
  %3426 = vmatpush.msra.mxu0 %v106
  %3427 = vmatpush.msra.mxu0 %v102
  %3428 = vmatpush.msra.mxu0 %v98
  %3429 = vmatpush.msra.mxu0 %v94
  %3430 = vmatpush.msra.mxu0 %v90
  %3431 = vmatmul.f32.gmra.mxu0 %v3393
  %v3432 = vpop.f32.mrf.mxu0
  %v3433 = vadd.f32 %v3413, %v3432
  %3434 = vdwg.mxu0
  %3435 = vmatpush.msra.mxu0 %v87
  %3436 = vmatpush.msra.mxu0 %v83
  %3437 = vmatpush.msra.mxu0 %v79
  %3438 = vmatpush.msra.mxu0 %v75
  %3439 = vmatpush.msra.mxu0 %v71
  %3440 = vmatpush.msra.mxu0 %v67
  %3441 = vmatpush.msra.mxu0 %v63
  %3442 = vmatpush.msra.mxu0 %v59
  %3443 = vmatpush.msra.mxu0 %v55
  %3444 = vmatpush.msra.mxu0 %v51
  %3445 = vmatpush.msra.mxu0 %v47
  %3446 = vmatpush.msra.mxu0 %v43
  %3447 = vmatpush.msra.mxu0 %v39
  %3448 = vmatpush.msra.mxu0 %v35
  %3449 = vmatpush.msra.mxu0 %v31
  %3450 = vmatpush.msra.mxu0 %v27
  %3451 = vmatmul.f32.gmra.mxu0 %v3390
  %v3452 = vpop.f32.mrf.mxu0
  %v3453 = vadd.f32 0.0, %v3452
  %3454 = vdwg.mxu0
  %3455 = vmatpush.msra.mxu0 0.0
  %3456 = vmatpush.msra.mxu0 0.0
  %3457 = vmatpush.msra.mxu0 0.0
  %3458 = vmatpush.msra.mxu0 0.0
  %3459 = vmatpush.msra.mxu0 0.0
  %3460 = vmatpush.msra.mxu0 0.0
  %3461 = vmatpush.msra.mxu0 0.0
  %3462 = vmatpush.msra.mxu0 0.0
  %3463 = vmatpush.msra.mxu0 0.0
  %3464 = vmatpush.msra.mxu0 0.0
  %3465 = vmatpush.msra.mxu0 0.0
  %3466 = vmatpush.msra.mxu0 %v107
  %3467 = vmatpush.msra.mxu0 %v103
  %3468 = vmatpush.msra.mxu0 %v99
  %3469 = vmatpush.msra.mxu0 %v95
  %3470 = vmatpush.msra.mxu0 %v91
  %3471 = vmatmul.f32.gmra.mxu0 %v3393
  %v3472 = vpop.f32.mrf.mxu0
  %v3473 = vadd.f32 %v3453, %v3472
  %3474 = vdwg.mxu0
  %3475 = vmatpush.msra.mxu0 %v88
  %3476 = vmatpush.msra.mxu0 %v84
  %3477 = vmatpush.msra.mxu0 %v80
  %3478 = vmatpush.msra.mxu0 %v76
  %3479 = vmatpush.msra.mxu0 %v72
  %3480 = vmatpush.msra.mxu0 %v68
  %3481 = vmatpush.msra.mxu0 %v64
  %3482 = vmatpush.msra.mxu0 %v60
  %3483 = vmatpush.msra.mxu0 %v56
  %3484 = vmatpush.msra.mxu0 %v52
  %3485 = vmatpush.msra.mxu0 %v48
  %3486 = vmatpush.msra.mxu0 %v44
  %3487 = vmatpush.msra.mxu0 %v40
  %3488 = vmatpush.msra.mxu0 %v36
  %3489 = vmatpush.msra.mxu0 %v32
  %3490 = vmatpush.msra.mxu0 %v28
  %3491 = vmatmul.f32.gmra.mxu0 %v3390
  %v3492 = vpop.f32.mrf.mxu0
  %v3493 = vadd.f32 0.0, %v3492
  %3494 = vdwg.mxu0
  %3495 = vmatpush.msra.mxu0 0.0
  %3496 = vmatpush.msra.mxu0 0.0
  %3497 = vmatpush.msra.mxu0 0.0
  %3498 = vmatpush.msra.mxu0 0.0
  %3499 = vmatpush.msra.mxu0 0.0
  %3500 = vmatpush.msra.mxu0 0.0
  %3501 = vmatpush.msra.mxu0 0.0
  %3502 = vmatpush.msra.mxu0 0.0
  %3503 = vmatpush.msra.mxu0 0.0
  %3504 = vmatpush.msra.mxu0 0.0
  %3505 = vmatpush.msra.mxu0 0.0
  %3506 = vmatpush.msra.mxu0 %v108
  %3507 = vmatpush.msra.mxu0 %v104
  %3508 = vmatpush.msra.mxu0 %v100
  %3509 = vmatpush.msra.mxu0 %v96
  %3510 = vmatpush.msra.mxu0 %v92
  %3511 = vmatmul.f32.gmra.mxu0 %v3393
  %v3512 = vpop.f32.mrf.mxu0
  %v3513 = vadd.f32 %v3493, %v3512
  %3514 = vdwg.mxu0
  %3515 = vmatpush.msra.mxu0 %v89
  %3516 = vmatpush.msra.mxu0 %v85
  %3517 = vmatpush.msra.mxu0 %v81
  %3518 = vmatpush.msra.mxu0 %v77
  %3519 = vmatpush.msra.mxu0 %v73
  %3520 = vmatpush.msra.mxu0 %v69
  %3521 = vmatpush.msra.mxu0 %v65
  %3522 = vmatpush.msra.mxu0 %v61
  %3523 = vmatpush.msra.mxu0 %v57
  %3524 = vmatpush.msra.mxu0 %v53
  %3525 = vmatpush.msra.mxu0 %v49
  %3526 = vmatpush.msra.mxu0 %v45
  %3527 = vmatpush.msra.mxu0 %v41
  %3528 = vmatpush.msra.mxu0 %v37
  %3529 = vmatpush.msra.mxu0 %v33
  %3530 = vmatpush.msra.mxu0 %v29
  %3531 = vmatmul.f32.gmra.mxu0 %v3390
  %v3532 = vpop.f32.mrf.mxu0
  %v3533 = vadd.f32 0.0, %v3532
  %3534 = vdwg.mxu0
  %3535 = vmatpush.msra.mxu0 0.0
  %3536 = vmatpush.msra.mxu0 0.0
  %3537 = vmatpush.msra.mxu0 0.0
  %3538 = vmatpush.msra.mxu0 0.0
  %3539 = vmatpush.msra.mxu0 0.0
  %3540 = vmatpush.msra.mxu0 0.0
  %3541 = vmatpush.msra.mxu0 0.0
  %3542 = vmatpush.msra.mxu0 0.0
  %3543 = vmatpush.msra.mxu0 0.0
  %3544 = vmatpush.msra.mxu0 0.0
  %3545 = vmatpush.msra.mxu0 0.0
  %3546 = vmatpush.msra.mxu0 %v109
  %3547 = vmatpush.msra.mxu0 %v105
  %3548 = vmatpush.msra.mxu0 %v101
  %3549 = vmatpush.msra.mxu0 %v97
  %3550 = vmatpush.msra.mxu0 %v93
  %3551 = vmatmul.f32.gmra.mxu0 %v3393
  %v3552 = vpop.f32.mrf.mxu0
  %v3553 = vadd.f32 %v3533, %v3552
  %3554 = vdwg.mxu0
  %3557 = vrot.lane.b32.xlu0 %v3433, 8
  %v3558 = vpop.permute.xlu0 %3557
  %3559 = vrot.lane.b32.xlu0 %v3473, 8
  %v3560 = vpop.permute.xlu0 %3559
  %v3561 = vsel %vm806, %v3558, %v3560
  %v3563 = vmax.f32 %v3433, %v3561
  %3566 = vrot.lane.b32.xlu0 %v3513, 8
  %v3567 = vpop.permute.xlu0 %3566
  %3568 = vrot.lane.b32.xlu0 %v3553, 8
  %v3569 = vpop.permute.xlu0 %3568
  %v3570 = vsel %vm806, %v3567, %v3569
  %v3573 = vmax.f32 %v3473, %v3567
  %v3574 = vmax.f32 %v3513, %v3570
  %3577 = vrot.lane.b32.xlu0 %v3573, 16
  %v3578 = vpop.permute.xlu0 %3577
  %3579 = vrot.lane.b32.xlu0 %v3574, 16
  %v3580 = vpop.permute.xlu0 %3579
  %v3581 = vsel %vm827, %v3578, %v3580
  %v3583 = vmax.f32 %v3563, %v3581
  %v3584 = vadd.f32 %v3583, %v832
  %v3585 = vmax.f32 %v3584, 0.0
  %v3586 = vld [vmem:[%s0 + $0x1a] sm:$0x1]
  %v3587 = vld [vmem:[%s0 + $0x3a] sm:$0x1]
  %v3588 = vld [vmem:[%s0 + $0x5a] sm:$0x1]
  %v3589 = vld [vmem:[%s0 + $0x7a] sm:$0x1]
  %v3590 = vld [vmem:[%s0 + $0x9a] sm:$0x1]
  %v3591 = vld [vmem:[%s0 + $0xba] sm:$0x1]
  %v3592 = vld [vmem:[%s0 + $0xda] sm:$0x1]
  %v3593 = vld [vmem:[%s0 + $0xfa] sm:$0x1]
  %v3594 = vld [vmem:[%s0 + $0x1b] sm:$0x1]
  %v3595 = vld [vmem:[%s0 + $0x3b] sm:$0x1]
  %v3596 = vld [vmem:[%s0 + $0x5b] sm:$0x1]
  %v3597 = vld [vmem:[%s0 + $0x7b] sm:$0x1]
  %v3598 = vld [vmem:[%s0 + $0x9b] sm:$0x1]
  %v3599 = vld [vmem:[%s0 + $0xbb] sm:$0x1]
  %v3600 = vld [vmem:[%s0 + $0xdb] sm:$0x1]
  %v3601 = vld [vmem:[%s0 + $0xfb] sm:$0x1]
  %3603 = vrot.lane.b32.xlu0 %v3108, 28
  %v3604 = vpop.permute.xlu0 %3603
  %3606 = vrot.lane.b32.xlu0 %v3358, 56
  %v3607 = vpop.permute.xlu0 %3606
  %3609 = vrot.lane.b32.xlu0 %v3383, 84
  %v3610 = vpop.permute.xlu0 %3609
  %v3620 = vrot.slane %v3587, 7
  %v3621 = vsel %vm480, %v3620, %v3586
  %v3622 = vrot.slane %v3588, 6
  %v3623 = vsel %vm483, %v3622, %v3621
  %v3624 = vrot.slane %v3589, 5
  %v3625 = vsel %vm486, %v3624, %v3623
  %v3626 = vrot.slane %v3590, 4
  %v3627 = vsel %vm489, %v3626, %v3625
  %v3628 = vrot.slane %v3591, 3
  %v3629 = vsel %vm492, %v3628, %v3627
  %v3630 = vrot.slane %v3592, 2
  %v3631 = vsel %vm495, %v3630, %v3629
  %v3632 = vrot.slane %v3593, 1
  %v3633 = vsel %vm498, %v3632, %v3631
  %3634 = vrot.lane.b32.xlu0 %v3633, 112
  %v3635 = vpop.permute.xlu0 %3634
  %v3645 = vrot.slane %v3595, 7
  %v3646 = vsel %vm480, %v3645, %v3594
  %v3647 = vrot.slane %v3596, 6
  %v3648 = vsel %vm483, %v3647, %v3646
  %v3649 = vrot.slane %v3597, 5
  %v3650 = vsel %vm486, %v3649, %v3648
  %v3651 = vrot.slane %v3598, 4
  %v3652 = vsel %vm489, %v3651, %v3650
  %v3653 = vrot.slane %v3599, 3
  %v3654 = vsel %vm492, %v3653, %v3652
  %v3655 = vrot.slane %v3600, 2
  %v3656 = vsel %vm495, %v3655, %v3654
  %v3657 = vrot.slane %v3601, 1
  %v3658 = vsel %vm498, %v3657, %v3656
  %3659 = vrot.lane.b32.xlu0 %v3658, 12
  %v3660 = vpop.permute.xlu0 %3659
  %v3662 = vsel %vm626, %v3083, %v3604
  %v3663 = vsel %vm628, %v3662, %v3607
  %v3664 = vsel %vm630, %v3663, %v3610
  %v3665 = vsel %vm632, %v3664, %v3635
  %v3666 = vsel %vm634, %v3635, %v3660
  %v3668 = vsel %vm636, %v3666, 0
  %3670 = vmatpush.msra.mxu0 %v86
  %3671 = vmatpush.msra.mxu0 %v82
  %3672 = vmatpush.msra.mxu0 %v78
  %3673 = vmatpush.msra.mxu0 %v74
  %3674 = vmatpush.msra.mxu0 %v70
  %3675 = vmatpush.msra.mxu0 %v66
  %3676 = vmatpush.msra.mxu0 %v62
  %3677 = vmatpush.msra.mxu0 %v58
  %3678 = vmatpush.msra.mxu0 %v54
  %3679 = vmatpush.msra.mxu0 %v50
  %3680 = vmatpush.msra.mxu0 %v46
  %3681 = vmatpush.msra.mxu0 %v42
  %3682 = vmatpush.msra.mxu0 %v38
  %3683 = vmatpush.msra.mxu0 %v34
  %3684 = vmatpush.msra.mxu0 %v30
  %3685 = vmatpush.msra.mxu0 %v26
  %3686 = vmatmul.f32.gmra.mxu0 %v3665
  %v3687 = vpop.f32.mrf.mxu0
  %v3688 = vadd.f32 0.0, %v3687
  %3689 = vdwg.mxu0
  %3690 = vmatpush.msra.mxu0 0.0
  %3691 = vmatpush.msra.mxu0 0.0
  %3692 = vmatpush.msra.mxu0 0.0
  %3693 = vmatpush.msra.mxu0 0.0
  %3694 = vmatpush.msra.mxu0 0.0
  %3695 = vmatpush.msra.mxu0 0.0
  %3696 = vmatpush.msra.mxu0 0.0
  %3697 = vmatpush.msra.mxu0 0.0
  %3698 = vmatpush.msra.mxu0 0.0
  %3699 = vmatpush.msra.mxu0 0.0
  %3700 = vmatpush.msra.mxu0 0.0
  %3701 = vmatpush.msra.mxu0 %v106
  %3702 = vmatpush.msra.mxu0 %v102
  %3703 = vmatpush.msra.mxu0 %v98
  %3704 = vmatpush.msra.mxu0 %v94
  %3705 = vmatpush.msra.mxu0 %v90
  %3706 = vmatmul.f32.gmra.mxu0 %v3668
  %v3707 = vpop.f32.mrf.mxu0
  %v3708 = vadd.f32 %v3688, %v3707
  %3709 = vdwg.mxu0
  %3710 = vmatpush.msra.mxu0 %v87
  %3711 = vmatpush.msra.mxu0 %v83
  %3712 = vmatpush.msra.mxu0 %v79
  %3713 = vmatpush.msra.mxu0 %v75
  %3714 = vmatpush.msra.mxu0 %v71
  %3715 = vmatpush.msra.mxu0 %v67
  %3716 = vmatpush.msra.mxu0 %v63
  %3717 = vmatpush.msra.mxu0 %v59
  %3718 = vmatpush.msra.mxu0 %v55
  %3719 = vmatpush.msra.mxu0 %v51
  %3720 = vmatpush.msra.mxu0 %v47
  %3721 = vmatpush.msra.mxu0 %v43
  %3722 = vmatpush.msra.mxu0 %v39
  %3723 = vmatpush.msra.mxu0 %v35
  %3724 = vmatpush.msra.mxu0 %v31
  %3725 = vmatpush.msra.mxu0 %v27
  %3726 = vmatmul.f32.gmra.mxu0 %v3665
  %v3727 = vpop.f32.mrf.mxu0
  %v3728 = vadd.f32 0.0, %v3727
  %3729 = vdwg.mxu0
  %3730 = vmatpush.msra.mxu0 0.0
  %3731 = vmatpush.msra.mxu0 0.0
  %3732 = vmatpush.msra.mxu0 0.0
  %3733 = vmatpush.msra.mxu0 0.0
  %3734 = vmatpush.msra.mxu0 0.0
  %3735 = vmatpush.msra.mxu0 0.0
  %3736 = vmatpush.msra.mxu0 0.0
  %3737 = vmatpush.msra.mxu0 0.0
  %3738 = vmatpush.msra.mxu0 0.0
  %3739 = vmatpush.msra.mxu0 0.0
  %3740 = vmatpush.msra.mxu0 0.0
  %3741 = vmatpush.msra.mxu0 %v107
  %3742 = vmatpush.msra.mxu0 %v103
  %3743 = vmatpush.msra.mxu0 %v99
  %3744 = vmatpush.msra.mxu0 %v95
  %3745 = vmatpush.msra.mxu0 %v91
  %3746 = vmatmul.f32.gmra.mxu0 %v3668
  %v3747 = vpop.f32.mrf.mxu0
  %v3748 = vadd.f32 %v3728, %v3747
  %3749 = vdwg.mxu0
  %3750 = vmatpush.msra.mxu0 %v88
  %3751 = vmatpush.msra.mxu0 %v84
  %3752 = vmatpush.msra.mxu0 %v80
  %3753 = vmatpush.msra.mxu0 %v76
  %3754 = vmatpush.msra.mxu0 %v72
  %3755 = vmatpush.msra.mxu0 %v68
  %3756 = vmatpush.msra.mxu0 %v64
  %3757 = vmatpush.msra.mxu0 %v60
  %3758 = vmatpush.msra.mxu0 %v56
  %3759 = vmatpush.msra.mxu0 %v52
  %3760 = vmatpush.msra.mxu0 %v48
  %3761 = vmatpush.msra.mxu0 %v44
  %3762 = vmatpush.msra.mxu0 %v40
  %3763 = vmatpush.msra.mxu0 %v36
  %3764 = vmatpush.msra.mxu0 %v32
  %3765 = vmatpush.msra.mxu0 %v28
  %3766 = vmatmul.f32.gmra.mxu0 %v3665
  %v3767 = vpop.f32.mrf.mxu0
  %v3768 = vadd.f32 0.0, %v3767
  %3769 = vdwg.mxu0
  %3770 = vmatpush.msra.mxu0 0.0
  %3771 = vmatpush.msra.mxu0 0.0
  %3772 = vmatpush.msra.mxu0 0.0
  %3773 = vmatpush.msra.mxu0 0.0
  %3774 = vmatpush.msra.mxu0 0.0
  %3775 = vmatpush.msra.mxu0 0.0
  %3776 = vmatpush.msra.mxu0 0.0
  %3777 = vmatpush.msra.mxu0 0.0
  %3778 = vmatpush.msra.mxu0 0.0
  %3779 = vmatpush.msra.mxu0 0.0
  %3780 = vmatpush.msra.mxu0 0.0
  %3781 = vmatpush.msra.mxu0 %v108
  %3782 = vmatpush.msra.mxu0 %v104
  %3783 = vmatpush.msra.mxu0 %v100
  %3784 = vmatpush.msra.mxu0 %v96
  %3785 = vmatpush.msra.mxu0 %v92
  %3786 = vmatmul.f32.gmra.mxu0 %v3668
  %v3787 = vpop.f32.mrf.mxu0
  %v3788 = vadd.f32 %v3768, %v3787
  %3789 = vdwg.mxu0
  %3790 = vmatpush.msra.mxu0 %v89
  %3791 = vmatpush.msra.mxu0 %v85
  %3792 = vmatpush.msra.mxu0 %v81
  %3793 = vmatpush.msra.mxu0 %v77
  %3794 = vmatpush.msra.mxu0 %v73
  %3795 = vmatpush.msra.mxu0 %v69
  %3796 = vmatpush.msra.mxu0 %v65
  %3797 = vmatpush.msra.mxu0 %v61
  %3798 = vmatpush.msra.mxu0 %v57
  %3799 = vmatpush.msra.mxu0 %v53
  %3800 = vmatpush.msra.mxu0 %v49
  %3801 = vmatpush.msra.mxu0 %v45
  %3802 = vmatpush.msra.mxu0 %v41
  %3803 = vmatpush.msra.mxu0 %v37
  %3804 = vmatpush.msra.mxu0 %v33
  %3805 = vmatpush.msra.mxu0 %v29
  %3806 = vmatmul.f32.gmra.mxu0 %v3665
  %v3807 = vpop.f32.mrf.mxu0
  %v3808 = vadd.f32 0.0, %v3807
  %3809 = vdwg.mxu0
  %3810 = vmatpush.msra.mxu0 0.0
  %3811 = vmatpush.msra.mxu0 0.0
  %3812 = vmatpush.msra.mxu0 0.0
  %3813 = vmatpush.msra.mxu0 0.0
  %3814 = vmatpush.msra.mxu0 0.0
  %3815 = vmatpush.msra.mxu0 0.0
  %3816 = vmatpush.msra.mxu0 0.0
  %3817 = vmatpush.msra.mxu0 0.0
  %3818 = vmatpush.msra.mxu0 0.0
  %3819 = vmatpush.msra.mxu0 0.0
  %3820 = vmatpush.msra.mxu0 0.0
  %3821 = vmatpush.msra.mxu0 %v109
  %3822 = vmatpush.msra.mxu0 %v105
  %3823 = vmatpush.msra.mxu0 %v101
  %3824 = vmatpush.msra.mxu0 %v97
  %3825 = vmatpush.msra.mxu0 %v93
  %3826 = vmatmul.f32.gmra.mxu0 %v3668
  %v3827 = vpop.f32.mrf.mxu0
  %v3828 = vadd.f32 %v3808, %v3827
  %3829 = vdwg.mxu0
  %3832 = vrot.lane.b32.xlu0 %v3708, 8
  %v3833 = vpop.permute.xlu0 %3832
  %3834 = vrot.lane.b32.xlu0 %v3748, 8
  %v3835 = vpop.permute.xlu0 %3834
  %v3836 = vsel %vm806, %v3833, %v3835
  %v3838 = vmax.f32 %v3708, %v3836
  %3841 = vrot.lane.b32.xlu0 %v3788, 8
  %v3842 = vpop.permute.xlu0 %3841
  %3843 = vrot.lane.b32.xlu0 %v3828, 8
  %v3844 = vpop.permute.xlu0 %3843
  %v3845 = vsel %vm806, %v3842, %v3844
  %v3848 = vmax.f32 %v3748, %v3842
  %v3849 = vmax.f32 %v3788, %v3845
  %3852 = vrot.lane.b32.xlu0 %v3848, 16
  %v3853 = vpop.permute.xlu0 %3852
  %3854 = vrot.lane.b32.xlu0 %v3849, 16
  %v3855 = vpop.permute.xlu0 %3854
  %v3856 = vsel %vm827, %v3853, %v3855
  %v3858 = vmax.f32 %v3838, %v3856
  %v3859 = vadd.f32 %v3858, %v832
  %v3860 = vmax.f32 %v3859, 0.0
  %3862 = vrot.lane.b32.xlu0 %v1110, 120
  %v3863 = vpop.permute.xlu0 %3862
  %3866 = vrot.lane.b32.xlu0 %v1385, 112
  %v3867 = vpop.permute.xlu0 %3866
  %3870 = vrot.lane.b32.xlu0 %v1660, 104
  %v3871 = vpop.permute.xlu0 %3870
  %3874 = vrot.lane.b32.xlu0 %v1935, 96
  %v3875 = vpop.permute.xlu0 %3874
  %3878 = vrot.lane.b32.xlu0 %v2210, 88
  %v3879 = vpop.permute.xlu0 %3878
  %vm3881 = vcmask 982016
  %v3882 = vsel %vm3881, %v835, %v3863
  %v3883 = vsel %vm632, %v3863, %v3867
  %vm3884 = vcmask 850944
  %v3885 = vsel %vm3884, %v3867, %v3871
  %vm3886 = vcmask 785408
  %v3887 = vsel %vm3886, %v3871, %v3875
  %vm3888 = vcmask 719872
  %v3889 = vsel %vm3888, %v3875, %v3879
  %vm3890 = vcmask 654336
  %v3891 = vsel %vm3890, %v3879, 0
  %3893 = vmatpush.msra.mxu0 %v156
  %3894 = vmatpush.msra.mxu0 %v153
  %3895 = vmatpush.msra.mxu0 %v150
  %3896 = vmatpush.msra.mxu0 %v147
  %3897 = vmatpush.msra.mxu0 %v144
  %3898 = vmatpush.msra.mxu0 %v141
  %3899 = vmatpush.msra.mxu0 %v138
  %3900 = vmatpush.msra.mxu0 %v135
  %3901 = vmatpush.msra.mxu0 %v132
  %3902 = vmatpush.msra.mxu0 %v129
  %3903 = vmatpush.msra.mxu0 %v126
  %3904 = vmatpush.msra.mxu0 %v123
  %3905 = vmatpush.msra.mxu0 %v120
  %3906 = vmatpush.msra.mxu0 %v117
  %3907 = vmatpush.msra.mxu0 %v114
  %3908 = vmatpush.msra.mxu0 %v111
  %3909 = vmatmul.f32.gmra.mxu0 %v3882
  %v3910 = vpop.f32.mrf.mxu0
  %v3911 = vadd.f32 0.0, %v3910
  %3912 = vdwg.mxu0
  %3913 = vmatpush.msra.mxu0 %v204
  %3914 = vmatpush.msra.mxu0 %v201
  %3915 = vmatpush.msra.mxu0 %v198
  %3916 = vmatpush.msra.mxu0 %v195
  %3917 = vmatpush.msra.mxu0 %v192
  %3918 = vmatpush.msra.mxu0 %v189
  %3919 = vmatpush.msra.mxu0 %v186
  %3920 = vmatpush.msra.mxu0 %v183
  %3921 = vmatpush.msra.mxu0 %v180
  %3922 = vmatpush.msra.mxu0 %v177
  %3923 = vmatpush.msra.mxu0 %v174
  %3924 = vmatpush.msra.mxu0 %v171
  %3925 = vmatpush.msra.mxu0 %v168
  %3926 = vmatpush.msra.mxu0 %v165
  %3927 = vmatpush.msra.mxu0 %v162
  %3928 = vmatpush.msra.mxu0 %v159
  %3929 = vmatmul.f32.gmra.mxu0 %v3883
  %v3930 = vpop.f32.mrf.mxu0
  %v3931 = vadd.f32 %v3911, %v3930
  %3932 = vdwg.mxu0
  %3933 = vmatpush.msra.mxu0 %v252
  %3934 = vmatpush.msra.mxu0 %v249
  %3935 = vmatpush.msra.mxu0 %v246
  %3936 = vmatpush.msra.mxu0 %v243
  %3937 = vmatpush.msra.mxu0 %v240
  %3938 = vmatpush.msra.mxu0 %v237
  %3939 = vmatpush.msra.mxu0 %v234
  %3940 = vmatpush.msra.mxu0 %v231
  %3941 = vmatpush.msra.mxu0 %v228
  %3942 = vmatpush.msra.mxu0 %v225
  %3943 = vmatpush.msra.mxu0 %v222
  %3944 = vmatpush.msra.mxu0 %v219
  %3945 = vmatpush.msra.mxu0 %v216
  %3946 = vmatpush.msra.mxu0 %v213
  %3947 = vmatpush.msra.mxu0 %v210
  %3948 = vmatpush.msra.mxu0 %v207
  %3949 = vmatmul.f32.gmra.mxu0 %v3885
  %v3950 = vpop.f32.mrf.mxu0
  %v3951 = vadd.f32 %v3931, %v3950
  %3952 = vdwg.mxu0
  %3953 = vmatpush.msra.mxu0 %v300
  %3954 = vmatpush.msra.mxu0 %v297
  %3955 = vmatpush.msra.mxu0 %v294
  %3956 = vmatpush.msra.mxu0 %v291
  %3957 = vmatpush.msra.mxu0 %v288
  %3958 = vmatpush.msra.mxu0 %v285
  %3959 = vmatpush.msra.mxu0 %v282
  %3960 = vmatpush.msra.mxu0 %v279
  %3961 = vmatpush.msra.mxu0 %v276
  %3962 = vmatpush.msra.mxu0 %v273
  %3963 = vmatpush.msra.mxu0 %v270
  %3964 = vmatpush.msra.mxu0 %v267
  %3965 = vmatpush.msra.mxu0 %v264
  %3966 = vmatpush.msra.mxu0 %v261
  %3967 = vmatpush.msra.mxu0 %v258
  %3968 = vmatpush.msra.mxu0 %v255
  %3969 = vmatmul.f32.gmra.mxu0 %v3887
  %v3970 = vpop.f32.mrf.mxu0
  %v3971 = vadd.f32 %v3951, %v3970
  %3972 = vdwg.mxu0
  %3973 = vmatpush.msra.mxu0 %v348
  %3974 = vmatpush.msra.mxu0 %v345
  %3975 = vmatpush.msra.mxu0 %v342
  %3976 = vmatpush.msra.mxu0 %v339
  %3977 = vmatpush.msra.mxu0 %v336
  %3978 = vmatpush.msra.mxu0 %v333
  %3979 = vmatpush.msra.mxu0 %v330
  %3980 = vmatpush.msra.mxu0 %v327
  %3981 = vmatpush.msra.mxu0 %v324
  %3982 = vmatpush.msra.mxu0 %v321
  %3983 = vmatpush.msra.mxu0 %v318
  %3984 = vmatpush.msra.mxu0 %v315
  %3985 = vmatpush.msra.mxu0 %v312
  %3986 = vmatpush.msra.mxu0 %v309
  %3987 = vmatpush.msra.mxu0 %v306
  %3988 = vmatpush.msra.mxu0 %v303
  %3989 = vmatmul.f32.gmra.mxu0 %v3889
  %v3990 = vpop.f32.mrf.mxu0
  %v3991 = vadd.f32 %v3971, %v3990
  %3992 = vdwg.mxu0
  %3993 = vmatpush.msra.mxu0 0.0
  %3994 = vmatpush.msra.mxu0 0.0
  %3995 = vmatpush.msra.mxu0 0.0
  %3996 = vmatpush.msra.mxu0 0.0
  %3997 = vmatpush.msra.mxu0 0.0
  %3998 = vmatpush.msra.mxu0 0.0
  %3999 = vmatpush.msra.mxu0 %v378
  %4000 = vmatpush.msra.mxu0 %v375
  %4001 = vmatpush.msra.mxu0 %v372
  %4002 = vmatpush.msra.mxu0 %v369
  %4003 = vmatpush.msra.mxu0 %v366
  %4004 = vmatpush.msra.mxu0 %v363
  %4005 = vmatpush.msra.mxu0 %v360
  %4006 = vmatpush.msra.mxu0 %v357
  %4007 = vmatpush.msra.mxu0 %v354
  %4008 = vmatpush.msra.mxu0 %v351
  %4009 = vmatmul.f32.gmra.mxu0 %v3891
  %v4010 = vpop.f32.mrf.mxu0
  %v4011 = vadd.f32 %v3991, %v4010
  %4012 = vdwg.mxu0
  %4013 = vmatpush.msra.mxu0 %v157
  %4014 = vmatpush.msra.mxu0 %v154
  %4015 = vmatpush.msra.mxu0 %v151
  %4016 = vmatpush.msra.mxu0 %v148
  %4017 = vmatpush.msra.mxu0 %v145
  %4018 = vmatpush.msra.mxu0 %v142
  %4019 = vmatpush.msra.mxu0 %v139
  %4020 = vmatpush.msra.mxu0 %v136
  %4021 = vmatpush.msra.mxu0 %v133
  %4022 = vmatpush.msra.mxu0 %v130
  %4023 = vmatpush.msra.mxu0 %v127
  %4024 = vmatpush.msra.mxu0 %v124
  %4025 = vmatpush.msra.mxu0 %v121
  %4026 = vmatpush.msra.mxu0 %v118
  %4027 = vmatpush.msra.mxu0 %v115
  %4028 = vmatpush.msra.mxu0 %v112
  %4029 = vmatmul.f32.gmra.mxu0 %v3882
  %v4030 = vpop.f32.mrf.mxu0
  %v4031 = vadd.f32 0.0, %v4030
  %4032 = vdwg.mxu0
  %4033 = vmatpush.msra.mxu0 %v205
  %4034 = vmatpush.msra.mxu0 %v202
  %4035 = vmatpush.msra.mxu0 %v199
  %4036 = vmatpush.msra.mxu0 %v196
  %4037 = vmatpush.msra.mxu0 %v193
  %4038 = vmatpush.msra.mxu0 %v190
  %4039 = vmatpush.msra.mxu0 %v187
  %4040 = vmatpush.msra.mxu0 %v184
  %4041 = vmatpush.msra.mxu0 %v181
  %4042 = vmatpush.msra.mxu0 %v178
  %4043 = vmatpush.msra.mxu0 %v175
  %4044 = vmatpush.msra.mxu0 %v172
  %4045 = vmatpush.msra.mxu0 %v169
  %4046 = vmatpush.msra.mxu0 %v166
  %4047 = vmatpush.msra.mxu0 %v163
  %4048 = vmatpush.msra.mxu0 %v160
  %4049 = vmatmul.f32.gmra.mxu0 %v3883
  %v4050 = vpop.f32.mrf.mxu0
  %v4051 = vadd.f32 %v4031, %v4050
  %4052 = vdwg.mxu0
  %4053 = vmatpush.msra.mxu0 %v253
  %4054 = vmatpush.msra.mxu0 %v250
  %4055 = vmatpush.msra.mxu0 %v247
  %4056 = vmatpush.msra.mxu0 %v244
  %4057 = vmatpush.msra.mxu0 %v241
  %4058 = vmatpush.msra.mxu0 %v238
  %4059 = vmatpush.msra.mxu0 %v235
  %4060 = vmatpush.msra.mxu0 %v232
  %4061 = vmatpush.msra.mxu0 %v229
  %4062 = vmatpush.msra.mxu0 %v226
  %4063 = vmatpush.msra.mxu0 %v223
  %4064 = vmatpush.msra.mxu0 %v220
  %4065 = vmatpush.msra.mxu0 %v217
  %4066 = vmatpush.msra.mxu0 %v214
  %4067 = vmatpush.msra.mxu0 %v211
  %4068 = vmatpush.msra.mxu0 %v208
  %4069 = vmatmul.f32.gmra.mxu0 %v3885
  %v4070 = vpop.f32.mrf.mxu0
  %v4071 = vadd.f32 %v4051, %v4070
  %4072 = vdwg.mxu0
  %4073 = vmatpush.msra.mxu0 %v301
  %4074 = vmatpush.msra.mxu0 %v298
  %4075 = vmatpush.msra.mxu0 %v295
  %4076 = vmatpush.msra.mxu0 %v292
  %4077 = vmatpush.msra.mxu0 %v289
  %4078 = vmatpush.msra.mxu0 %v286
  %4079 = vmatpush.msra.mxu0 %v283
  %4080 = vmatpush.msra.mxu0 %v280
  %4081 = vmatpush.msra.mxu0 %v277
  %4082 = vmatpush.msra.mxu0 %v274
  %4083 = vmatpush.msra.mxu0 %v271
  %4084 = vmatpush.msra.mxu0 %v268
  %4085 = vmatpush.msra.mxu0 %v265
  %4086 = vmatpush.msra.mxu0 %v262
  %4087 = vmatpush.msra.mxu0 %v259
  %4088 = vmatpush.msra.mxu0 %v256
  %4089 = vmatmul.f32.gmra.mxu0 %v3887
  %v4090 = vpop.f32.mrf.mxu0
  %v4091 = vadd.f32 %v4071, %v4090
  %4092 = vdwg.mxu0
  %4093 = vmatpush.msra.mxu0 %v349
  %4094 = vmatpush.msra.mxu0 %v346
  %4095 = vmatpush.msra.mxu0 %v343
  %4096 = vmatpush.msra.mxu0 %v340
  %4097 = vmatpush.msra.mxu0 %v337
  %4098 = vmatpush.msra.mxu0 %v334
  %4099 = vmatpush.msra.mxu0 %v331
  %4100 = vmatpush.msra.mxu0 %v328
  %4101 = vmatpush.msra.mxu0 %v325
  %4102 = vmatpush.msra.mxu0 %v322
  %4103 = vmatpush.msra.mxu0 %v319
  %4104 = vmatpush.msra.mxu0 %v316
  %4105 = vmatpush.msra.mxu0 %v313
  %4106 = vmatpush.msra.mxu0 %v310
  %4107 = vmatpush.msra.mxu0 %v307
  %4108 = vmatpush.msra.mxu0 %v304
  %4109 = vmatmul.f32.gmra.mxu0 %v3889
  %v4110 = vpop.f32.mrf.mxu0
  %v4111 = vadd.f32 %v4091, %v4110
  %4112 = vdwg.mxu0
  %4113 = vmatpush.msra.mxu0 0.0
  %4114 = vmatpush.msra.mxu0 0.0
  %4115 = vmatpush.msra.mxu0 0.0
  %4116 = vmatpush.msra.mxu0 0.0
  %4117 = vmatpush.msra.mxu0 0.0
  %4118 = vmatpush.msra.mxu0 0.0
  %4119 = vmatpush.msra.mxu0 %v379
  %4120 = vmatpush.msra.mxu0 %v376
  %4121 = vmatpush.msra.mxu0 %v373
  %4122 = vmatpush.msra.mxu0 %v370
  %4123 = vmatpush.msra.mxu0 %v367
  %4124 = vmatpush.msra.mxu0 %v364
  %4125 = vmatpush.msra.mxu0 %v361
  %4126 = vmatpush.msra.mxu0 %v358
  %4127 = vmatpush.msra.mxu0 %v355
  %4128 = vmatpush.msra.mxu0 %v352
  %4129 = vmatmul.f32.gmra.mxu0 %v3891
  %v4130 = vpop.f32.mrf.mxu0
  %v4131 = vadd.f32 %v4111, %v4130
  %4132 = vdwg.mxu0
  %4133 = vmatpush.msra.mxu0 %v158
  %4134 = vmatpush.msra.mxu0 %v155
  %4135 = vmatpush.msra.mxu0 %v152
  %4136 = vmatpush.msra.mxu0 %v149
  %4137 = vmatpush.msra.mxu0 %v146
  %4138 = vmatpush.msra.mxu0 %v143
  %4139 = vmatpush.msra.mxu0 %v140
  %4140 = vmatpush.msra.mxu0 %v137
  %4141 = vmatpush.msra.mxu0 %v134
  %4142 = vmatpush.msra.mxu0 %v131
  %4143 = vmatpush.msra.mxu0 %v128
  %4144 = vmatpush.msra.mxu0 %v125
  %4145 = vmatpush.msra.mxu0 %v122
  %4146 = vmatpush.msra.mxu0 %v119
  %4147 = vmatpush.msra.mxu0 %v116
  %4148 = vmatpush.msra.mxu0 %v113
  %4149 = vmatmul.f32.gmra.mxu0 %v3882
  %v4150 = vpop.f32.mrf.mxu0
  %v4151 = vadd.f32 0.0, %v4150
  %4152 = vdwg.mxu0
  %4153 = vmatpush.msra.mxu0 %v206
  %4154 = vmatpush.msra.mxu0 %v203
  %4155 = vmatpush.msra.mxu0 %v200
  %4156 = vmatpush.msra.mxu0 %v197
  %4157 = vmatpush.msra.mxu0 %v194
  %4158 = vmatpush.msra.mxu0 %v191
  %4159 = vmatpush.msra.mxu0 %v188
  %4160 = vmatpush.msra.mxu0 %v185
  %4161 = vmatpush.msra.mxu0 %v182
  %4162 = vmatpush.msra.mxu0 %v179
  %4163 = vmatpush.msra.mxu0 %v176
  %4164 = vmatpush.msra.mxu0 %v173
  %4165 = vmatpush.msra.mxu0 %v170
  %4166 = vmatpush.msra.mxu0 %v167
  %4167 = vmatpush.msra.mxu0 %v164
  %4168 = vmatpush.msra.mxu0 %v161
  %4169 = vmatmul.f32.gmra.mxu0 %v3883
  %v4170 = vpop.f32.mrf.mxu0
  %v4171 = vadd.f32 %v4151, %v4170
  %4172 = vdwg.mxu0
  %4173 = vmatpush.msra.mxu0 %v254
  %4174 = vmatpush.msra.mxu0 %v251
  %4175 = vmatpush.msra.mxu0 %v248
  %4176 = vmatpush.msra.mxu0 %v245
  %4177 = vmatpush.msra.mxu0 %v242
  %4178 = vmatpush.msra.mxu0 %v239
  %4179 = vmatpush.msra.mxu0 %v236
  %4180 = vmatpush.msra.mxu0 %v233
  %4181 = vmatpush.msra.mxu0 %v230
  %4182 = vmatpush.msra.mxu0 %v227
  %4183 = vmatpush.msra.mxu0 %v224
  %4184 = vmatpush.msra.mxu0 %v221
  %4185 = vmatpush.msra.mxu0 %v218
  %4186 = vmatpush.msra.mxu0 %v215
  %4187 = vmatpush.msra.mxu0 %v212
  %4188 = vmatpush.msra.mxu0 %v209
  %4189 = vmatmul.f32.gmra.mxu0 %v3885
  %v4190 = vpop.f32.mrf.mxu0
  %v4191 = vadd.f32 %v4171, %v4190
  %4192 = vdwg.mxu0
  %4193 = vmatpush.msra.mxu0 %v302
  %4194 = vmatpush.msra.mxu0 %v299
  %4195 = vmatpush.msra.mxu0 %v296
  %4196 = vmatpush.msra.mxu0 %v293
  %4197 = vmatpush.msra.mxu0 %v290
  %4198 = vmatpush.msra.mxu0 %v287
  %4199 = vmatpush.msra.mxu0 %v284
  %4200 = vmatpush.msra.mxu0 %v281
  %4201 = vmatpush.msra.mxu0 %v278
  %4202 = vmatpush.msra.mxu0 %v275
  %4203 = vmatpush.msra.mxu0 %v272
  %4204 = vmatpush.msra.mxu0 %v269
  %4205 = vmatpush.msra.mxu0 %v266
  %4206 = vmatpush.msra.mxu0 %v263
  %4207 = vmatpush.msra.mxu0 %v260
  %4208 = vmatpush.msra.mxu0 %v257
  %4209 = vmatmul.f32.gmra.mxu0 %v3887
  %v4210 = vpop.f32.mrf.mxu0
  %v4211 = vadd.f32 %v4191, %v4210
  %4212 = vdwg.mxu0
  %4213 = vmatpush.msra.mxu0 %v350
  %4214 = vmatpush.msra.mxu0 %v347
  %4215 = vmatpush.msra.mxu0 %v344
  %4216 = vmatpush.msra.mxu0 %v341
  %4217 = vmatpush.msra.mxu0 %v338
  %4218 = vmatpush.msra.mxu0 %v335
  %4219 = vmatpush.msra.mxu0 %v332
  %4220 = vmatpush.msra.mxu0 %v329
  %4221 = vmatpush.msra.mxu0 %v326
  %4222 = vmatpush.msra.mxu0 %v323
  %4223 = vmatpush.msra.mxu0 %v320
  %4224 = vmatpush.msra.mxu0 %v317
  %4225 = vmatpush.msra.mxu0 %v314
  %4226 = vmatpush.msra.mxu0 %v311
  %4227 = vmatpush.msra.mxu0 %v308
  %4228 = vmatpush.msra.mxu0 %v305
  %4229 = vmatmul.f32.gmra.mxu0 %v3889
  %v4230 = vpop.f32.mrf.mxu0
  %v4231 = vadd.f32 %v4211, %v4230
  %4232 = vdwg.mxu0
  %4233 = vmatpush.msra.mxu0 0.0
  %4234 = vmatpush.msra.mxu0 0.0
  %4235 = vmatpush.msra.mxu0 0.0
  %4236 = vmatpush.msra.mxu0 0.0
  %4237 = vmatpush.msra.mxu0 0.0
  %4238 = vmatpush.msra.mxu0 0.0
  %4239 = vmatpush.msra.mxu0 %v380
  %4240 = vmatpush.msra.mxu0 %v377
  %4241 = vmatpush.msra.mxu0 %v374
  %4242 = vmatpush.msra.mxu0 %v371
  %4243 = vmatpush.msra.mxu0 %v368
  %4244 = vmatpush.msra.mxu0 %v365
  %4245 = vmatpush.msra.mxu0 %v362
  %4246 = vmatpush.msra.mxu0 %v359
  %4247 = vmatpush.msra.mxu0 %v356
  %4248 = vmatpush.msra.mxu0 %v353
  %4249 = vmatmul.f32.gmra.mxu0 %v3891
  %v4250 = vpop.f32.mrf.mxu0
  %v4251 = vadd.f32 %v4231, %v4250
  %4252 = vdwg.mxu0
  %4255 = vrot.lane.b32.xlu0 %v4011, 48
  %v4256 = vpop.permute.xlu0 %4255
  %4257 = vrot.lane.b32.xlu0 %v4131, 48
  %v4258 = vpop.permute.xlu0 %4257
  %vm4259 = vcmask 392192
  %v4260 = vsel %vm4259, %v4256, %v4258
  %v4262 = vmax.f32 %v4011, %v4260
  %4264 = vrot.lane.b32.xlu0 %v4251, 48
  %v4265 = vpop.permute.xlu0 %4264
  %v4266 = vsel %vm4259, %v4258, %v4265
  %v4268 = vmax.f32 %v4131, %v4266
  %4270 = vrot.lane.b32.xlu0 %v4268, 96
  %v4271 = vpop.permute.xlu0 %4270
  %v4273 = vmax.f32 %v4262, %v4271
  %v4275 = vperm.slane %v381, 0
  %v4277 = vadd.f32 %v4273, %v4275
  %v4278 = vmax.f32 %v4277, 0.0
  %4279 = vrot.lane.b32.xlu0 %v1660, 120
  %v4280 = vpop.permute.xlu0 %4279
  %4282 = vrot.lane.b32.xlu0 %v1935, 112
  %v4283 = vpop.permute.xlu0 %4282
  %4285 = vrot.lane.b32.xlu0 %v2210, 104
  %v4286 = vpop.permute.xlu0 %4285
  %4289 = vrot.lane.b32.xlu0 %v2485, 96
  %v4290 = vpop.permute.xlu0 %4289
  %4293 = vrot.lane.b32.xlu0 %v2760, 88
  %v4294 = vpop.permute.xlu0 %4293
  %v4296 = vsel %vm3881, %v1385, %v4280
  %v4297 = vsel %vm632, %v4280, %v4283
  %v4298 = vsel %vm3884, %v4283, %v4286
  %v4299 = vsel %vm3886, %v4286, %v4290
  %v4300 = vsel %vm3888, %v4290, %v4294
  %v4301 = vsel %vm3890, %v4294, 0
  %4303 = vmatpush.msra.mxu0 %v156
  %4304 = vmatpush.msra.mxu0 %v153
  %4305 = vmatpush.msra.mxu0 %v150
  %4306 = vmatpush.msra.mxu0 %v147
  %4307 = vmatpush.msra.mxu0 %v144
  %4308 = vmatpush.msra.mxu0 %v141
  %4309 = vmatpush.msra.mxu0 %v138
  %4310 = vmatpush.msra.mxu0 %v135
  %4311 = vmatpush.msra.mxu0 %v132
  %4312 = vmatpush.msra.mxu0 %v129
  %4313 = vmatpush.msra.mxu0 %v126
  %4314 = vmatpush.msra.mxu0 %v123
  %4315 = vmatpush.msra.mxu0 %v120
  %4316 = vmatpush.msra.mxu0 %v117
  %4317 = vmatpush.msra.mxu0 %v114
  %4318 = vmatpush.msra.mxu0 %v111
  %4319 = vmatmul.f32.gmra.mxu0 %v4296
  %v4320 = vpop.f32.mrf.mxu0
  %v4321 = vadd.f32 0.0, %v4320
  %4322 = vdwg.mxu0
  %4323 = vmatpush.msra.mxu0 %v204
  %4324 = vmatpush.msra.mxu0 %v201
  %4325 = vmatpush.msra.mxu0 %v198
  %4326 = vmatpush.msra.mxu0 %v195
  %4327 = vmatpush.msra.mxu0 %v192
  %4328 = vmatpush.msra.mxu0 %v189
  %4329 = vmatpush.msra.mxu0 %v186
  %4330 = vmatpush.msra.mxu0 %v183
  %4331 = vmatpush.msra.mxu0 %v180
  %4332 = vmatpush.msra.mxu0 %v177
  %4333 = vmatpush.msra.mxu0 %v174
  %4334 = vmatpush.msra.mxu0 %v171
  %4335 = vmatpush.msra.mxu0 %v168
  %4336 = vmatpush.msra.mxu0 %v165
  %4337 = vmatpush.msra.mxu0 %v162
  %4338 = vmatpush.msra.mxu0 %v159
  %4339 = vmatmul.f32.gmra.mxu0 %v4297
  %v4340 = vpop.f32.mrf.mxu0
  %v4341 = vadd.f32 %v4321, %v4340
  %4342 = vdwg.mxu0
  %4343 = vmatpush.msra.mxu0 %v252
  %4344 = vmatpush.msra.mxu0 %v249
  %4345 = vmatpush.msra.mxu0 %v246
  %4346 = vmatpush.msra.mxu0 %v243
  %4347 = vmatpush.msra.mxu0 %v240
  %4348 = vmatpush.msra.mxu0 %v237
  %4349 = vmatpush.msra.mxu0 %v234
  %4350 = vmatpush.msra.mxu0 %v231
  %4351 = vmatpush.msra.mxu0 %v228
  %4352 = vmatpush.msra.mxu0 %v225
  %4353 = vmatpush.msra.mxu0 %v222
  %4354 = vmatpush.msra.mxu0 %v219
  %4355 = vmatpush.msra.mxu0 %v216
  %4356 = vmatpush.msra.mxu0 %v213
  %4357 = vmatpush.msra.mxu0 %v210
  %4358 = vmatpush.msra.mxu0 %v207
  %4359 = vmatmul.f32.gmra.mxu0 %v4298
  %v4360 = vpop.f32.mrf.mxu0
  %v4361 = vadd.f32 %v4341, %v4360
  %4362 = vdwg.mxu0
  %4363 = vmatpush.msra.mxu0 %v300
  %4364 = vmatpush.msra.mxu0 %v297
  %4365 = vmatpush.msra.mxu0 %v294
  %4366 = vmatpush.msra.mxu0 %v291
  %4367 = vmatpush.msra.mxu0 %v288
  %4368 = vmatpush.msra.mxu0 %v285
  %4369 = vmatpush.msra.mxu0 %v282
  %4370 = vmatpush.msra.mxu0 %v279
  %4371 = vmatpush.msra.mxu0 %v276
  %4372 = vmatpush.msra.mxu0 %v273
  %4373 = vmatpush.msra.mxu0 %v270
  %4374 = vmatpush.msra.mxu0 %v267
  %4375 = vmatpush.msra.mxu0 %v264
  %4376 = vmatpush.msra.mxu0 %v261
  %4377 = vmatpush.msra.mxu0 %v258
  %4378 = vmatpush.msra.mxu0 %v255
  %4379 = vmatmul.f32.gmra.mxu0 %v4299
  %v4380 = vpop.f32.mrf.mxu0
  %v4381 = vadd.f32 %v4361, %v4380
  %4382 = vdwg.mxu0
  %4383 = vmatpush.msra.mxu0 %v348
  %4384 = vmatpush.msra.mxu0 %v345
  %4385 = vmatpush.msra.mxu0 %v342
  %4386 = vmatpush.msra.mxu0 %v339
  %4387 = vmatpush.msra.mxu0 %v336
  %4388 = vmatpush.msra.mxu0 %v333
  %4389 = vmatpush.msra.mxu0 %v330
  %4390 = vmatpush.msra.mxu0 %v327
  %4391 = vmatpush.msra.mxu0 %v324
  %4392 = vmatpush.msra.mxu0 %v321
  %4393 = vmatpush.msra.mxu0 %v318
  %4394 = vmatpush.msra.mxu0 %v315
  %4395 = vmatpush.msra.mxu0 %v312
  %4396 = vmatpush.msra.mxu0 %v309
  %4397 = vmatpush.msra.mxu0 %v306
  %4398 = vmatpush.msra.mxu0 %v303
  %4399 = vmatmul.f32.gmra.mxu0 %v4300
  %v4400 = vpop.f32.mrf.mxu0
  %v4401 = vadd.f32 %v4381, %v4400
  %4402 = vdwg.mxu0
  %4403 = vmatpush.msra.mxu0 0.0
  %4404 = vmatpush.msra.mxu0 0.0
  %4405 = vmatpush.msra.mxu0 0.0
  %4406 = vmatpush.msra.mxu0 0.0
  %4407 = vmatpush.msra.mxu0 0.0
  %4408 = vmatpush.msra.mxu0 0.0
  %4409 = vmatpush.msra.mxu0 %v378
  %4410 = vmatpush.msra.mxu0 %v375
  %4411 = vmatpush.msra.mxu0 %v372
  %4412 = vmatpush.msra.mxu0 %v369
  %4413 = vmatpush.msra.mxu0 %v366
  %4414 = vmatpush.msra.mxu0 %v363
  %4415 = vmatpush.msra.mxu0 %v360
  %4416 = vmatpush.msra.mxu0 %v357
  %4417 = vmatpush.msra.mxu0 %v354
  %4418 = vmatpush.msra.mxu0 %v351
  %4419 = vmatmul.f32.gmra.mxu0 %v4301
  %v4420 = vpop.f32.mrf.mxu0
  %v4421 = vadd.f32 %v4401, %v4420
  %4422 = vdwg.mxu0
  %4423 = vmatpush.msra.mxu0 %v157
  %4424 = vmatpush.msra.mxu0 %v154
  %4425 = vmatpush.msra.mxu0 %v151
  %4426 = vmatpush.msra.mxu0 %v148
  %4427 = vmatpush.msra.mxu0 %v145
  %4428 = vmatpush.msra.mxu0 %v142
  %4429 = vmatpush.msra.mxu0 %v139
  %4430 = vmatpush.msra.mxu0 %v136
  %4431 = vmatpush.msra.mxu0 %v133
  %4432 = vmatpush.msra.mxu0 %v130
  %4433 = vmatpush.msra.mxu0 %v127
  %4434 = vmatpush.msra.mxu0 %v124
  %4435 = vmatpush.msra.mxu0 %v121
  %4436 = vmatpush.msra.mxu0 %v118
  %4437 = vmatpush.msra.mxu0 %v115
  %4438 = vmatpush.msra.mxu0 %v112
  %4439 = vmatmul.f32.gmra.mxu0 %v4296
  %v4440 = vpop.f32.mrf.mxu0
  %v4441 = vadd.f32 0.0, %v4440
  %4442 = vdwg.mxu0
  %4443 = vmatpush.msra.mxu0 %v205
  %4444 = vmatpush.msra.mxu0 %v202
  %4445 = vmatpush.msra.mxu0 %v199
  %4446 = vmatpush.msra.mxu0 %v196
  %4447 = vmatpush.msra.mxu0 %v193
  %4448 = vmatpush.msra.mxu0 %v190
  %4449 = vmatpush.msra.mxu0 %v187
  %4450 = vmatpush.msra.mxu0 %v184
  %4451 = vmatpush.msra.mxu0 %v181
  %4452 = vmatpush.msra.mxu0 %v178
  %4453 = vmatpush.msra.mxu0 %v175
  %4454 = vmatpush.msra.mxu0 %v172
  %4455 = vmatpush.msra.mxu0 %v169
  %4456 = vmatpush.msra.mxu0 %v166
  %4457 = vmatpush.msra.mxu0 %v163
  %4458 = vmatpush.msra.mxu0 %v160
  %4459 = vmatmul.f32.gmra.mxu0 %v4297
  %v4460 = vpop.f32.mrf.mxu0
  %v4461 = vadd.f32 %v4441, %v4460
  %4462 = vdwg.mxu0
  %4463 = vmatpush.msra.mxu0 %v253
  %4464 = vmatpush.msra.mxu0 %v250
  %4465 = vmatpush.msra.mxu0 %v247
  %4466 = vmatpush.msra.mxu0 %v244
  %4467 = vmatpush.msra.mxu0 %v241
  %4468 = vmatpush.msra.mxu0 %v238
  %4469 = vmatpush.msra.mxu0 %v235
  %4470 = vmatpush.msra.mxu0 %v232
  %4471 = vmatpush.msra.mxu0 %v229
  %4472 = vmatpush.msra.mxu0 %v226
  %4473 = vmatpush.msra.mxu0 %v223
  %4474 = vmatpush.msra.mxu0 %v220
  %4475 = vmatpush.msra.mxu0 %v217
  %4476 = vmatpush.msra.mxu0 %v214
  %4477 = vmatpush.msra.mxu0 %v211
  %4478 = vmatpush.msra.mxu0 %v208
  %4479 = vmatmul.f32.gmra.mxu0 %v4298
  %v4480 = vpop.f32.mrf.mxu0
  %v4481 = vadd.f32 %v4461, %v4480
  %4482 = vdwg.mxu0
  %4483 = vmatpush.msra.mxu0 %v301
  %4484 = vmatpush.msra.mxu0 %v298
  %4485 = vmatpush.msra.mxu0 %v295
  %4486 = vmatpush.msra.mxu0 %v292
  %4487 = vmatpush.msra.mxu0 %v289
  %4488 = vmatpush.msra.mxu0 %v286
  %4489 = vmatpush.msra.mxu0 %v283
  %4490 = vmatpush.msra.mxu0 %v280
  %4491 = vmatpush.msra.mxu0 %v277
  %4492 = vmatpush.msra.mxu0 %v274
  %4493 = vmatpush.msra.mxu0 %v271
  %4494 = vmatpush.msra.mxu0 %v268
  %4495 = vmatpush.msra.mxu0 %v265
  %4496 = vmatpush.msra.mxu0 %v262
  %4497 = vmatpush.msra.mxu0 %v259
  %4498 = vmatpush.msra.mxu0 %v256
  %4499 = vmatmul.f32.gmra.mxu0 %v4299
  %v4500 = vpop.f32.mrf.mxu0
  %v4501 = vadd.f32 %v4481, %v4500
  %4502 = vdwg.mxu0
  %4503 = vmatpush.msra.mxu0 %v349
  %4504 = vmatpush.msra.mxu0 %v346
  %4505 = vmatpush.msra.mxu0 %v343
  %4506 = vmatpush.msra.mxu0 %v340
  %4507 = vmatpush.msra.mxu0 %v337
  %4508 = vmatpush.msra.mxu0 %v334
  %4509 = vmatpush.msra.mxu0 %v331
  %4510 = vmatpush.msra.mxu0 %v328
  %4511 = vmatpush.msra.mxu0 %v325
  %4512 = vmatpush.msra.mxu0 %v322
  %4513 = vmatpush.msra.mxu0 %v319
  %4514 = vmatpush.msra.mxu0 %v316
  %4515 = vmatpush.msra.mxu0 %v313
  %4516 = vmatpush.msra.mxu0 %v310
  %4517 = vmatpush.msra.mxu0 %v307
  %4518 = vmatpush.msra.mxu0 %v304
  %4519 = vmatmul.f32.gmra.mxu0 %v4300
  %v4520 = vpop.f32.mrf.mxu0
  %v4521 = vadd.f32 %v4501, %v4520
  %4522 = vdwg.mxu0
  %4523 = vmatpush.msra.mxu0 0.0
  %4524 = vmatpush.msra.mxu0 0.0
  %4525 = vmatpush.msra.mxu0 0.0
  %4526 = vmatpush.msra.mxu0 0.0
  %4527 = vmatpush.msra.mxu0 0.0
  %4528 = vmatpush.msra.mxu0 0.0
  %4529 = vmatpush.msra.mxu0 %v379
  %4530 = vmatpush.msra.mxu0 %v376
  %4531 = vmatpush.msra.mxu0 %v373
  %4532 = vmatpush.msra.mxu0 %v370
  %4533 = vmatpush.msra.mxu0 %v367
  %4534 = vmatpush.msra.mxu0 %v364
  %4535 = vmatpush.msra.mxu0 %v361
  %4536 = vmatpush.msra.mxu0 %v358
  %4537 = vmatpush.msra.mxu0 %v355
  %4538 = vmatpush.msra.mxu0 %v352
  %4539 = vmatmul.f32.gmra.mxu0 %v4301
  %v4540 = vpop.f32.mrf.mxu0
  %v4541 = vadd.f32 %v4521, %v4540
  %4542 = vdwg.mxu0
  %4543 = vmatpush.msra.mxu0 %v158
  %4544 = vmatpush.msra.mxu0 %v155
  %4545 = vmatpush.msra.mxu0 %v152
  %4546 = vmatpush.msra.mxu0 %v149
  %4547 = vmatpush.msra.mxu0 %v146
  %4548 = vmatpush.msra.mxu0 %v143
  %4549 = vmatpush.msra.mxu0 %v140
  %4550 = vmatpush.msra.mxu0 %v137
  %4551 = vmatpush.msra.mxu0 %v134
  %4552 = vmatpush.msra.mxu0 %v131
  %4553 = vmatpush.msra.mxu0 %v128
  %4554 = vmatpush.msra.mxu0 %v125
  %4555 = vmatpush.msra.mxu0 %v122
  %4556 = vmatpush.msra.mxu0 %v119
  %4557 = vmatpush.msra.mxu0 %v116
  %4558 = vmatpush.msra.mxu0 %v113
  %4559 = vmatmul.f32.gmra.mxu0 %v4296
  %v4560 = vpop.f32.mrf.mxu0
  %v4561 = vadd.f32 0.0, %v4560
  %4562 = vdwg.mxu0
  %4563 = vmatpush.msra.mxu0 %v206
  %4564 = vmatpush.msra.mxu0 %v203
  %4565 = vmatpush.msra.mxu0 %v200
  %4566 = vmatpush.msra.mxu0 %v197
  %4567 = vmatpush.msra.mxu0 %v194
  %4568 = vmatpush.msra.mxu0 %v191
  %4569 = vmatpush.msra.mxu0 %v188
  %4570 = vmatpush.msra.mxu0 %v185
  %4571 = vmatpush.msra.mxu0 %v182
  %4572 = vmatpush.msra.mxu0 %v179
  %4573 = vmatpush.msra.mxu0 %v176
  %4574 = vmatpush.msra.mxu0 %v173
  %4575 = vmatpush.msra.mxu0 %v170
  %4576 = vmatpush.msra.mxu0 %v167
  %4577 = vmatpush.msra.mxu0 %v164
  %4578 = vmatpush.msra.mxu0 %v161
  %4579 = vmatmul.f32.gmra.mxu0 %v4297
  %v4580 = vpop.f32.mrf.mxu0
  %v4581 = vadd.f32 %v4561, %v4580
  %4582 = vdwg.mxu0
  %4583 = vmatpush.msra.mxu0 %v254
  %4584 = vmatpush.msra.mxu0 %v251
  %4585 = vmatpush.msra.mxu0 %v248
  %4586 = vmatpush.msra.mxu0 %v245
  %4587 = vmatpush.msra.mxu0 %v242
  %4588 = vmatpush.msra.mxu0 %v239
  %4589 = vmatpush.msra.mxu0 %v236
  %4590 = vmatpush.msra.mxu0 %v233
  %4591 = vmatpush.msra.mxu0 %v230
  %4592 = vmatpush.msra.mxu0 %v227
  %4593 = vmatpush.msra.mxu0 %v224
  %4594 = vmatpush.msra.mxu0 %v221
  %4595 = vmatpush.msra.mxu0 %v218
  %4596 = vmatpush.msra.mxu0 %v215
  %4597 = vmatpush.msra.mxu0 %v212
  %4598 = vmatpush.msra.mxu0 %v209
  %4599 = vmatmul.f32.gmra.mxu0 %v4298
  %v4600 = vpop.f32.mrf.mxu0
  %v4601 = vadd.f32 %v4581, %v4600
  %4602 = vdwg.mxu0
  %4603 = vmatpush.msra.mxu0 %v302
  %4604 = vmatpush.msra.mxu0 %v299
  %4605 = vmatpush.msra.mxu0 %v296
  %4606 = vmatpush.msra.mxu0 %v293
  %4607 = vmatpush.msra.mxu0 %v290
  %4608 = vmatpush.msra.mxu0 %v287
  %4609 = vmatpush.msra.mxu0 %v284
  %4610 = vmatpush.msra.mxu0 %v281
  %4611 = vmatpush.msra.mxu0 %v278
  %4612 = vmatpush.msra.mxu0 %v275
  %4613 = vmatpush.msra.mxu0 %v272
  %4614 = vmatpush.msra.mxu0 %v269
  %4615 = vmatpush.msra.mxu0 %v266
  %4616 = vmatpush.msra.mxu0 %v263
  %4617 = vmatpush.msra.mxu0 %v260
  %4618 = vmatpush.msra.mxu0 %v257
  %4619 = vmatmul.f32.gmra.mxu0 %v4299
  %v4620 = vpop.f32.mrf.mxu0
  %v4621 = vadd.f32 %v4601, %v4620
  %4622 = vdwg.mxu0
  %4623 = vmatpush.msra.mxu0 %v350
  %4624 = vmatpush.msra.mxu0 %v347
  %4625 = vmatpush.msra.mxu0 %v344
  %4626 = vmatpush.msra.mxu0 %v341
  %4627 = vmatpush.msra.mxu0 %v338
  %4628 = vmatpush.msra.mxu0 %v335
  %4629 = vmatpush.msra.mxu0 %v332
  %4630 = vmatpush.msra.mxu0 %v329
  %4631 = vmatpush.msra.mxu0 %v326
  %4632 = vmatpush.msra.mxu0 %v323
  %4633 = vmatpush.msra.mxu0 %v320
  %4634 = vmatpush.msra.mxu0 %v317
  %4635 = vmatpush.msra.mxu0 %v314
  %4636 = vmatpush.msra.mxu0 %v311
  %4637 = vmatpush.msra.mxu0 %v308
  %4638 = vmatpush.msra.mxu0 %v305
  %4639 = vmatmul.f32.gmra.mxu0 %v4300
  %v4640 = vpop.f32.mrf.mxu0
  %v4641 = vadd.f32 %v4621, %v4640
  %4642 = vdwg.mxu0
  %4643 = vmatpush.msra.mxu0 0.0
  %4644 = vmatpush.msra.mxu0 0.0
  %4645 = vmatpush.msra.mxu0 0.0
  %4646 = vmatpush.msra.mxu0 0.0
  %4647 = vmatpush.msra.mxu0 0.0
  %4648 = vmatpush.msra.mxu0 0.0
  %4649 = vmatpush.msra.mxu0 %v380
  %4650 = vmatpush.msra.mxu0 %v377
  %4651 = vmatpush.msra.mxu0 %v374
  %4652 = vmatpush.msra.mxu0 %v371
  %4653 = vmatpush.msra.mxu0 %v368
  %4654 = vmatpush.msra.mxu0 %v365
  %4655 = vmatpush.msra.mxu0 %v362
  %4656 = vmatpush.msra.mxu0 %v359
  %4657 = vmatpush.msra.mxu0 %v356
  %4658 = vmatpush.msra.mxu0 %v353
  %4659 = vmatmul.f32.gmra.mxu0 %v4301
  %v4660 = vpop.f32.mrf.mxu0
  %v4661 = vadd.f32 %v4641, %v4660
  %4662 = vdwg.mxu0
  %4665 = vrot.lane.b32.xlu0 %v4421, 48
  %v4666 = vpop.permute.xlu0 %4665
  %4667 = vrot.lane.b32.xlu0 %v4541, 48
  %v4668 = vpop.permute.xlu0 %4667
  %v4669 = vsel %vm4259, %v4666, %v4668
  %v4671 = vmax.f32 %v4421, %v4669
  %4673 = vrot.lane.b32.xlu0 %v4661, 48
  %v4674 = vpop.permute.xlu0 %4673
  %v4675 = vsel %vm4259, %v4668, %v4674
  %v4677 = vmax.f32 %v4541, %v4675
  %4679 = vrot.lane.b32.xlu0 %v4677, 96
  %v4680 = vpop.permute.xlu0 %4679
  %v4682 = vmax.f32 %v4671, %v4680
  %v4683 = vadd.f32 %v4682, %v4275
  %v4684 = vmax.f32 %v4683, 0.0
  %4685 = vrot.lane.b32.xlu0 %v2210, 120
  %v4686 = vpop.permute.xlu0 %4685
  %4688 = vrot.lane.b32.xlu0 %v2485, 112
  %v4689 = vpop.permute.xlu0 %4688
  %4691 = vrot.lane.b32.xlu0 %v2760, 104
  %v4692 = vpop.permute.xlu0 %4691
  %4695 = vrot.lane.b32.xlu0 %v3035, 96
  %v4696 = vpop.permute.xlu0 %4695
  %4699 = vrot.lane.b32.xlu0 %v3310, 88
  %v4700 = vpop.permute.xlu0 %4699
  %v4702 = vsel %vm3881, %v1935, %v4686
  %v4703 = vsel %vm632, %v4686, %v4689
  %v4704 = vsel %vm3884, %v4689, %v4692
  %v4705 = vsel %vm3886, %v4692, %v4696
  %v4706 = vsel %vm3888, %v4696, %v4700
  %v4707 = vsel %vm3890, %v4700, 0
  %4709 = vmatpush.msra.mxu0 %v156
  %4710 = vmatpush.msra.mxu0 %v153
  %4711 = vmatpush.msra.mxu0 %v150
  %4712 = vmatpush.msra.mxu0 %v147
  %4713 = vmatpush.msra.mxu0 %v144
  %4714 = vmatpush.msra.mxu0 %v141
  %4715 = vmatpush.msra.mxu0 %v138
  %4716 = vmatpush.msra.mxu0 %v135
  %4717 = vmatpush.msra.mxu0 %v132
  %4718 = vmatpush.msra.mxu0 %v129
  %4719 = vmatpush.msra.mxu0 %v126
  %4720 = vmatpush.msra.mxu0 %v123
  %4721 = vmatpush.msra.mxu0 %v120
  %4722 = vmatpush.msra.mxu0 %v117
  %4723 = vmatpush.msra.mxu0 %v114
  %4724 = vmatpush.msra.mxu0 %v111
  %4725 = vmatmul.f32.gmra.mxu0 %v4702
  %v4726 = vpop.f32.mrf.mxu0
  %v4727 = vadd.f32 0.0, %v4726
  %4728 = vdwg.mxu0
  %4729 = vmatpush.msra.mxu0 %v204
  %4730 = vmatpush.msra.mxu0 %v201
  %4731 = vmatpush.msra.mxu0 %v198
  %4732 = vmatpush.msra.mxu0 %v195
  %4733 = vmatpush.msra.mxu0 %v192
  %4734 = vmatpush.msra.mxu0 %v189
  %4735 = vmatpush.msra.mxu0 %v186
  %4736 = vmatpush.msra.mxu0 %v183
  %4737 = vmatpush.msra.mxu0 %v180
  %4738 = vmatpush.msra.mxu0 %v177
  %4739 = vmatpush.msra.mxu0 %v174
  %4740 = vmatpush.msra.mxu0 %v171
  %4741 = vmatpush.msra.mxu0 %v168
  %4742 = vmatpush.msra.mxu0 %v165
  %4743 = vmatpush.msra.mxu0 %v162
  %4744 = vmatpush.msra.mxu0 %v159
  %4745 = vmatmul.f32.gmra.mxu0 %v4703
  %v4746 = vpop.f32.mrf.mxu0
  %v4747 = vadd.f32 %v4727, %v4746
  %4748 = vdwg.mxu0
  %4749 = vmatpush.msra.mxu0 %v252
  %4750 = vmatpush.msra.mxu0 %v249
  %4751 = vmatpush.msra.mxu0 %v246
  %4752 = vmatpush.msra.mxu0 %v243
  %4753 = vmatpush.msra.mxu0 %v240
  %4754 = vmatpush.msra.mxu0 %v237
  %4755 = vmatpush.msra.mxu0 %v234
  %4756 = vmatpush.msra.mxu0 %v231
  %4757 = vmatpush.msra.mxu0 %v228
  %4758 = vmatpush.msra.mxu0 %v225
  %4759 = vmatpush.msra.mxu0 %v222
  %4760 = vmatpush.msra.mxu0 %v219
  %4761 = vmatpush.msra.mxu0 %v216
  %4762 = vmatpush.msra.mxu0 %v213
  %4763 = vmatpush.msra.mxu0 %v210
  %4764 = vmatpush.msra.mxu0 %v207
  %4765 = vmatmul.f32.gmra.mxu0 %v4704
  %v4766 = vpop.f32.mrf.mxu0
  %v4767 = vadd.f32 %v4747, %v4766
  %4768 = vdwg.mxu0
  %4769 = vmatpush.msra.mxu0 %v300
  %4770 = vmatpush.msra.mxu0 %v297
  %4771 = vmatpush.msra.mxu0 %v294
  %4772 = vmatpush.msra.mxu0 %v291
  %4773 = vmatpush.msra.mxu0 %v288
  %4774 = vmatpush.msra.mxu0 %v285
  %4775 = vmatpush.msra.mxu0 %v282
  %4776 = vmatpush.msra.mxu0 %v279
  %4777 = vmatpush.msra.mxu0 %v276
  %4778 = vmatpush.msra.mxu0 %v273
  %4779 = vmatpush.msra.mxu0 %v270
  %4780 = vmatpush.msra.mxu0 %v267
  %4781 = vmatpush.msra.mxu0 %v264
  %4782 = vmatpush.msra.mxu0 %v261
  %4783 = vmatpush.msra.mxu0 %v258
  %4784 = vmatpush.msra.mxu0 %v255
  %4785 = vmatmul.f32.gmra.mxu0 %v4705
  %v4786 = vpop.f32.mrf.mxu0
  %v4787 = vadd.f32 %v4767, %v4786
  %4788 = vdwg.mxu0
  %4789 = vmatpush.msra.mxu0 %v348
  %4790 = vmatpush.msra.mxu0 %v345
  %4791 = vmatpush.msra.mxu0 %v342
  %4792 = vmatpush.msra.mxu0 %v339
  %4793 = vmatpush.msra.mxu0 %v336
  %4794 = vmatpush.msra.mxu0 %v333
  %4795 = vmatpush.msra.mxu0 %v330
  %4796 = vmatpush.msra.mxu0 %v327
  %4797 = vmatpush.msra.mxu0 %v324
  %4798 = vmatpush.msra.mxu0 %v321
  %4799 = vmatpush.msra.mxu0 %v318
  %4800 = vmatpush.msra.mxu0 %v315
  %4801 = vmatpush.msra.mxu0 %v312
  %4802 = vmatpush.msra.mxu0 %v309
  %4803 = vmatpush.msra.mxu0 %v306
  %4804 = vmatpush.msra.mxu0 %v303
  %4805 = vmatmul.f32.gmra.mxu0 %v4706
  %v4806 = vpop.f32.mrf.mxu0
  %v4807 = vadd.f32 %v4787, %v4806
  %4808 = vdwg.mxu0
  %4809 = vmatpush.msra.mxu0 0.0
  %4810 = vmatpush.msra.mxu0 0.0
  %4811 = vmatpush.msra.mxu0 0.0
  %4812 = vmatpush.msra.mxu0 0.0
  %4813 = vmatpush.msra.mxu0 0.0
  %4814 = vmatpush.msra.mxu0 0.0
  %4815 = vmatpush.msra.mxu0 %v378
  %4816 = vmatpush.msra.mxu0 %v375
  %4817 = vmatpush.msra.mxu0 %v372
  %4818 = vmatpush.msra.mxu0 %v369
  %4819 = vmatpush.msra.mxu0 %v366
  %4820 = vmatpush.msra.mxu0 %v363
  %4821 = vmatpush.msra.mxu0 %v360
  %4822 = vmatpush.msra.mxu0 %v357
  %4823 = vmatpush.msra.mxu0 %v354
  %4824 = vmatpush.msra.mxu0 %v351
  %4825 = vmatmul.f32.gmra.mxu0 %v4707
  %v4826 = vpop.f32.mrf.mxu0
  %v4827 = vadd.f32 %v4807, %v4826
  %4828 = vdwg.mxu0
  %4829 = vmatpush.msra.mxu0 %v157
  %4830 = vmatpush.msra.mxu0 %v154
  %4831 = vmatpush.msra.mxu0 %v151
  %4832 = vmatpush.msra.mxu0 %v148
  %4833 = vmatpush.msra.mxu0 %v145
  %4834 = vmatpush.msra.mxu0 %v142
  %4835 = vmatpush.msra.mxu0 %v139
  %4836 = vmatpush.msra.mxu0 %v136
  %4837 = vmatpush.msra.mxu0 %v133
  %4838 = vmatpush.msra.mxu0 %v130
  %4839 = vmatpush.msra.mxu0 %v127
  %4840 = vmatpush.msra.mxu0 %v124
  %4841 = vmatpush.msra.mxu0 %v121
  %4842 = vmatpush.msra.mxu0 %v118
  %4843 = vmatpush.msra.mxu0 %v115
  %4844 = vmatpush.msra.mxu0 %v112
  %4845 = vmatmul.f32.gmra.mxu0 %v4702
  %v4846 = vpop.f32.mrf.mxu0
  %v4847 = vadd.f32 0.0, %v4846
  %4848 = vdwg.mxu0
  %4849 = vmatpush.msra.mxu0 %v205
  %4850 = vmatpush.msra.mxu0 %v202
  %4851 = vmatpush.msra.mxu0 %v199
  %4852 = vmatpush.msra.mxu0 %v196
  %4853 = vmatpush.msra.mxu0 %v193
  %4854 = vmatpush.msra.mxu0 %v190
  %4855 = vmatpush.msra.mxu0 %v187
  %4856 = vmatpush.msra.mxu0 %v184
  %4857 = vmatpush.msra.mxu0 %v181
  %4858 = vmatpush.msra.mxu0 %v178
  %4859 = vmatpush.msra.mxu0 %v175
  %4860 = vmatpush.msra.mxu0 %v172
  %4861 = vmatpush.msra.mxu0 %v169
  %4862 = vmatpush.msra.mxu0 %v166
  %4863 = vmatpush.msra.mxu0 %v163
  %4864 = vmatpush.msra.mxu0 %v160
  %4865 = vmatmul.f32.gmra.mxu0 %v4703
  %v4866 = vpop.f32.mrf.mxu0
  %v4867 = vadd.f32 %v4847, %v4866
  %4868 = vdwg.mxu0
  %4869 = vmatpush.msra.mxu0 %v253
  %4870 = vmatpush.msra.mxu0 %v250
  %4871 = vmatpush.msra.mxu0 %v247
  %4872 = vmatpush.msra.mxu0 %v244
  %4873 = vmatpush.msra.mxu0 %v241
  %4874 = vmatpush.msra.mxu0 %v238
  %4875 = vmatpush.msra.mxu0 %v235
  %4876 = vmatpush.msra.mxu0 %v232
  %4877 = vmatpush.msra.mxu0 %v229
  %4878 = vmatpush.msra.mxu0 %v226
  %4879 = vmatpush.msra.mxu0 %v223
  %4880 = vmatpush.msra.mxu0 %v220
  %4881 = vmatpush.msra.mxu0 %v217
  %4882 = vmatpush.msra.mxu0 %v214
  %4883 = vmatpush.msra.mxu0 %v211
  %4884 = vmatpush.msra.mxu0 %v208
  %4885 = vmatmul.f32.gmra.mxu0 %v4704
  %v4886 = vpop.f32.mrf.mxu0
  %v4887 = vadd.f32 %v4867, %v4886
  %4888 = vdwg.mxu0
  %4889 = vmatpush.msra.mxu0 %v301
  %4890 = vmatpush.msra.mxu0 %v298
  %4891 = vmatpush.msra.mxu0 %v295
  %4892 = vmatpush.msra.mxu0 %v292
  %4893 = vmatpush.msra.mxu0 %v289
  %4894 = vmatpush.msra.mxu0 %v286
  %4895 = vmatpush.msra.mxu0 %v283
  %4896 = vmatpush.msra.mxu0 %v280
  %4897 = vmatpush.msra.mxu0 %v277
  %4898 = vmatpush.msra.mxu0 %v274
  %4899 = vmatpush.msra.mxu0 %v271
  %4900 = vmatpush.msra.mxu0 %v268
  %4901 = vmatpush.msra.mxu0 %v265
  %4902 = vmatpush.msra.mxu0 %v262
  %4903 = vmatpush.msra.mxu0 %v259
  %4904 = vmatpush.msra.mxu0 %v256
  %4905 = vmatmul.f32.gmra.mxu0 %v4705
  %v4906 = vpop.f32.mrf.mxu0
  %v4907 = vadd.f32 %v4887, %v4906
  %4908 = vdwg.mxu0
  %4909 = vmatpush.msra.mxu0 %v349
  %4910 = vmatpush.msra.mxu0 %v346
  %4911 = vmatpush.msra.mxu0 %v343
  %4912 = vmatpush.msra.mxu0 %v340
  %4913 = vmatpush.msra.mxu0 %v337
  %4914 = vmatpush.msra.mxu0 %v334
  %4915 = vmatpush.msra.mxu0 %v331
  %4916 = vmatpush.msra.mxu0 %v328
  %4917 = vmatpush.msra.mxu0 %v325
  %4918 = vmatpush.msra.mxu0 %v322
  %4919 = vmatpush.msra.mxu0 %v319
  %4920 = vmatpush.msra.mxu0 %v316
  %4921 = vmatpush.msra.mxu0 %v313
  %4922 = vmatpush.msra.mxu0 %v310
  %4923 = vmatpush.msra.mxu0 %v307
  %4924 = vmatpush.msra.mxu0 %v304
  %4925 = vmatmul.f32.gmra.mxu0 %v4706
  %v4926 = vpop.f32.mrf.mxu0
  %v4927 = vadd.f32 %v4907, %v4926
  %4928 = vdwg.mxu0
  %4929 = vmatpush.msra.mxu0 0.0
  %4930 = vmatpush.msra.mxu0 0.0
  %4931 = vmatpush.msra.mxu0 0.0
  %4932 = vmatpush.msra.mxu0 0.0
  %4933 = vmatpush.msra.mxu0 0.0
  %4934 = vmatpush.msra.mxu0 0.0
  %4935 = vmatpush.msra.mxu0 %v379
  %4936 = vmatpush.msra.mxu0 %v376
  %4937 = vmatpush.msra.mxu0 %v373
  %4938 = vmatpush.msra.mxu0 %v370
  %4939 = vmatpush.msra.mxu0 %v367
  %4940 = vmatpush.msra.mxu0 %v364
  %4941 = vmatpush.msra.mxu0 %v361
  %4942 = vmatpush.msra.mxu0 %v358
  %4943 = vmatpush.msra.mxu0 %v355
  %4944 = vmatpush.msra.mxu0 %v352
  %4945 = vmatmul.f32.gmra.mxu0 %v4707
  %v4946 = vpop.f32.mrf.mxu0
  %v4947 = vadd.f32 %v4927, %v4946
  %4948 = vdwg.mxu0
  %4949 = vmatpush.msra.mxu0 %v158
  %4950 = vmatpush.msra.mxu0 %v155
  %4951 = vmatpush.msra.mxu0 %v152
  %4952 = vmatpush.msra.mxu0 %v149
  %4953 = vmatpush.msra.mxu0 %v146
  %4954 = vmatpush.msra.mxu0 %v143
  %4955 = vmatpush.msra.mxu0 %v140
  %4956 = vmatpush.msra.mxu0 %v137
  %4957 = vmatpush.msra.mxu0 %v134
  %4958 = vmatpush.msra.mxu0 %v131
  %4959 = vmatpush.msra.mxu0 %v128
  %4960 = vmatpush.msra.mxu0 %v125
  %4961 = vmatpush.msra.mxu0 %v122
  %4962 = vmatpush.msra.mxu0 %v119
  %4963 = vmatpush.msra.mxu0 %v116
  %4964 = vmatpush.msra.mxu0 %v113
  %4965 = vmatmul.f32.gmra.mxu0 %v4702
  %v4966 = vpop.f32.mrf.mxu0
  %v4967 = vadd.f32 0.0, %v4966
  %4968 = vdwg.mxu0
  %4969 = vmatpush.msra.mxu0 %v206
  %4970 = vmatpush.msra.mxu0 %v203
  %4971 = vmatpush.msra.mxu0 %v200
  %4972 = vmatpush.msra.mxu0 %v197
  %4973 = vmatpush.msra.mxu0 %v194
  %4974 = vmatpush.msra.mxu0 %v191
  %4975 = vmatpush.msra.mxu0 %v188
  %4976 = vmatpush.msra.mxu0 %v185
  %4977 = vmatpush.msra.mxu0 %v182
  %4978 = vmatpush.msra.mxu0 %v179
  %4979 = vmatpush.msra.mxu0 %v176
  %4980 = vmatpush.msra.mxu0 %v173
  %4981 = vmatpush.msra.mxu0 %v170
  %4982 = vmatpush.msra.mxu0 %v167
  %4983 = vmatpush.msra.mxu0 %v164
  %4984 = vmatpush.msra.mxu0 %v161
  %4985 = vmatmul.f32.gmra.mxu0 %v4703
  %v4986 = vpop.f32.mrf.mxu0
  %v4987 = vadd.f32 %v4967, %v4986
  %4988 = vdwg.mxu0
  %4989 = vmatpush.msra.mxu0 %v254
  %4990 = vmatpush.msra.mxu0 %v251
  %4991 = vmatpush.msra.mxu0 %v248
  %4992 = vmatpush.msra.mxu0 %v245
  %4993 = vmatpush.msra.mxu0 %v242
  %4994 = vmatpush.msra.mxu0 %v239
  %4995 = vmatpush.msra.mxu0 %v236
  %4996 = vmatpush.msra.mxu0 %v233
  %4997 = vmatpush.msra.mxu0 %v230
  %4998 = vmatpush.msra.mxu0 %v227
  %4999 = vmatpush.msra.mxu0 %v224
  %5000 = vmatpush.msra.mxu0 %v221
  %5001 = vmatpush.msra.mxu0 %v218
  %5002 = vmatpush.msra.mxu0 %v215
  %5003 = vmatpush.msra.mxu0 %v212
  %5004 = vmatpush.msra.mxu0 %v209
  %5005 = vmatmul.f32.gmra.mxu0 %v4704
  %v5006 = vpop.f32.mrf.mxu0
  %v5007 = vadd.f32 %v4987, %v5006
  %5008 = vdwg.mxu0
  %5009 = vmatpush.msra.mxu0 %v302
  %5010 = vmatpush.msra.mxu0 %v299
  %5011 = vmatpush.msra.mxu0 %v296
  %5012 = vmatpush.msra.mxu0 %v293
  %5013 = vmatpush.msra.mxu0 %v290
  %5014 = vmatpush.msra.mxu0 %v287
  %5015 = vmatpush.msra.mxu0 %v284
  %5016 = vmatpush.msra.mxu0 %v281
  %5017 = vmatpush.msra.mxu0 %v278
  %5018 = vmatpush.msra.mxu0 %v275
  %5019 = vmatpush.msra.mxu0 %v272
  %5020 = vmatpush.msra.mxu0 %v269
  %5021 = vmatpush.msra.mxu0 %v266
  %5022 = vmatpush.msra.mxu0 %v263
  %5023 = vmatpush.msra.mxu0 %v260
  %5024 = vmatpush.msra.mxu0 %v257
  %5025 = vmatmul.f32.gmra.mxu0 %v4705
  %v5026 = vpop.f32.mrf.mxu0
  %v5027 = vadd.f32 %v5007, %v5026
  %5028 = vdwg.mxu0
  %5029 = vmatpush.msra.mxu0 %v350
  %5030 = vmatpush.msra.mxu0 %v347
  %5031 = vmatpush.msra.mxu0 %v344
  %5032 = vmatpush.msra.mxu0 %v341
  %5033 = vmatpush.msra.mxu0 %v338
  %5034 = vmatpush.msra.mxu0 %v335
  %5035 = vmatpush.msra.mxu0 %v332
  %5036 = vmatpush.msra.mxu0 %v329
  %5037 = vmatpush.msra.mxu0 %v326
  %5038 = vmatpush.msra.mxu0 %v323
  %5039 = vmatpush.msra.mxu0 %v320
  %5040 = vmatpush.msra.mxu0 %v317
  %5041 = vmatpush.msra.mxu0 %v314
  %5042 = vmatpush.msra.mxu0 %v311
  %5043 = vmatpush.msra.mxu0 %v308
  %5044 = vmatpush.msra.mxu0 %v305
  %5045 = vmatmul.f32.gmra.mxu0 %v4706
  %v5046 = vpop.f32.mrf.mxu0
  %v5047 = vadd.f32 %v5027, %v5046
  %5048 = vdwg.mxu0
  %5049 = vmatpush.msra.mxu0 0.0
  %5050 = vmatpush.msra.mxu0 0.0
  %5051 = vmatpush.msra.mxu0 0.0
  %5052 = vmatpush.msra.mxu0 0.0
  %5053 = vmatpush.msra.mxu0 0.0
  %5054 = vmatpush.msra.mxu0 0.0
  %5055 = vmatpush.msra.mxu0 %v380
  %5056 = vmatpush.msra.mxu0 %v377
  %5057 = vmatpush.msra.mxu0 %v374
  %5058 = vmatpush.msra.mxu0 %v371
  %5059 = vmatpush.msra.mxu0 %v368
  %5060 = vmatpush.msra.mxu0 %v365
  %5061 = vmatpush.msra.mxu0 %v362
  %5062 = vmatpush.msra.mxu0 %v359
  %5063 = vmatpush.msra.mxu0 %v356
  %5064 = vmatpush.msra.mxu0 %v353
  %5065 = vmatmul.f32.gmra.mxu0 %v4707
  %v5066 = vpop.f32.mrf.mxu0
  %v5067 = vadd.f32 %v5047, %v5066
  %5068 = vdwg.mxu0
  %5071 = vrot.lane.b32.xlu0 %v4827, 48
  %v5072 = vpop.permute.xlu0 %5071
  %5073 = vrot.lane.b32.xlu0 %v4947, 48
  %v5074 = vpop.permute.xlu0 %5073
  %v5075 = vsel %vm4259, %v5072, %v5074
  %v5077 = vmax.f32 %v4827, %v5075
  %5079 = vrot.lane.b32.xlu0 %v5067, 48
  %v5080 = vpop.permute.xlu0 %5079
  %v5081 = vsel %vm4259, %v5074, %v5080
  %v5083 = vmax.f32 %v4947, %v5081
  %5085 = vrot.lane.b32.xlu0 %v5083, 96
  %v5086 = vpop.permute.xlu0 %5085
  %v5088 = vmax.f32 %v5077, %v5086
  %v5089 = vadd.f32 %v5088, %v4275
  %v5090 = vmax.f32 %v5089, 0.0
  %5091 = vrot.lane.b32.xlu0 %v2760, 120
  %v5092 = vpop.permute.xlu0 %5091
  %5094 = vrot.lane.b32.xlu0 %v3035, 112
  %v5095 = vpop.permute.xlu0 %5094
  %5097 = vrot.lane.b32.xlu0 %v3310, 104
  %v5098 = vpop.permute.xlu0 %5097
  %5101 = vrot.lane.b32.xlu0 %v3585, 96
  %v5102 = vpop.permute.xlu0 %5101
  %5105 = vrot.lane.b32.xlu0 %v3860, 88
  %v5106 = vpop.permute.xlu0 %5105
  %v5108 = vsel %vm3881, %v2485, %v5092
  %v5109 = vsel %vm632, %v5092, %v5095
  %v5110 = vsel %vm3884, %v5095, %v5098
  %v5111 = vsel %vm3886, %v5098, %v5102
  %v5112 = vsel %vm3888, %v5102, %v5106
  %v5113 = vsel %vm3890, %v5106, 0
  %5115 = vmatpush.msra.mxu0 %v156
  %5116 = vmatpush.msra.mxu0 %v153
  %5117 = vmatpush.msra.mxu0 %v150
  %5118 = vmatpush.msra.mxu0 %v147
  %5119 = vmatpush.msra.mxu0 %v144
  %5120 = vmatpush.msra.mxu0 %v141
  %5121 = vmatpush.msra.mxu0 %v138
  %5122 = vmatpush.msra.mxu0 %v135
  %5123 = vmatpush.msra.mxu0 %v132
  %5124 = vmatpush.msra.mxu0 %v129
  %5125 = vmatpush.msra.mxu0 %v126
  %5126 = vmatpush.msra.mxu0 %v123
  %5127 = vmatpush.msra.mxu0 %v120
  %5128 = vmatpush.msra.mxu0 %v117
  %5129 = vmatpush.msra.mxu0 %v114
  %5130 = vmatpush.msra.mxu0 %v111
  %5131 = vmatmul.f32.gmra.mxu0 %v5108
  %v5132 = vpop.f32.mrf.mxu0
  %v5133 = vadd.f32 0.0, %v5132
  %5134 = vdwg.mxu0
  %5135 = vmatpush.msra.mxu0 %v204
  %5136 = vmatpush.msra.mxu0 %v201
  %5137 = vmatpush.msra.mxu0 %v198
  %5138 = vmatpush.msra.mxu0 %v195
  %5139 = vmatpush.msra.mxu0 %v192
  %5140 = vmatpush.msra.mxu0 %v189
  %5141 = vmatpush.msra.mxu0 %v186
  %5142 = vmatpush.msra.mxu0 %v183
  %5143 = vmatpush.msra.mxu0 %v180
  %5144 = vmatpush.msra.mxu0 %v177
  %5145 = vmatpush.msra.mxu0 %v174
  %5146 = vmatpush.msra.mxu0 %v171
  %5147 = vmatpush.msra.mxu0 %v168
  %5148 = vmatpush.msra.mxu0 %v165
  %5149 = vmatpush.msra.mxu0 %v162
  %5150 = vmatpush.msra.mxu0 %v159
  %5151 = vmatmul.f32.gmra.mxu0 %v5109
  %v5152 = vpop.f32.mrf.mxu0
  %v5153 = vadd.f32 %v5133, %v5152
  %5154 = vdwg.mxu0
  %5155 = vmatpush.msra.mxu0 %v252
  %5156 = vmatpush.msra.mxu0 %v249
  %5157 = vmatpush.msra.mxu0 %v246
  %5158 = vmatpush.msra.mxu0 %v243
  %5159 = vmatpush.msra.mxu0 %v240
  %5160 = vmatpush.msra.mxu0 %v237
  %5161 = vmatpush.msra.mxu0 %v234
  %5162 = vmatpush.msra.mxu0 %v231
  %5163 = vmatpush.msra.mxu0 %v228
  %5164 = vmatpush.msra.mxu0 %v225
  %5165 = vmatpush.msra.mxu0 %v222
  %5166 = vmatpush.msra.mxu0 %v219
  %5167 = vmatpush.msra.mxu0 %v216
  %5168 = vmatpush.msra.mxu0 %v213
  %5169 = vmatpush.msra.mxu0 %v210
  %5170 = vmatpush.msra.mxu0 %v207
  %5171 = vmatmul.f32.gmra.mxu0 %v5110
  %v5172 = vpop.f32.mrf.mxu0
  %v5173 = vadd.f32 %v5153, %v5172
  %5174 = vdwg.mxu0
  %5175 = vmatpush.msra.mxu0 %v300
  %5176 = vmatpush.msra.mxu0 %v297
  %5177 = vmatpush.msra.mxu0 %v294
  %5178 = vmatpush.msra.mxu0 %v291
  %5179 = vmatpush.msra.mxu0 %v288
  %5180 = vmatpush.msra.mxu0 %v285
  %5181 = vmatpush.msra.mxu0 %v282
  %5182 = vmatpush.msra.mxu0 %v279
  %5183 = vmatpush.msra.mxu0 %v276
  %5184 = vmatpush.msra.mxu0 %v273
  %5185 = vmatpush.msra.mxu0 %v270
  %5186 = vmatpush.msra.mxu0 %v267
  %5187 = vmatpush.msra.mxu0 %v264
  %5188 = vmatpush.msra.mxu0 %v261
  %5189 = vmatpush.msra.mxu0 %v258
  %5190 = vmatpush.msra.mxu0 %v255
  %5191 = vmatmul.f32.gmra.mxu0 %v5111
  %v5192 = vpop.f32.mrf.mxu0
  %v5193 = vadd.f32 %v5173, %v5192
  %5194 = vdwg.mxu0
  %5195 = vmatpush.msra.mxu0 %v348
  %5196 = vmatpush.msra.mxu0 %v345
  %5197 = vmatpush.msra.mxu0 %v342
  %5198 = vmatpush.msra.mxu0 %v339
  %5199 = vmatpush.msra.mxu0 %v336
  %5200 = vmatpush.msra.mxu0 %v333
  %5201 = vmatpush.msra.mxu0 %v330
  %5202 = vmatpush.msra.mxu0 %v327
  %5203 = vmatpush.msra.mxu0 %v324
  %5204 = vmatpush.msra.mxu0 %v321
  %5205 = vmatpush.msra.mxu0 %v318
  %5206 = vmatpush.msra.mxu0 %v315
  %5207 = vmatpush.msra.mxu0 %v312
  %5208 = vmatpush.msra.mxu0 %v309
  %5209 = vmatpush.msra.mxu0 %v306
  %5210 = vmatpush.msra.mxu0 %v303
  %5211 = vmatmul.f32.gmra.mxu0 %v5112
  %v5212 = vpop.f32.mrf.mxu0
  %v5213 = vadd.f32 %v5193, %v5212
  %5214 = vdwg.mxu0
  %5215 = vmatpush.msra.mxu0 0.0
  %5216 = vmatpush.msra.mxu0 0.0
  %5217 = vmatpush.msra.mxu0 0.0
  %5218 = vmatpush.msra.mxu0 0.0
  %5219 = vmatpush.msra.mxu0 0.0
  %5220 = vmatpush.msra.mxu0 0.0
  %5221 = vmatpush.msra.mxu0 %v378
  %5222 = vmatpush.msra.mxu0 %v375
  %5223 = vmatpush.msra.mxu0 %v372
  %5224 = vmatpush.msra.mxu0 %v369
  %5225 = vmatpush.msra.mxu0 %v366
  %5226 = vmatpush.msra.mxu0 %v363
  %5227 = vmatpush.msra.mxu0 %v360
  %5228 = vmatpush.msra.mxu0 %v357
  %5229 = vmatpush.msra.mxu0 %v354
  %5230 = vmatpush.msra.mxu0 %v351
  %5231 = vmatmul.f32.gmra.mxu0 %v5113
  %v5232 = vpop.f32.mrf.mxu0
  %v5233 = vadd.f32 %v5213, %v5232
  %5234 = vdwg.mxu0
  %5235 = vmatpush.msra.mxu0 %v157
  %5236 = vmatpush.msra.mxu0 %v154
  %5237 = vmatpush.msra.mxu0 %v151
  %5238 = vmatpush.msra.mxu0 %v148
  %5239 = vmatpush.msra.mxu0 %v145
  %5240 = vmatpush.msra.mxu0 %v142
  %5241 = vmatpush.msra.mxu0 %v139
  %5242 = vmatpush.msra.mxu0 %v136
  %5243 = vmatpush.msra.mxu0 %v133
  %5244 = vmatpush.msra.mxu0 %v130
  %5245 = vmatpush.msra.mxu0 %v127
  %5246 = vmatpush.msra.mxu0 %v124
  %5247 = vmatpush.msra.mxu0 %v121
  %5248 = vmatpush.msra.mxu0 %v118
  %5249 = vmatpush.msra.mxu0 %v115
  %5250 = vmatpush.msra.mxu0 %v112
  %5251 = vmatmul.f32.gmra.mxu0 %v5108
  %v5252 = vpop.f32.mrf.mxu0
  %v5253 = vadd.f32 0.0, %v5252
  %5254 = vdwg.mxu0
  %5255 = vmatpush.msra.mxu0 %v205
  %5256 = vmatpush.msra.mxu0 %v202
  %5257 = vmatpush.msra.mxu0 %v199
  %5258 = vmatpush.msra.mxu0 %v196
  %5259 = vmatpush.msra.mxu0 %v193
  %5260 = vmatpush.msra.mxu0 %v190
  %5261 = vmatpush.msra.mxu0 %v187
  %5262 = vmatpush.msra.mxu0 %v184
  %5263 = vmatpush.msra.mxu0 %v181
  %5264 = vmatpush.msra.mxu0 %v178
  %5265 = vmatpush.msra.mxu0 %v175
  %5266 = vmatpush.msra.mxu0 %v172
  %5267 = vmatpush.msra.mxu0 %v169
  %5268 = vmatpush.msra.mxu0 %v166
  %5269 = vmatpush.msra.mxu0 %v163
  %5270 = vmatpush.msra.mxu0 %v160
  %5271 = vmatmul.f32.gmra.mxu0 %v5109
  %v5272 = vpop.f32.mrf.mxu0
  %v5273 = vadd.f32 %v5253, %v5272
  %5274 = vdwg.mxu0
  %5275 = vmatpush.msra.mxu0 %v253
  %5276 = vmatpush.msra.mxu0 %v250
  %5277 = vmatpush.msra.mxu0 %v247
  %5278 = vmatpush.msra.mxu0 %v244
  %5279 = vmatpush.msra.mxu0 %v241
  %5280 = vmatpush.msra.mxu0 %v238
  %5281 = vmatpush.msra.mxu0 %v235
  %5282 = vmatpush.msra.mxu0 %v232
  %5283 = vmatpush.msra.mxu0 %v229
  %5284 = vmatpush.msra.mxu0 %v226
  %5285 = vmatpush.msra.mxu0 %v223
  %5286 = vmatpush.msra.mxu0 %v220
  %5287 = vmatpush.msra.mxu0 %v217
  %5288 = vmatpush.msra.mxu0 %v214
  %5289 = vmatpush.msra.mxu0 %v211
  %5290 = vmatpush.msra.mxu0 %v208
  %5291 = vmatmul.f32.gmra.mxu0 %v5110
  %v5292 = vpop.f32.mrf.mxu0
  %v5293 = vadd.f32 %v5273, %v5292
  %5294 = vdwg.mxu0
  %5295 = vmatpush.msra.mxu0 %v301
  %5296 = vmatpush.msra.mxu0 %v298
  %5297 = vmatpush.msra.mxu0 %v295
  %5298 = vmatpush.msra.mxu0 %v292
  %5299 = vmatpush.msra.mxu0 %v289
  %5300 = vmatpush.msra.mxu0 %v286
  %5301 = vmatpush.msra.mxu0 %v283
  %5302 = vmatpush.msra.mxu0 %v280
  %5303 = vmatpush.msra.mxu0 %v277
  %5304 = vmatpush.msra.mxu0 %v274
  %5305 = vmatpush.msra.mxu0 %v271
  %5306 = vmatpush.msra.mxu0 %v268
  %5307 = vmatpush.msra.mxu0 %v265
  %5308 = vmatpush.msra.mxu0 %v262
  %5309 = vmatpush.msra.mxu0 %v259
  %5310 = vmatpush.msra.mxu0 %v256
  %5311 = vmatmul.f32.gmra.mxu0 %v5111
  %v5312 = vpop.f32.mrf.mxu0
  %v5313 = vadd.f32 %v5293, %v5312
  %5314 = vdwg.mxu0
  %5315 = vmatpush.msra.mxu0 %v349
  %5316 = vmatpush.msra.mxu0 %v346
  %5317 = vmatpush.msra.mxu0 %v343
  %5318 = vmatpush.msra.mxu0 %v340
  %5319 = vmatpush.msra.mxu0 %v337
  %5320 = vmatpush.msra.mxu0 %v334
  %5321 = vmatpush.msra.mxu0 %v331
  %5322 = vmatpush.msra.mxu0 %v328
  %5323 = vmatpush.msra.mxu0 %v325
  %5324 = vmatpush.msra.mxu0 %v322
  %5325 = vmatpush.msra.mxu0 %v319
  %5326 = vmatpush.msra.mxu0 %v316
  %5327 = vmatpush.msra.mxu0 %v313
  %5328 = vmatpush.msra.mxu0 %v310
  %5329 = vmatpush.msra.mxu0 %v307
  %5330 = vmatpush.msra.mxu0 %v304
  %5331 = vmatmul.f32.gmra.mxu0 %v5112
  %v5332 = vpop.f32.mrf.mxu0
  %v5333 = vadd.f32 %v5313, %v5332
  %5334 = vdwg.mxu0
  %5335 = vmatpush.msra.mxu0 0.0
  %5336 = vmatpush.msra.mxu0 0.0
  %5337 = vmatpush.msra.mxu0 0.0
  %5338 = vmatpush.msra.mxu0 0.0
  %5339 = vmatpush.msra.mxu0 0.0
  %5340 = vmatpush.msra.mxu0 0.0
  %5341 = vmatpush.msra.mxu0 %v379
  %5342 = vmatpush.msra.mxu0 %v376
  %5343 = vmatpush.msra.mxu0 %v373
  %5344 = vmatpush.msra.mxu0 %v370
  %5345 = vmatpush.msra.mxu0 %v367
  %5346 = vmatpush.msra.mxu0 %v364
  %5347 = vmatpush.msra.mxu0 %v361
  %5348 = vmatpush.msra.mxu0 %v358
  %5349 = vmatpush.msra.mxu0 %v355
  %5350 = vmatpush.msra.mxu0 %v352
  %5351 = vmatmul.f32.gmra.mxu0 %v5113
  %v5352 = vpop.f32.mrf.mxu0
  %v5353 = vadd.f32 %v5333, %v5352
  %5354 = vdwg.mxu0
  %5355 = vmatpush.msra.mxu0 %v158
  %5356 = vmatpush.msra.mxu0 %v155
  %5357 = vmatpush.msra.mxu0 %v152
  %5358 = vmatpush.msra.mxu0 %v149
  %5359 = vmatpush.msra.mxu0 %v146
  %5360 = vmatpush.msra.mxu0 %v143
  %5361 = vmatpush.msra.mxu0 %v140
  %5362 = vmatpush.msra.mxu0 %v137
  %5363 = vmatpush.msra.mxu0 %v134
  %5364 = vmatpush.msra.mxu0 %v131
  %5365 = vmatpush.msra.mxu0 %v128
  %5366 = vmatpush.msra.mxu0 %v125
  %5367 = vmatpush.msra.mxu0 %v122
  %5368 = vmatpush.msra.mxu0 %v119
  %5369 = vmatpush.msra.mxu0 %v116
  %5370 = vmatpush.msra.mxu0 %v113
  %5371 = vmatmul.f32.gmra.mxu0 %v5108
  %v5372 = vpop.f32.mrf.mxu0
  %v5373 = vadd.f32 0.0, %v5372
  %5374 = vdwg.mxu0
  %5375 = vmatpush.msra.mxu0 %v206
  %5376 = vmatpush.msra.mxu0 %v203
  %5377 = vmatpush.msra.mxu0 %v200
  %5378 = vmatpush.msra.mxu0 %v197
  %5379 = vmatpush.msra.mxu0 %v194
  %5380 = vmatpush.msra.mxu0 %v191
  %5381 = vmatpush.msra.mxu0 %v188
  %5382 = vmatpush.msra.mxu0 %v185
  %5383 = vmatpush.msra.mxu0 %v182
  %5384 = vmatpush.msra.mxu0 %v179
  %5385 = vmatpush.msra.mxu0 %v176
  %5386 = vmatpush.msra.mxu0 %v173
  %5387 = vmatpush.msra.mxu0 %v170
  %5388 = vmatpush.msra.mxu0 %v167
  %5389 = vmatpush.msra.mxu0 %v164
  %5390 = vmatpush.msra.mxu0 %v161
  %5391 = vmatmul.f32.gmra.mxu0 %v5109
  %v5392 = vpop.f32.mrf.mxu0
  %v5393 = vadd.f32 %v5373, %v5392
  %5394 = vdwg.mxu0
  %5395 = vmatpush.msra.mxu0 %v254
  %5396 = vmatpush.msra.mxu0 %v251
  %5397 = vmatpush.msra.mxu0 %v248
  %5398 = vmatpush.msra.mxu0 %v245
  %5399 = vmatpush.msra.mxu0 %v242
  %5400 = vmatpush.msra.mxu0 %v239
  %5401 = vmatpush.msra.mxu0 %v236
  %5402 = vmatpush.msra.mxu0 %v233
  %5403 = vmatpush.msra.mxu0 %v230
  %5404 = vmatpush.msra.mxu0 %v227
  %5405 = vmatpush.msra.mxu0 %v224
  %5406 = vmatpush.msra.mxu0 %v221
  %5407 = vmatpush.msra.mxu0 %v218
  %5408 = vmatpush.msra.mxu0 %v215
  %5409 = vmatpush.msra.mxu0 %v212
  %5410 = vmatpush.msra.mxu0 %v209
  %5411 = vmatmul.f32.gmra.mxu0 %v5110
  %v5412 = vpop.f32.mrf.mxu0
  %v5413 = vadd.f32 %v5393, %v5412
  %5414 = vdwg.mxu0
  %5415 = vmatpush.msra.mxu0 %v302
  %5416 = vmatpush.msra.mxu0 %v299
  %5417 = vmatpush.msra.mxu0 %v296
  %5418 = vmatpush.msra.mxu0 %v293
  %5419 = vmatpush.msra.mxu0 %v290
  %5420 = vmatpush.msra.mxu0 %v287
  %5421 = vmatpush.msra.mxu0 %v284
  %5422 = vmatpush.msra.mxu0 %v281
  %5423 = vmatpush.msra.mxu0 %v278
  %5424 = vmatpush.msra.mxu0 %v275
  %5425 = vmatpush.msra.mxu0 %v272
  %5426 = vmatpush.msra.mxu0 %v269
  %5427 = vmatpush.msra.mxu0 %v266
  %5428 = vmatpush.msra.mxu0 %v263
  %5429 = vmatpush.msra.mxu0 %v260
  %5430 = vmatpush.msra.mxu0 %v257
  %5431 = vmatmul.f32.gmra.mxu0 %v5111
  %v5432 = vpop.f32.mrf.mxu0
  %v5433 = vadd.f32 %v5413, %v5432
  %5434 = vdwg.mxu0
  %5435 = vmatpush.msra.mxu0 %v350
  %5436 = vmatpush.msra.mxu0 %v347
  %5437 = vmatpush.msra.mxu0 %v344
  %5438 = vmatpush.msra.mxu0 %v341
  %5439 = vmatpush.msra.mxu0 %v338
  %5440 = vmatpush.msra.mxu0 %v335
  %5441 = vmatpush.msra.mxu0 %v332
  %5442 = vmatpush.msra.mxu0 %v329
  %5443 = vmatpush.msra.mxu0 %v326
  %5444 = vmatpush.msra.mxu0 %v323
  %5445 = vmatpush.msra.mxu0 %v320
  %5446 = vmatpush.msra.mxu0 %v317
  %5447 = vmatpush.msra.mxu0 %v314
  %5448 = vmatpush.msra.mxu0 %v311
  %5449 = vmatpush.msra.mxu0 %v308
  %5450 = vmatpush.msra.mxu0 %v305
  %5451 = vmatmul.f32.gmra.mxu0 %v5112
  %v5452 = vpop.f32.mrf.mxu0
  %v5453 = vadd.f32 %v5433, %v5452
  %5454 = vdwg.mxu0
  %5455 = vmatpush.msra.mxu0 0.0
  %5456 = vmatpush.msra.mxu0 0.0
  %5457 = vmatpush.msra.mxu0 0.0
  %5458 = vmatpush.msra.mxu0 0.0
  %5459 = vmatpush.msra.mxu0 0.0
  %5460 = vmatpush.msra.mxu0 0.0
  %5461 = vmatpush.msra.mxu0 %v380
  %5462 = vmatpush.msra.mxu0 %v377
  %5463 = vmatpush.msra.mxu0 %v374
  %5464 = vmatpush.msra.mxu0 %v371
  %5465 = vmatpush.msra.mxu0 %v368
  %5466 = vmatpush.msra.mxu0 %v365
  %5467 = vmatpush.msra.mxu0 %v362
  %5468 = vmatpush.msra.mxu0 %v359
  %5469 = vmatpush.msra.mxu0 %v356
  %5470 = vmatpush.msra.mxu0 %v353
  %5471 = vmatmul.f32.gmra.mxu0 %v5113
  %v5472 = vpop.f32.mrf.mxu0
  %v5473 = vadd.f32 %v5453, %v5472
  %5474 = vdwg.mxu0
  %5477 = vrot.lane.b32.xlu0 %v5233, 48
  %v5478 = vpop.permute.xlu0 %5477
  %5479 = vrot.lane.b32.xlu0 %v5353, 48
  %v5480 = vpop.permute.xlu0 %5479
  %v5481 = vsel %vm4259, %v5478, %v5480
  %v5483 = vmax.f32 %v5233, %v5481
  %5485 = vrot.lane.b32.xlu0 %v5473, 48
  %v5486 = vpop.permute.xlu0 %5485
  %v5487 = vsel %vm4259, %v5480, %v5486
  %v5489 = vmax.f32 %v5353, %v5487
  %5491 = vrot.lane.b32.xlu0 %v5489, 96
  %v5492 = vpop.permute.xlu0 %5491
  %v5494 = vmax.f32 %v5483, %v5492
  %v5495 = vadd.f32 %v5494, %v4275
  %v5496 = vmax.f32 %v5495, 0.0
  %5498 = vrot.lane.b32.xlu0 %v4684, 80
  %v5499 = vpop.permute.xlu0 %5498
  %5502 = vrot.lane.b32.xlu0 %v5090, 32
  %v5503 = vpop.permute.xlu0 %5502
  %5506 = vrot.lane.b32.xlu0 %v5496, 112
  %v5507 = vpop.permute.xlu0 %5506
  %v5509 = vsel %vm3890, %v4278, %v5499
  %vm5510 = vcmask 261120
  %v5511 = vsel %vm5510, %v5499, %v5503
  %v5512 = vsel %vm632, %v5511, %v5507
  %v5514 = vperm.slane %v422, 0
  %vm5516 = vcmask 523264
  %v5517 = vsel %vm5516, %v5507, 0
  %5519 = vmatpush.msra.mxu0 %v397
  %5520 = vmatpush.msra.mxu0 %v396
  %5521 = vmatpush.msra.mxu0 %v395
  %5522 = vmatpush.msra.mxu0 %v394
  %5523 = vmatpush.msra.mxu0 %v393
  %5524 = vmatpush.msra.mxu0 %v392
  %5525 = vmatpush.msra.mxu0 %v391
  %5526 = vmatpush.msra.mxu0 %v390
  %5527 = vmatpush.msra.mxu0 %v389
  %5528 = vmatpush.msra.mxu0 %v388
  %5529 = vmatpush.msra.mxu0 %v387
  %5530 = vmatpush.msra.mxu0 %v386
  %5531 = vmatpush.msra.mxu0 %v385
  %5532 = vmatpush.msra.mxu0 %v384
  %5533 = vmatpush.msra.mxu0 %v383
  %5534 = vmatpush.msra.mxu0 %v382
  %5535 = vmatmul.f32.gmra.mxu0 %v5509
  %v5536 = vpop.f32.mrf.mxu0
  %v5537 = vadd.f32 %v5514, %v5536
  %5538 = vdwg.mxu0
  %5539 = vmatpush.msra.mxu0 %v413
  %5540 = vmatpush.msra.mxu0 %v412
  %5541 = vmatpush.msra.mxu0 %v411
  %5542 = vmatpush.msra.mxu0 %v410
  %5543 = vmatpush.msra.mxu0 %v409
  %5544 = vmatpush.msra.mxu0 %v408
  %5545 = vmatpush.msra.mxu0 %v407
  %5546 = vmatpush.msra.mxu0 %v406
  %5547 = vmatpush.msra.mxu0 %v405
  %5548 = vmatpush.msra.mxu0 %v404
  %5549 = vmatpush.msra.mxu0 %v403
  %5550 = vmatpush.msra.mxu0 %v402
  %5551 = vmatpush.msra.mxu0 %v401
  %5552 = vmatpush.msra.mxu0 %v400
  %5553 = vmatpush.msra.mxu0 %v399
  %5554 = vmatpush.msra.mxu0 %v398
  %5555 = vmatmul.f32.gmra.mxu0 %v5512
  %v5556 = vpop.f32.mrf.mxu0
  %v5557 = vadd.f32 %v5537, %v5556
  %5558 = vdwg.mxu0
  %5559 = vmatpush.msra.mxu0 0.0
  %5560 = vmatpush.msra.mxu0 0.0
  %5561 = vmatpush.msra.mxu0 0.0
  %5562 = vmatpush.msra.mxu0 0.0
  %5563 = vmatpush.msra.mxu0 0.0
  %5564 = vmatpush.msra.mxu0 0.0
  %5565 = vmatpush.msra.mxu0 0.0
  %5566 = vmatpush.msra.mxu0 0.0
  %5567 = vmatpush.msra.mxu0 %v421
  %5568 = vmatpush.msra.mxu0 %v420
  %5569 = vmatpush.msra.mxu0 %v419
  %5570 = vmatpush.msra.mxu0 %v418
  %5571 = vmatpush.msra.mxu0 %v417
  %5572 = vmatpush.msra.mxu0 %v416
  %5573 = vmatpush.msra.mxu0 %v415
  %5574 = vmatpush.msra.mxu0 %v414
  %5575 = vmatmul.f32.gmra.mxu0 %v5517
  %v5576 = vpop.f32.mrf.mxu0
  %v5577 = vadd.f32 %v5557, %v5576
  %5578 = vdwg.mxu0
  %vm5579 = vcmask 80896
  %5580 = vst.msk [vmem:[%s7] sm:$0xff] %vm5579, %v5577
  // Predicated region
  $region30: #{net_forward.1} parent=0 // pred_check
    _
  $region31: #{net_forward.1} parent=0 // pred_check_branch
    %5582 = sbr.rel (0) target = $region33
  $region32: #{net_forward.1} parent=0 // pred_region
    _
  $region33: #{net_forward.1} parent=0 // pred_fallthru
    _
  // Predicated region
  $region34: #{net_forward.1} parent=0 // pred_check
    _
  $region35: #{net_forward.1} parent=0 // pred_check_branch
    %5584 = sbr.rel (0) target = $region37
  $region36: #{net_forward.1} parent=0 // pred_region
    _
  $region37: #{net_forward.1} parent=0 // pred_fallthru
    _

</llo_original>
